<compile_context>
chip_gen: v5e
topology: v5e:2x2
jax: 0.10.0
libtpu: 0.0.40
codegen_flags: <defaults>
</compile_context>

<pallas_src>
import jax
import jax.numpy as jnp
import numpy as np
from jax.experimental import pallas as pl
from jax.experimental.pallas import tpu as pltpu

HIGH = jax.lax.Precision.HIGHEST  # reference only; the kernel uses default precision


def _make_kernel(cfg):
    C, L, NB = cfg["C"], cfg["L"], cfg["NB"]
    L16, NC, H1, H2 = cfg["L16"], cfg["NC"], cfg["H1"], cfg["H2"]
    conv_rows = cfg["conv_rows"]          # list of (row_offset, c_in, c_out)
    mo = cfg["mlp_offs"]                  # row offsets inside the MLP slab

    def kernel(x_ref, xf_ref, conv_ref, w1_ref, mlp_ref, o_ref):
        f32, bf16 = jnp.float32, jnp.bfloat16

        def mm(a, b):
            # single-pass bf16 MXU inputs, f32 accumulation
            return jnp.dot(a.astype(bf16), b.astype(bf16),
                           preferred_element_type=f32)

        # ---------- features_down: (NB, C*L) -> (NB, L16), fully batched ----------
        b1 = mlp_ref[mo["b1"]:mo["b1"] + 1, :H1].astype(f32)
        h = jnp.maximum(mm(xf_ref[...], w1_ref[...]) + b1, 0.0)
        w2 = mlp_ref[mo["w2"]:mo["w2"] + H1, :H2]
        b2 = mlp_ref[mo["b2"]:mo["b2"] + 1, :H2].astype(f32)
        h = jnp.maximum(mm(h, w2) + b2, 0.0)
        w3 = mlp_ref[mo["w3"]:mo["w3"] + H2, :L16]
        b3 = mlp_ref[mo["b3"]:mo["b3"] + 1, :L16].astype(f32)
        down = mm(h, w3) + b3                                   # (NB, L16) f32

        # Even-lane compaction matrix for MaxPool1d(2), built in-kernel from
        # iota (no DMA'd constant): sel_even[k, p] = 1 iff k == 2p.
        rr = jax.lax.broadcasted_iota(jnp.int32, (256, 128), 0)
        cc = jax.lax.broadcasted_iota(jnp.int32, (256, 128), 1)
        sel_even = (rr == 2 * cc).astype(bf16)

        # ---------- features_up: all NB samples batched on the lane axis ----------
        a = x_ref[...].astype(f32)                              # (C, NB*L)
        n_lvls = len(conv_rows)
        up_row = None
        for lvl, (r0, cin, cout) in enumerate(conv_rows):
            Lc = L >> lvl
            nl = NB * Lc
            # position of each lane inside its sample (Lc is a power of two)
            pos = jax.lax.broadcasted_iota(jnp.int32, (cin, nl), 1) & (Lc - 1)
            xl = jnp.where(pos != 0,      pltpu.roll(a, 1,      axis=1), 0.0)
            xr = jnp.where(pos != Lc - 1, pltpu.roll(a, nl - 1, axis=1), 0.0)
            stacked = jnp.concatenate([xl, a, xr], axis=0)      # (3*cin, nl)
            w = conv_ref[r0:r0 + cout, :3 * cin]                # BN-folded weights
            sh = conv_ref[r0:r0 + cout, 3 * cin:3 * cin + 1].astype(f32)
            z = mm(w, stacked) + sh                             # conv + bias (+BN)
            if lvl < n_lvls - 1:
                z = jnp.maximum(z, 0.0)                         # ReLU
                # MaxPool1d(2): pooled values live at even lanes; odd lanes
                # (incl. the cross-sample wrap of the roll) are discarded.
                zp = jnp.maximum(z, pltpu.roll(z, nl - 1, axis=1))
                # Compact even lanes with per-256-lane block-diagonal matmuls
                # (linear in nl; replaces the old O(nl^2) selection matmul).
                T = min(256, nl)
                pieces = [mm(zp[:, j * T:(j + 1) * T], sel_even[:T, :T // 2])
                          for j in range(nl // T)]
                a = pieces[0] if len(pieces) == 1 else jnp.concatenate(pieces, axis=1)
            else:
                up_row = z                                      # (1, NB*L16)

        # ---------- (1, NB*L16) -> (NB, L16) via masked broadcast + tiny matmul ---
        sub = jax.lax.broadcasted_iota(jnp.int32, (NB, NB * L16), 0)
        lane = jax.lax.broadcasted_iota(jnp.int32, (NB, NB * L16), 1)
        own = (lane >= sub * L16) & (lane < sub * L16 + L16)
        g = jnp.where(own, jnp.broadcast_to(up_row, (NB, NB * L16)), 0.0)
        sk = jax.lax.broadcasted_iota(jnp.int32, (NB * L16, L16), 0)
        st = jax.lax.broadcasted_iota(jnp.int32, (NB * L16, L16), 1)
        sel_t = ((sk & (L16 - 1)) == st).astype(bf16)
        up = mm(g, sel_t)                                       # (NB, L16)

        # ---------- residual add + classifier: one batched matmul, one store ------
        wc = mlp_ref[mo["wc"]:mo["wc"] + L16, :NC]
        bc = mlp_ref[mo["bc"]:mo["bc"] + 1, :NC].astype(f32)
        o_ref[...] = mm(up + down, wc) + bc

    return kernel


def _rup(v, m):
    return -(-v // m) * m


def zolotyh_forward(x, params, num_classes=8):
    N, C, L = x.shape
    assert L % 16 == 0 and (L & (L - 1)) == 0, "kernel assumes power-of-two L"
    L16, NC, H1, H2 = L // 16, num_classes, 64, 16
    eps = 1e-5
    bf16 = jnp.bfloat16

    # Batch tile: NB*L = 2048 lanes at level 0 keeps the deepest conv level at
    # 128 lanes (one full vreg) while grid = N // NB > 1 enables pipelining and
    # megacore sharding for larger batches.
    NB = 32
    while NB > 1 and N % NB:
        NB //= 2
    assert N % NB == 0
    assert (NB * L) % 128 == 0 or NB == N, "batch tile must be lane-aligned"

    A = lambda k: np.asarray(params[k], np.float32)

    def bn_fold(i, prefix):
        g, b = A(f"{prefix}{i}g"), A(f"{prefix}{i}b")
        m, v = A(f"{prefix}{i}m"), A(f"{prefix}{i}v")
        s = g / np.sqrt(v + eps)
        return s, b - m * s

    # ---- folded conv weights (+ bias/BN shift column) in one bf16 slab ----
    conv_dims = [(C, 8), (8, 16), (16, 32), (32, 32), (32, 1)]
    conv_rows, r = [], 0
    for cin, cout in conv_dims:
        conv_rows.append((r, cin, cout))
        r = _rup(r + cout, 16)                   # 16-row alignment (bf16 packing)
    conv_slab = np.zeros((r, 128), np.float32)   # lane-padded to 128
    for i, (r0, cin, cout) in enumerate(conv_rows, start=1):
        w, b = A(f"c{i}w"), A(f"c{i}b")
        wf = np.concatenate([w[:, :, 0], w[:, :, 1], w[:, :, 2]], axis=1)
        if i <= 4:                               # conv5 has no BatchNorm
            s, t = bn_fold(i, "bn")
            wf = wf * s[:, None]
            sh = b * s + t
        else:
            sh = b
        conv_slab[r0:r0 + cout, :3 * cin] = wf
        conv_slab[r0:r0 + cout, 3 * cin] = sh

    # ---- MLP / classifier params in one bf16 slab (lane-padded to 128) ----
    offs = {"b1": 0, "w2": 16}
    offs["b2"] = _rup(offs["w2"] + H1, 16)
    offs["w3"] = _rup(offs["b2"] + 1, 16)
    offs["b3"] = _rup(offs["w3"] + H2, 16)
    offs["wc"] = _rup(offs["b3"] + 1, 16)
    offs["bc"] = _rup(offs["wc"] + L16, 16)
    mrows = _rup(offs["bc"] + 1, 16)
    mlp_slab = np.zeros((mrows, 128), np.float32)

    s1, t1 = bn_fold(1, "bnd")
    s2, t2 = bn_fold(2, "bnd")
    w1 = A("w1").T * s1[None, :]                 # (C*L, 64), BN folded
    mlp_slab[offs["b1"], :H1] = A("b1") * s1 + t1
    mlp_slab[offs["w2"]:offs["w2"] + H1, :H2] = A("w2").T * s2[None, :]
    mlp_slab[offs["b2"], :H2] = A("b2") * s2 + t2
    mlp_slab[offs["w3"]:offs["w3"] + H2, :L16] = A("w3").T
    mlp_slab[offs["b3"], :L16] = A("b3")
    mlp_slab[offs["wc"]:offs["wc"] + L16, :NC] = A("wc").T
    mlp_slab[offs["bc"], :NC] = A("bc")

    # ---- activation inputs (bf16; samples on the lane axis for the conv) ----
    x_conv = jnp.transpose(x, (1, 0, 2)).reshape(C, N * L).astype(bf16)
    x_flat = x.reshape(N, C * L).astype(bf16)

    cfg = dict(C=C, L=L, NB=NB, L16=L16, NC=NC, H1=H1, H2=H2,
               conv_rows=conv_rows, mlp_offs=offs)
    kernel = _make_kernel(cfg)

    return pl.pallas_call(
        kernel,
        out_shape=jax.ShapeDtypeStruct((N, NC), jnp.float32),
        grid=(N // NB,),
        in_specs=[
            pl.BlockSpec((C, NB * L), lambda i: (0, i)),
            pl.BlockSpec((NB, C * L), lambda i: (i, 0)),
            pl.BlockSpec(conv_slab.shape, lambda i: (0, 0)),
            pl.BlockSpec((C * L, H1), lambda i: (0, 0)),
            pl.BlockSpec(mlp_slab.shape, lambda i: (0, 0)),
        ],
        out_specs=pl.BlockSpec((NB, NC), lambda i: (i, 0)),
        compiler_params=pltpu.CompilerParams(
            dimension_semantics=("parallel",)),
    )(x_conv, x_flat,
      jnp.asarray(conv_slab, bf16), jnp.asarray(w1, bf16),
      jnp.asarray(mlp_slab, bf16))


def make_params(key, C, L, num_classes=8):
    ks = iter(jax.random.split(key, 64))
    p = {}

    def nrm(shape, scale=1.0):
        return scale * jax.random.normal(next(ks), shape, dtype=jnp.float32)

    conv_dims = [(C, 8), (8, 16), (16, 32), (32, 32), (32, 1)]
    for i, (cin, cout) in enumerate(conv_dims, start=1):
        k = 1.0 / (cin * 3) ** 0.5                        # PyTorch-like Conv1d init
        p[f"c{i}w"] = nrm((cout, cin, 3), k)
        p[f"c{i}b"] = nrm((cout,), k)
    for i, c in enumerate([8, 16, 32, 32], start=1):
        p[f"bn{i}g"] = 1.0 + nrm((c,), 0.1)
        p[f"bn{i}b"] = nrm((c,), 0.1)
        p[f"bn{i}m"] = nrm((c,), 0.1)
        p[f"bn{i}v"] = jax.random.uniform(next(ks), (c,), jnp.float32, 0.5, 1.5)
    lin_dims = [(C * L, 64), (64, 16), (16, L // 16)]
    for i, (fin, fout) in enumerate(lin_dims, start=1):
        p[f"w{i}"] = nrm((fout, fin), 1.0 / fin ** 0.5)
        p[f"b{i}"] = nrm((fout,), 0.1)
    for i, f in enumerate([64, 16], start=1):
        p[f"bnd{i}g"] = 1.0 + nrm((f,), 0.1)
        p[f"bnd{i}b"] = nrm((f,), 0.1)
        p[f"bnd{i}m"] = nrm((f,), 0.1)
        p[f"bnd{i}v"] = jax.random.uniform(next(ks), (f,), jnp.float32, 0.5, 1.5)
    p["wc"] = nrm((num_classes, L // 16), 1.0 / (L // 16) ** 0.5)
    p["bc"] = nrm((num_classes,), 0.1)
    return p


def reference_forward(x, p):
    # Pure-JAX reference (eval-mode BatchNorm) at f32/HIGHEST precision.
    eps = 1e-5

    def conv1d(a, w, b):
        y = jax.lax.conv_general_dilated(a, w, (1,), ((1, 1),),
                                         dimension_numbers=("NCH", "OIH", "NCH"),
                                         precision=HIGH)
        return y + b[None, :, None]

    def bn_c(a, g, b, m, v):
        s = g / jnp.sqrt(v + eps)
        return a * s[None, :, None] + (b - m * s)[None, :, None]

    def bn_r(a, g, b, m, v):
        s = g / jnp.sqrt(v + eps)
        return a * s[None, :] + (b - m * s)[None, :]

    def pool(a):
        n, c, l = a.shape
        return a.reshape(n, c, l // 2, 2).max(axis=-1)

    a = x
    for i in range(1, 5):
        a = conv1d(a, p[f"c{i}w"], p[f"c{i}b"])
        a = jnp.maximum(bn_c(a, p[f"bn{i}g"], p[f"bn{i}b"], p[f"bn{i}m"], p[f"bn{i}v"]), 0.0)
        a = pool(a)
    a = conv1d(a, p["c5w"], p["c5b"])
    up = a.reshape(a.shape[0], -1)

    h = x.reshape(x.shape[0], -1)
    h = jnp.dot(h, p["w1"].T, precision=HIGH) + p["b1"][None, :]
    h = jnp.maximum(bn_r(h, p["bnd1g"], p["bnd1b"], p["bnd1m"], p["bnd1v"]), 0.0)
    h = jnp.dot(h, p["w2"].T, precision=HIGH) + p["b2"][None, :]
    h = jnp.maximum(bn_r(h, p["bnd2g"], p["bnd2b"], p["bnd2m"], p["bnd2v"]), 0.0)
    down = jnp.dot(h, p["w3"].T, precision=HIGH) + p["b3"][None, :]

    mid = up + down
    return jnp.dot(mid, p["wc"].T, precision=HIGH) + p["bc"][None, :]


if __name__ == "__main__":
    # module input_shape = (L, C) = (64, 4); x is (N, C, L) as fed to Conv1d.
    # N = 64 -> NB = 32, grid = 2 so the multi-tile / parallel path is exercised.
    N, C, L, NUM_CLASSES = 64, 4, 64, 8
    kx, kp = jax.random.split(jax.random.PRNGKey(0))
    x = jax.random.normal(kx, (N, C, L), dtype=jnp.float32)
    params = make_params(kp, C, L, NUM_CLASSES)

    out = jax.block_until_ready(zolotyh_forward(x, params, NUM_CLASSES))
    ref = reference_forward(x, params)

    assert out.shape == (N, NUM_CLASSES)
    assert bool(jnp.all(jnp.isfinite(out)))
    # Kernel stores operands in bf16 and uses the single-pass bf16 MXU path
    # (per perf review); tolerance is vs. an f32 HIGHEST-precision reference,
    # so allow ~bf16-level (5e-2) deviation.  Structural/indexing bugs would
    # produce O(1) errors and still be caught.
    assert jnp.allclose(out, ref, rtol=5e-2, atol=5e-2), \
        float(jnp.max(jnp.abs(out - ref)))
    print("KERNEL_OK")
</pallas_src>

<mosaic_0001>
module attributes {stable_mosaic.version = 11 : i64} {
  func.func @kernel(%arg0: i32, %arg1: memref<4x2048xbf16, #tpu.memory_space<vmem>>, %arg2: memref<32x256xbf16, #tpu.memory_space<vmem>>, %arg3: memref<112x128xbf16, #tpu.memory_space<vmem>>, %arg4: memref<256x64xbf16, #tpu.memory_space<vmem>>, %arg5: memref<160x128xbf16, #tpu.memory_space<vmem>>, %arg6: memref<32x8xf32, #tpu.memory_space<vmem>>) attributes {dimension_semantics = [#tpu.dimension_semantics<parallel>], iteration_bounds = array<i64: 2>, scalar_prefetch = 0 : i64, scratch_operands = 0 : i64, tpu.core_type = #tpu.core_type<tc>, window_params = [{transform_indices = @transform_0, window_bounds = array<i64: 4, 2048>}, {transform_indices = @transform_1, window_bounds = array<i64: 32, 256>}, {pipeline_mode = #tpu.pipeline_mode<synchronous>, transform_indices = @transform_2, window_bounds = array<i64: 112, 128>}, {pipeline_mode = #tpu.pipeline_mode<synchronous>, transform_indices = @transform_3, window_bounds = array<i64: 256, 64>}, {pipeline_mode = #tpu.pipeline_mode<synchronous>, transform_indices = @transform_4, window_bounds = array<i64: 160, 128>}, {transform_indices = @transform_5, window_bounds = array<i64: 32, 8>}]} {
    %c0 = arith.constant 0 : index
    %c0_0 = arith.constant 0 : index
    %0 = vector.load %arg5[%c0, %c0_0] : memref<160x128xbf16, #tpu.memory_space<vmem>>, vector<1x64xbf16>
    %1 = arith.extf %0 : vector<1x64xbf16> to vector<1x64xf32>
    %c0_1 = arith.constant 0 : index
    %c0_2 = arith.constant 0 : index
    %2 = vector.load %arg2[%c0_1, %c0_2] : memref<32x256xbf16, #tpu.memory_space<vmem>>, vector<32x256xbf16>
    %c0_3 = arith.constant 0 : index
    %c0_4 = arith.constant 0 : index
    %3 = vector.load %arg4[%c0_3, %c0_4] : memref<256x64xbf16, #tpu.memory_space<vmem>>, vector<256x64xbf16>
    %cst = arith.constant dense<0.000000e+00> : vector<32x64xf32>
    %4 = tpu.matmul %2, %3, %cst {dimension_numbers = #tpu.dot_dimension_numbers<[1], [0], [0], [1], [0, 0, 1, 1], [], []>} : vector<32x256xbf16>, vector<256x64xbf16>, vector<32x64xf32> -> vector<32x64xf32>
    %5 = vector.broadcast %1 : vector<1x64xf32> to vector<32x64xf32>
    %6 = arith.addf %4, %5 : vector<32x64xf32>
    %cst_5 = arith.constant 0.000000e+00 : f32
    %7 = vector.broadcast %cst_5 : f32 to vector<32x64xf32>
    %8 = arith.maximumf %6, %7 : vector<32x64xf32>
    %c16 = arith.constant 16 : index
    %c0_6 = arith.constant 0 : index
    %9 = vector.load %arg5[%c16, %c0_6] : memref<160x128xbf16, #tpu.memory_space<vmem>>, vector<64x16xbf16>
    %c80 = arith.constant 80 : index
    %c0_7 = arith.constant 0 : index
    %10 = vector.load %arg5[%c80, %c0_7] : memref<160x128xbf16, #tpu.memory_space<vmem>>, vector<1x16xbf16>
    %11 = arith.extf %10 : vector<1x16xbf16> to vector<1x16xf32>
    %12 = arith.truncf %8 : vector<32x64xf32> to vector<32x64xbf16>
    %cst_8 = arith.constant dense<0.000000e+00> : vector<32x16xf32>
    %13 = tpu.matmul %12, %9, %cst_8 {dimension_numbers = #tpu.dot_dimension_numbers<[1], [0], [0], [1], [0, 0, 1, 1], [], []>} : vector<32x64xbf16>, vector<64x16xbf16>, vector<32x16xf32> -> vector<32x16xf32>
    %14 = vector.broadcast %11 : vector<1x16xf32> to vector<32x16xf32>
    %15 = arith.addf %13, %14 : vector<32x16xf32>
    %cst_9 = arith.constant 0.000000e+00 : f32
    %16 = vector.broadcast %cst_9 : f32 to vector<32x16xf32>
    %17 = arith.maximumf %15, %16 : vector<32x16xf32>
    %c96 = arith.constant 96 : index
    %c0_10 = arith.constant 0 : index
    %18 = vector.load %arg5[%c96, %c0_10] : memref<160x128xbf16, #tpu.memory_space<vmem>>, vector<16x4xbf16>
    %c112 = arith.constant 112 : index
    %c0_11 = arith.constant 0 : index
    %19 = vector.load %arg5[%c112, %c0_11] : memref<160x128xbf16, #tpu.memory_space<vmem>>, vector<1x4xbf16>
    %20 = arith.extf %19 : vector<1x4xbf16> to vector<1x4xf32>
    %21 = arith.truncf %17 : vector<32x16xf32> to vector<32x16xbf16>
    %cst_12 = arith.constant dense<0.000000e+00> : vector<32x4xf32>
    %22 = tpu.matmul %21, %18, %cst_12 {dimension_numbers = #tpu.dot_dimension_numbers<[1], [0], [0], [1], [0, 0, 1, 1], [], []>} : vector<32x16xbf16>, vector<16x4xbf16>, vector<32x4xf32> -> vector<32x4xf32>
    %23 = vector.broadcast %20 : vector<1x4xf32> to vector<32x4xf32>
    %24 = arith.addf %22, %23 : vector<32x4xf32>
    %25 = tpu.iota {dimensions = array<i32: 0>} : vector<256x128xi32>
    %26 = tpu.iota {dimensions = array<i32: 1>} : vector<256x128xi32>
    %c2_i32 = arith.constant 2 : i32
    %27 = vector.broadcast %c2_i32 : i32 to vector<256x128xi32>
    %28 = arith.muli %27, %26 : vector<256x128xi32>
    %29 = arith.cmpi eq, %25, %28 : vector<256x128xi32>
    %30 = arith.extui %29 : vector<256x128xi1> to vector<256x128xi32>
    %31 = arith.sitofp %30 : vector<256x128xi32> to vector<256x128xf32>
    %32 = arith.truncf %31 : vector<256x128xf32> to vector<256x128xbf16>
    %c0_13 = arith.constant 0 : index
    %c0_14 = arith.constant 0 : index
    %33 = vector.load %arg1[%c0_13, %c0_14] : memref<4x2048xbf16, #tpu.memory_space<vmem>>, vector<4x2048xbf16>
    %34 = arith.extf %33 : vector<4x2048xbf16> to vector<4x2048xf32>
    %35 = tpu.iota {dimensions = array<i32: 1>} : vector<4x2048xi32>
    %c63_i32 = arith.constant 63 : i32
    %36 = vector.broadcast %c63_i32 : i32 to vector<4x2048xi32>
    %37 = arith.andi %35, %36 : vector<4x2048xi32>
    %c0_i32 = arith.constant 0 : i32
    %38 = vector.broadcast %c0_i32 : i32 to vector<4x2048xi32>
    %39 = arith.cmpi ne, %37, %38 : vector<4x2048xi32>
    %c1_i32 = arith.constant 1 : i32
    %40 = tpu.dynamic_rotate %34 by %c1_i32 dim 1 : vector<4x2048xf32>, i32 -> vector<4x2048xf32>
    %cst_15 = arith.constant 0.000000e+00 : f32
    %41 = vector.broadcast %cst_15 : f32 to vector<4x2048xf32>
    %42 = arith.select %39, %40, %41 : vector<4x2048xi1>, vector<4x2048xf32>
    %c63_i32_16 = arith.constant 63 : i32
    %43 = vector.broadcast %c63_i32_16 : i32 to vector<4x2048xi32>
    %44 = arith.cmpi ne, %37, %43 : vector<4x2048xi32>
    %c2047_i32 = arith.constant 2047 : i32
    %45 = tpu.dynamic_rotate %34 by %c2047_i32 dim 1 : vector<4x2048xf32>, i32 -> vector<4x2048xf32>
    %cst_17 = arith.constant 0.000000e+00 : f32
    %46 = vector.broadcast %cst_17 : f32 to vector<4x2048xf32>
    %47 = arith.select %44, %45, %46 : vector<4x2048xi1>, vector<4x2048xf32>
    %48 = tpu.concatenate %42, %34, %47 in 0 : vector<4x2048xf32>, vector<4x2048xf32>, vector<4x2048xf32> -> vector<12x2048xf32>
    %c0_18 = arith.constant 0 : index
    %c0_19 = arith.constant 0 : index
    %49 = vector.load %arg3[%c0_18, %c0_19] : memref<112x128xbf16, #tpu.memory_space<vmem>>, vector<8x12xbf16>
    %c0_20 = arith.constant 0 : index
    %c12 = arith.constant 12 : index
    %50 = vector.load %arg3[%c0_20, %c12] : memref<112x128xbf16, #tpu.memory_space<vmem>>, vector<8x1xbf16>
    %51 = arith.extf %50 : vector<8x1xbf16> to vector<8x1xf32>
    %52 = arith.truncf %48 : vector<12x2048xf32> to vector<12x2048xbf16>
    %cst_21 = arith.constant dense<0.000000e+00> : vector<8x2048xf32>
    %53 = tpu.matmul %49, %52, %cst_21 {dimension_numbers = #tpu.dot_dimension_numbers<[1], [0], [0], [1], [0, 0, 1, 1], [], []>} : vector<8x12xbf16>, vector<12x2048xbf16>, vector<8x2048xf32> -> vector<8x2048xf32>
    %54 = vector.broadcast %51 : vector<8x1xf32> to vector<8x2048xf32>
    %55 = arith.addf %53, %54 : vector<8x2048xf32>
    %cst_22 = arith.constant 0.000000e+00 : f32
    %56 = vector.broadcast %cst_22 : f32 to vector<8x2048xf32>
    %57 = arith.maximumf %55, %56 : vector<8x2048xf32>
    %c2047_i32_23 = arith.constant 2047 : i32
    %58 = tpu.dynamic_rotate %57 by %c2047_i32_23 dim 1 : vector<8x2048xf32>, i32 -> vector<8x2048xf32>
    %59 = arith.maximumf %57, %58 : vector<8x2048xf32>
    %60 = vector.extract_strided_slice %59 {offsets = [0, 0], sizes = [8, 256], strides = [1, 1]} : vector<8x2048xf32> to vector<8x256xf32>
    %61 = arith.truncf %60 : vector<8x256xf32> to vector<8x256xbf16>
    %cst_24 = arith.constant dense<0.000000e+00> : vector<8x128xf32>
    %62 = tpu.matmul %61, %32, %cst_24 {dimension_numbers = #tpu.dot_dimension_numbers<[1], [0], [0], [1], [0, 0, 1, 1], [], []>} : vector<8x256xbf16>, vector<256x128xbf16>, vector<8x128xf32> -> vector<8x128xf32>
    %63 = vector.extract_strided_slice %59 {offsets = [0, 256], sizes = [8, 256], strides = [1, 1]} : vector<8x2048xf32> to vector<8x256xf32>
    %64 = arith.truncf %63 : vector<8x256xf32> to vector<8x256xbf16>
    %cst_25 = arith.constant dense<0.000000e+00> : vector<8x128xf32>
    %65 = tpu.matmul %64, %32, %cst_25 {dimension_numbers = #tpu.dot_dimension_numbers<[1], [0], [0], [1], [0, 0, 1, 1], [], []>} : vector<8x256xbf16>, vector<256x128xbf16>, vector<8x128xf32> -> vector<8x128xf32>
    %66 = vector.extract_strided_slice %59 {offsets = [0, 512], sizes = [8, 256], strides = [1, 1]} : vector<8x2048xf32> to vector<8x256xf32>
    %67 = arith.truncf %66 : vector<8x256xf32> to vector<8x256xbf16>
    %cst_26 = arith.constant dense<0.000000e+00> : vector<8x128xf32>
    %68 = tpu.matmul %67, %32, %cst_26 {dimension_numbers = #tpu.dot_dimension_numbers<[1], [0], [0], [1], [0, 0, 1, 1], [], []>} : vector<8x256xbf16>, vector<256x128xbf16>, vector<8x128xf32> -> vector<8x128xf32>
    %69 = vector.extract_strided_slice %59 {offsets = [0, 768], sizes = [8, 256], strides = [1, 1]} : vector<8x2048xf32> to vector<8x256xf32>
    %70 = arith.truncf %69 : vector<8x256xf32> to vector<8x256xbf16>
    %cst_27 = arith.constant dense<0.000000e+00> : vector<8x128xf32>
    %71 = tpu.matmul %70, %32, %cst_27 {dimension_numbers = #tpu.dot_dimension_numbers<[1], [0], [0], [1], [0, 0, 1, 1], [], []>} : vector<8x256xbf16>, vector<256x128xbf16>, vector<8x128xf32> -> vector<8x128xf32>
    %72 = vector.extract_strided_slice %59 {offsets = [0, 1024], sizes = [8, 256], strides = [1, 1]} : vector<8x2048xf32> to vector<8x256xf32>
    %73 = arith.truncf %72 : vector<8x256xf32> to vector<8x256xbf16>
    %cst_28 = arith.constant dense<0.000000e+00> : vector<8x128xf32>
    %74 = tpu.matmul %73, %32, %cst_28 {dimension_numbers = #tpu.dot_dimension_numbers<[1], [0], [0], [1], [0, 0, 1, 1], [], []>} : vector<8x256xbf16>, vector<256x128xbf16>, vector<8x128xf32> -> vector<8x128xf32>
    %75 = vector.extract_strided_slice %59 {offsets = [0, 1280], sizes = [8, 256], strides = [1, 1]} : vector<8x2048xf32> to vector<8x256xf32>
    %76 = arith.truncf %75 : vector<8x256xf32> to vector<8x256xbf16>
    %cst_29 = arith.constant dense<0.000000e+00> : vector<8x128xf32>
    %77 = tpu.matmul %76, %32, %cst_29 {dimension_numbers = #tpu.dot_dimension_numbers<[1], [0], [0], [1], [0, 0, 1, 1], [], []>} : vector<8x256xbf16>, vector<256x128xbf16>, vector<8x128xf32> -> vector<8x128xf32>
    %78 = vector.extract_strided_slice %59 {offsets = [0, 1536], sizes = [8, 256], strides = [1, 1]} : vector<8x2048xf32> to vector<8x256xf32>
    %79 = arith.truncf %78 : vector<8x256xf32> to vector<8x256xbf16>
    %cst_30 = arith.constant dense<0.000000e+00> : vector<8x128xf32>
    %80 = tpu.matmul %79, %32, %cst_30 {dimension_numbers = #tpu.dot_dimension_numbers<[1], [0], [0], [1], [0, 0, 1, 1], [], []>} : vector<8x256xbf16>, vector<256x128xbf16>, vector<8x128xf32> -> vector<8x128xf32>
    %81 = vector.extract_strided_slice %59 {offsets = [0, 1792], sizes = [8, 256], strides = [1, 1]} : vector<8x2048xf32> to vector<8x256xf32>
    %82 = arith.truncf %81 : vector<8x256xf32> to vector<8x256xbf16>
    %cst_31 = arith.constant dense<0.000000e+00> : vector<8x128xf32>
    %83 = tpu.matmul %82, %32, %cst_31 {dimension_numbers = #tpu.dot_dimension_numbers<[1], [0], [0], [1], [0, 0, 1, 1], [], []>} : vector<8x256xbf16>, vector<256x128xbf16>, vector<8x128xf32> -> vector<8x128xf32>
    %84 = tpu.concatenate %62, %65, %68, %71, %74, %77, %80, %83 in 1 : vector<8x128xf32>, vector<8x128xf32>, vector<8x128xf32>, vector<8x128xf32>, vector<8x128xf32>, vector<8x128xf32>, vector<8x128xf32>, vector<8x128xf32> -> vector<8x1024xf32>
    %85 = tpu.iota {dimensions = array<i32: 1>} : vector<8x1024xi32>
    %c31_i32 = arith.constant 31 : i32
    %86 = vector.broadcast %c31_i32 : i32 to vector<8x1024xi32>
    %87 = arith.andi %85, %86 : vector<8x1024xi32>
    %c0_i32_32 = arith.constant 0 : i32
    %88 = vector.broadcast %c0_i32_32 : i32 to vector<8x1024xi32>
    %89 = arith.cmpi ne, %87, %88 : vector<8x1024xi32>
    %c1_i32_33 = arith.constant 1 : i32
    %90 = tpu.dynamic_rotate %84 by %c1_i32_33 dim 1 : vector<8x1024xf32>, i32 -> vector<8x1024xf32>
    %cst_34 = arith.constant 0.000000e+00 : f32
    %91 = vector.broadcast %cst_34 : f32 to vector<8x1024xf32>
    %92 = arith.select %89, %90, %91 : vector<8x1024xi1>, vector<8x1024xf32>
    %c31_i32_35 = arith.constant 31 : i32
    %93 = vector.broadcast %c31_i32_35 : i32 to vector<8x1024xi32>
    %94 = arith.cmpi ne, %87, %93 : vector<8x1024xi32>
    %c1023_i32 = arith.constant 1023 : i32
    %95 = tpu.dynamic_rotate %84 by %c1023_i32 dim 1 : vector<8x1024xf32>, i32 -> vector<8x1024xf32>
    %cst_36 = arith.constant 0.000000e+00 : f32
    %96 = vector.broadcast %cst_36 : f32 to vector<8x1024xf32>
    %97 = arith.select %94, %95, %96 : vector<8x1024xi1>, vector<8x1024xf32>
    %98 = tpu.concatenate %92, %84, %97 in 0 : vector<8x1024xf32>, vector<8x1024xf32>, vector<8x1024xf32> -> vector<24x1024xf32>
    %c16_37 = arith.constant 16 : index
    %c0_38 = arith.constant 0 : index
    %99 = vector.load %arg3[%c16_37, %c0_38] : memref<112x128xbf16, #tpu.memory_space<vmem>>, vector<16x24xbf16>
    %c16_39 = arith.constant 16 : index
    %c24 = arith.constant 24 : index
    %100 = vector.load %arg3[%c16_39, %c24] : memref<112x128xbf16, #tpu.memory_space<vmem>>, vector<16x1xbf16>
    %101 = arith.extf %100 : vector<16x1xbf16> to vector<16x1xf32>
    %102 = arith.truncf %98 : vector<24x1024xf32> to vector<24x1024xbf16>
    %cst_40 = arith.constant dense<0.000000e+00> : vector<16x1024xf32>
    %103 = tpu.matmul %99, %102, %cst_40 {dimension_numbers = #tpu.dot_dimension_numbers<[1], [0], [0], [1], [0, 0, 1, 1], [], []>} : vector<16x24xbf16>, vector<24x1024xbf16>, vector<16x1024xf32> -> vector<16x1024xf32>
    %104 = vector.broadcast %101 : vector<16x1xf32> to vector<16x1024xf32>
    %105 = arith.addf %103, %104 : vector<16x1024xf32>
    %cst_41 = arith.constant 0.000000e+00 : f32
    %106 = vector.broadcast %cst_41 : f32 to vector<16x1024xf32>
    %107 = arith.maximumf %105, %106 : vector<16x1024xf32>
    %c1023_i32_42 = arith.constant 1023 : i32
    %108 = tpu.dynamic_rotate %107 by %c1023_i32_42 dim 1 : vector<16x1024xf32>, i32 -> vector<16x1024xf32>
    %109 = arith.maximumf %107, %108 : vector<16x1024xf32>
    %110 = vector.extract_strided_slice %109 {offsets = [0, 0], sizes = [16, 256], strides = [1, 1]} : vector<16x1024xf32> to vector<16x256xf32>
    %111 = arith.truncf %110 : vector<16x256xf32> to vector<16x256xbf16>
    %cst_43 = arith.constant dense<0.000000e+00> : vector<16x128xf32>
    %112 = tpu.matmul %111, %32, %cst_43 {dimension_numbers = #tpu.dot_dimension_numbers<[1], [0], [0], [1], [0, 0, 1, 1], [], []>} : vector<16x256xbf16>, vector<256x128xbf16>, vector<16x128xf32> -> vector<16x128xf32>
    %113 = vector.extract_strided_slice %109 {offsets = [0, 256], sizes = [16, 256], strides = [1, 1]} : vector<16x1024xf32> to vector<16x256xf32>
    %114 = arith.truncf %113 : vector<16x256xf32> to vector<16x256xbf16>
    %cst_44 = arith.constant dense<0.000000e+00> : vector<16x128xf32>
    %115 = tpu.matmul %114, %32, %cst_44 {dimension_numbers = #tpu.dot_dimension_numbers<[1], [0], [0], [1], [0, 0, 1, 1], [], []>} : vector<16x256xbf16>, vector<256x128xbf16>, vector<16x128xf32> -> vector<16x128xf32>
    %116 = vector.extract_strided_slice %109 {offsets = [0, 512], sizes = [16, 256], strides = [1, 1]} : vector<16x1024xf32> to vector<16x256xf32>
    %117 = arith.truncf %116 : vector<16x256xf32> to vector<16x256xbf16>
    %cst_45 = arith.constant dense<0.000000e+00> : vector<16x128xf32>
    %118 = tpu.matmul %117, %32, %cst_45 {dimension_numbers = #tpu.dot_dimension_numbers<[1], [0], [0], [1], [0, 0, 1, 1], [], []>} : vector<16x256xbf16>, vector<256x128xbf16>, vector<16x128xf32> -> vector<16x128xf32>
    %119 = vector.extract_strided_slice %109 {offsets = [0, 768], sizes = [16, 256], strides = [1, 1]} : vector<16x1024xf32> to vector<16x256xf32>
    %120 = arith.truncf %119 : vector<16x256xf32> to vector<16x256xbf16>
    %cst_46 = arith.constant dense<0.000000e+00> : vector<16x128xf32>
    %121 = tpu.matmul %120, %32, %cst_46 {dimension_numbers = #tpu.dot_dimension_numbers<[1], [0], [0], [1], [0, 0, 1, 1], [], []>} : vector<16x256xbf16>, vector<256x128xbf16>, vector<16x128xf32> -> vector<16x128xf32>
    %122 = tpu.concatenate %112, %115, %118, %121 in 1 : vector<16x128xf32>, vector<16x128xf32>, vector<16x128xf32>, vector<16x128xf32> -> vector<16x512xf32>
    %123 = tpu.iota {dimensions = array<i32: 1>} : vector<16x512xi32>
    %c15_i32 = arith.constant 15 : i32
    %124 = vector.broadcast %c15_i32 : i32 to vector<16x512xi32>
    %125 = arith.andi %123, %124 : vector<16x512xi32>
    %c0_i32_47 = arith.constant 0 : i32
    %126 = vector.broadcast %c0_i32_47 : i32 to vector<16x512xi32>
    %127 = arith.cmpi ne, %125, %126 : vector<16x512xi32>
    %c1_i32_48 = arith.constant 1 : i32
    %128 = tpu.dynamic_rotate %122 by %c1_i32_48 dim 1 : vector<16x512xf32>, i32 -> vector<16x512xf32>
    %cst_49 = arith.constant 0.000000e+00 : f32
    %129 = vector.broadcast %cst_49 : f32 to vector<16x512xf32>
    %130 = arith.select %127, %128, %129 : vector<16x512xi1>, vector<16x512xf32>
    %c15_i32_50 = arith.constant 15 : i32
    %131 = vector.broadcast %c15_i32_50 : i32 to vector<16x512xi32>
    %132 = arith.cmpi ne, %125, %131 : vector<16x512xi32>
    %c511_i32 = arith.constant 511 : i32
    %133 = tpu.dynamic_rotate %122 by %c511_i32 dim 1 : vector<16x512xf32>, i32 -> vector<16x512xf32>
    %cst_51 = arith.constant 0.000000e+00 : f32
    %134 = vector.broadcast %cst_51 : f32 to vector<16x512xf32>
    %135 = arith.select %132, %133, %134 : vector<16x512xi1>, vector<16x512xf32>
    %136 = tpu.concatenate %130, %122, %135 in 0 : vector<16x512xf32>, vector<16x512xf32>, vector<16x512xf32> -> vector<48x512xf32>
    %c32 = arith.constant 32 : index
    %c0_52 = arith.constant 0 : index
    %137 = vector.load %arg3[%c32, %c0_52] : memref<112x128xbf16, #tpu.memory_space<vmem>>, vector<32x48xbf16>
    %c32_53 = arith.constant 32 : index
    %c48 = arith.constant 48 : index
    %138 = vector.load %arg3[%c32_53, %c48] : memref<112x128xbf16, #tpu.memory_space<vmem>>, vector<32x1xbf16>
    %139 = arith.extf %138 : vector<32x1xbf16> to vector<32x1xf32>
    %140 = arith.truncf %136 : vector<48x512xf32> to vector<48x512xbf16>
    %cst_54 = arith.constant dense<0.000000e+00> : vector<32x512xf32>
    %141 = tpu.matmul %137, %140, %cst_54 {dimension_numbers = #tpu.dot_dimension_numbers<[1], [0], [0], [1], [0, 0, 1, 1], [], []>} : vector<32x48xbf16>, vector<48x512xbf16>, vector<32x512xf32> -> vector<32x512xf32>
    %142 = vector.broadcast %139 : vector<32x1xf32> to vector<32x512xf32>
    %143 = arith.addf %141, %142 : vector<32x512xf32>
    %cst_55 = arith.constant 0.000000e+00 : f32
    %144 = vector.broadcast %cst_55 : f32 to vector<32x512xf32>
    %145 = arith.maximumf %143, %144 : vector<32x512xf32>
    %c511_i32_56 = arith.constant 511 : i32
    %146 = tpu.dynamic_rotate %145 by %c511_i32_56 dim 1 : vector<32x512xf32>, i32 -> vector<32x512xf32>
    %147 = arith.maximumf %145, %146 : vector<32x512xf32>
    %148 = vector.extract_strided_slice %147 {offsets = [0, 0], sizes = [32, 256], strides = [1, 1]} : vector<32x512xf32> to vector<32x256xf32>
    %149 = arith.truncf %148 : vector<32x256xf32> to vector<32x256xbf16>
    %cst_57 = arith.constant dense<0.000000e+00> : vector<32x128xf32>
    %150 = tpu.matmul %149, %32, %cst_57 {dimension_numbers = #tpu.dot_dimension_numbers<[1], [0], [0], [1], [0, 0, 1, 1], [], []>} : vector<32x256xbf16>, vector<256x128xbf16>, vector<32x128xf32> -> vector<32x128xf32>
    %151 = vector.extract_strided_slice %147 {offsets = [0, 256], sizes = [32, 256], strides = [1, 1]} : vector<32x512xf32> to vector<32x256xf32>
    %152 = arith.truncf %151 : vector<32x256xf32> to vector<32x256xbf16>
    %cst_58 = arith.constant dense<0.000000e+00> : vector<32x128xf32>
    %153 = tpu.matmul %152, %32, %cst_58 {dimension_numbers = #tpu.dot_dimension_numbers<[1], [0], [0], [1], [0, 0, 1, 1], [], []>} : vector<32x256xbf16>, vector<256x128xbf16>, vector<32x128xf32> -> vector<32x128xf32>
    %154 = tpu.concatenate %150, %153 in 1 : vector<32x128xf32>, vector<32x128xf32> -> vector<32x256xf32>
    %155 = tpu.iota {dimensions = array<i32: 1>} : vector<32x256xi32>
    %c7_i32 = arith.constant 7 : i32
    %156 = vector.broadcast %c7_i32 : i32 to vector<32x256xi32>
    %157 = arith.andi %155, %156 : vector<32x256xi32>
    %c0_i32_59 = arith.constant 0 : i32
    %158 = vector.broadcast %c0_i32_59 : i32 to vector<32x256xi32>
    %159 = arith.cmpi ne, %157, %158 : vector<32x256xi32>
    %c1_i32_60 = arith.constant 1 : i32
    %160 = tpu.dynamic_rotate %154 by %c1_i32_60 dim 1 : vector<32x256xf32>, i32 -> vector<32x256xf32>
    %cst_61 = arith.constant 0.000000e+00 : f32
    %161 = vector.broadcast %cst_61 : f32 to vector<32x256xf32>
    %162 = arith.select %159, %160, %161 : vector<32x256xi1>, vector<32x256xf32>
    %c7_i32_62 = arith.constant 7 : i32
    %163 = vector.broadcast %c7_i32_62 : i32 to vector<32x256xi32>
    %164 = arith.cmpi ne, %157, %163 : vector<32x256xi32>
    %c255_i32 = arith.constant 255 : i32
    %165 = tpu.dynamic_rotate %154 by %c255_i32 dim 1 : vector<32x256xf32>, i32 -> vector<32x256xf32>
    %cst_63 = arith.constant 0.000000e+00 : f32
    %166 = vector.broadcast %cst_63 : f32 to vector<32x256xf32>
    %167 = arith.select %164, %165, %166 : vector<32x256xi1>, vector<32x256xf32>
    %168 = tpu.concatenate %162, %154, %167 in 0 : vector<32x256xf32>, vector<32x256xf32>, vector<32x256xf32> -> vector<96x256xf32>
    %c64 = arith.constant 64 : index
    %c0_64 = arith.constant 0 : index
    %169 = vector.load %arg3[%c64, %c0_64] : memref<112x128xbf16, #tpu.memory_space<vmem>>, vector<32x96xbf16>
    %c64_65 = arith.constant 64 : index
    %c96_66 = arith.constant 96 : index
    %170 = vector.load %arg3[%c64_65, %c96_66] : memref<112x128xbf16, #tpu.memory_space<vmem>>, vector<32x1xbf16>
    %171 = arith.extf %170 : vector<32x1xbf16> to vector<32x1xf32>
    %172 = arith.truncf %168 : vector<96x256xf32> to vector<96x256xbf16>
    %cst_67 = arith.constant dense<0.000000e+00> : vector<32x256xf32>
    %173 = tpu.matmul %169, %172, %cst_67 {dimension_numbers = #tpu.dot_dimension_numbers<[1], [0], [0], [1], [0, 0, 1, 1], [], []>} : vector<32x96xbf16>, vector<96x256xbf16>, vector<32x256xf32> -> vector<32x256xf32>
    %174 = vector.broadcast %171 : vector<32x1xf32> to vector<32x256xf32>
    %175 = arith.addf %173, %174 : vector<32x256xf32>
    %cst_68 = arith.constant 0.000000e+00 : f32
    %176 = vector.broadcast %cst_68 : f32 to vector<32x256xf32>
    %177 = arith.maximumf %175, %176 : vector<32x256xf32>
    %c255_i32_69 = arith.constant 255 : i32
    %178 = tpu.dynamic_rotate %177 by %c255_i32_69 dim 1 : vector<32x256xf32>, i32 -> vector<32x256xf32>
    %179 = arith.maximumf %177, %178 : vector<32x256xf32>
    %180 = arith.truncf %179 : vector<32x256xf32> to vector<32x256xbf16>
    %cst_70 = arith.constant dense<0.000000e+00> : vector<32x128xf32>
    %181 = tpu.matmul %180, %32, %cst_70 {dimension_numbers = #tpu.dot_dimension_numbers<[1], [0], [0], [1], [0, 0, 1, 1], [], []>} : vector<32x256xbf16>, vector<256x128xbf16>, vector<32x128xf32> -> vector<32x128xf32>
    %182 = tpu.iota {dimensions = array<i32: 1>} : vector<32x128xi32>
    %c3_i32 = arith.constant 3 : i32
    %183 = vector.broadcast %c3_i32 : i32 to vector<32x128xi32>
    %184 = arith.andi %182, %183 : vector<32x128xi32>
    %c0_i32_71 = arith.constant 0 : i32
    %185 = vector.broadcast %c0_i32_71 : i32 to vector<32x128xi32>
    %186 = arith.cmpi ne, %184, %185 : vector<32x128xi32>
    %c1_i32_72 = arith.constant 1 : i32
    %187 = tpu.dynamic_rotate %181 by %c1_i32_72 dim 1 : vector<32x128xf32>, i32 -> vector<32x128xf32>
    %cst_73 = arith.constant 0.000000e+00 : f32
    %188 = vector.broadcast %cst_73 : f32 to vector<32x128xf32>
    %189 = arith.select %186, %187, %188 : vector<32x128xi1>, vector<32x128xf32>
    %c3_i32_74 = arith.constant 3 : i32
    %190 = vector.broadcast %c3_i32_74 : i32 to vector<32x128xi32>
    %191 = arith.cmpi ne, %184, %190 : vector<32x128xi32>
    %c127_i32 = arith.constant 127 : i32
    %192 = tpu.dynamic_rotate %181 by %c127_i32 dim 1 : vector<32x128xf32>, i32 -> vector<32x128xf32>
    %cst_75 = arith.constant 0.000000e+00 : f32
    %193 = vector.broadcast %cst_75 : f32 to vector<32x128xf32>
    %194 = arith.select %191, %192, %193 : vector<32x128xi1>, vector<32x128xf32>
    %195 = tpu.concatenate %189, %181, %194 in 0 : vector<32x128xf32>, vector<32x128xf32>, vector<32x128xf32> -> vector<96x128xf32>
    %c96_76 = arith.constant 96 : index
    %c0_77 = arith.constant 0 : index
    %196 = vector.load %arg3[%c96_76, %c0_77] : memref<112x128xbf16, #tpu.memory_space<vmem>>, vector<1x96xbf16>
    %c96_78 = arith.constant 96 : index
    %c96_79 = arith.constant 96 : index
    %197 = vector.load %arg3[%c96_78, %c96_79] : memref<112x128xbf16, #tpu.memory_space<vmem>>, vector<1x1xbf16>
    %198 = arith.extf %197 : vector<1x1xbf16> to vector<1x1xf32>
    %199 = arith.truncf %195 : vector<96x128xf32> to vector<96x128xbf16>
    %cst_80 = arith.constant dense<0.000000e+00> : vector<1x128xf32>
    %200 = tpu.matmul %196, %199, %cst_80 {dimension_numbers = #tpu.dot_dimension_numbers<[1], [0], [0], [1], [0, 0, 1, 1], [], []>} : vector<1x96xbf16>, vector<96x128xbf16>, vector<1x128xf32> -> vector<1x128xf32>
    %201 = vector.broadcast %198 : vector<1x1xf32> to vector<1x128xf32>
    %202 = arith.addf %200, %201 : vector<1x128xf32>
    %203 = tpu.iota {dimensions = array<i32: 0>} : vector<32x128xi32>
    %204 = tpu.iota {dimensions = array<i32: 1>} : vector<32x128xi32>
    %c4_i32 = arith.constant 4 : i32
    %205 = vector.broadcast %c4_i32 : i32 to vector<32x128xi32>
    %206 = arith.muli %203, %205 : vector<32x128xi32>
    %207 = arith.cmpi sge, %204, %206 : vector<32x128xi32>
    %c4_i32_81 = arith.constant 4 : i32
    %208 = vector.broadcast %c4_i32_81 : i32 to vector<32x128xi32>
    %209 = arith.muli %203, %208 : vector<32x128xi32>
    %c4_i32_82 = arith.constant 4 : i32
    %210 = vector.broadcast %c4_i32_82 : i32 to vector<32x128xi32>
    %211 = arith.addi %209, %210 : vector<32x128xi32>
    %212 = arith.cmpi slt, %204, %211 : vector<32x128xi32>
    %213 = arith.andi %207, %212 : vector<32x128xi1>
    %214 = vector.shape_cast %202 : vector<1x128xf32> to vector<1x128xf32>
    %215 = vector.broadcast %214 : vector<1x128xf32> to vector<32x128xf32>
    %cst_83 = arith.constant 0.000000e+00 : f32
    %216 = vector.broadcast %cst_83 : f32 to vector<32x128xf32>
    %217 = arith.select %213, %215, %216 : vector<32x128xi1>, vector<32x128xf32>
    %218 = tpu.iota {dimensions = array<i32: 0>} : vector<128x4xi32>
    %219 = tpu.iota {dimensions = array<i32: 1>} : vector<128x4xi32>
    %c3_i32_84 = arith.constant 3 : i32
    %220 = vector.broadcast %c3_i32_84 : i32 to vector<128x4xi32>
    %221 = arith.andi %218, %220 : vector<128x4xi32>
    %222 = arith.cmpi eq, %221, %219 : vector<128x4xi32>
    %223 = arith.extui %222 : vector<128x4xi1> to vector<128x4xi32>
    %224 = arith.sitofp %223 : vector<128x4xi32> to vector<128x4xf32>
    %225 = arith.truncf %224 : vector<128x4xf32> to vector<128x4xbf16>
    %226 = arith.truncf %217 : vector<32x128xf32> to vector<32x128xbf16>
    %cst_85 = arith.constant dense<0.000000e+00> : vector<32x4xf32>
    %227 = tpu.matmul %226, %225, %cst_85 {dimension_numbers = #tpu.dot_dimension_numbers<[1], [0], [0], [1], [0, 0, 1, 1], [], []>} : vector<32x128xbf16>, vector<128x4xbf16>, vector<32x4xf32> -> vector<32x4xf32>
    %c128 = arith.constant 128 : index
    %c0_86 = arith.constant 0 : index
    %228 = vector.load %arg5[%c128, %c0_86] : memref<160x128xbf16, #tpu.memory_space<vmem>>, vector<4x8xbf16>
    %c144 = arith.constant 144 : index
    %c0_87 = arith.constant 0 : index
    %229 = vector.load %arg5[%c144, %c0_87] : memref<160x128xbf16, #tpu.memory_space<vmem>>, vector<1x8xbf16>
    %230 = arith.extf %229 : vector<1x8xbf16> to vector<1x8xf32>
    %231 = arith.addf %227, %24 : vector<32x4xf32>
    %232 = arith.truncf %231 : vector<32x4xf32> to vector<32x4xbf16>
    %cst_88 = arith.constant dense<0.000000e+00> : vector<32x8xf32>
    %233 = tpu.matmul %232, %228, %cst_88 {dimension_numbers = #tpu.dot_dimension_numbers<[1], [0], [0], [1], [0, 0, 1, 1], [], []>} : vector<32x4xbf16>, vector<4x8xbf16>, vector<32x8xf32> -> vector<32x8xf32>
    %234 = vector.broadcast %230 : vector<1x8xf32> to vector<32x8xf32>
    %235 = arith.addf %233, %234 : vector<32x8xf32>
    %c0_89 = arith.constant 0 : index
    %c0_90 = arith.constant 0 : index
    %236 = vector.load %arg6[%c0_89, %c0_90] : memref<32x8xf32, #tpu.memory_space<vmem>>, vector<32x8xf32>
    tpu.vector_store %arg6[%c0_89, %c0_90], %235 {strides = array<i32>} : memref<32x8xf32, #tpu.memory_space<vmem>>, vector<32x8xf32>,
    return
  }
  func.func @transform_0(%arg0: i32) -> (i32, i32) {
    %c0_i32 = arith.constant 0 : i32
    %c0_i32_0 = arith.constant 0 : i32
    return %c0_i32, %arg0 : i32, i32
  }
  func.func @transform_1(%arg0: i32) -> (i32, i32) {
    %c0_i32 = arith.constant 0 : i32
    %c0_i32_0 = arith.constant 0 : i32
    return %arg0, %c0_i32 : i32, i32
  }
  func.func @transform_2(%arg0: i32) -> (i32, i32) {
    %c0_i32 = arith.constant 0 : i32
    %c0_i32_0 = arith.constant 0 : i32
    %c0_i32_1 = arith.constant 0 : i32
    return %c0_i32, %c0_i32_0 : i32, i32
  }
  func.func @transform_3(%arg0: i32) -> (i32, i32) {
    %c0_i32 = arith.constant 0 : i32
    %c0_i32_0 = arith.constant 0 : i32
    %c0_i32_1 = arith.constant 0 : i32
    return %c0_i32, %c0_i32_0 : i32, i32
  }
  func.func @transform_4(%arg0: i32) -> (i32, i32) {
    %c0_i32 = arith.constant 0 : i32
    %c0_i32_0 = arith.constant 0 : i32
    %c0_i32_1 = arith.constant 0 : i32
    return %c0_i32, %c0_i32_0 : i32, i32
  }
  func.func @transform_5(%arg0: i32) -> (i32, i32) {
    %c0_i32 = arith.constant 0 : i32
    %c0_i32_0 = arith.constant 0 : i32
    return %arg0, %c0_i32 : i32, i32
  }
}

</mosaic_0001>

<llo_original>
// kernel: tpu_custom_call.1
$region0: #{tpu_custom_call.1}
  #allocation0 [shape = 'u32[]', space=smem, size = 0x4, offset = 0x4, fixed_abs, tag = 'smem constant byte address 0x4 - core index']
  #allocation1 [shape = 'u32[72,128]{1,0:T(1,128)}', space=vmem, size = 0x9000, scoped, tag = 'internal scratch']
  %s0 = inlined_call_operand.vmem [shape: bf16[4,4096], index: 0, kind: input, shape index: {}]
  %s1 = inlined_call_operand.hbm [shape: bf16[64,256], index: 1, kind: input, shape index: {}]
  %s2 = inlined_call_operand.hbm [shape: bf16[112,128], index: 2, kind: input, shape index: {}]
  %s3 = inlined_call_operand.vmem [shape: bf16[256,64], index: 3, kind: input, shape index: {}]
  %s4 = inlined_call_operand.vmem [shape: bf16[160,128], index: 4, kind: input, shape index: {}]
  %s5 = inlined_call_operand.vmem [shape: f32[64,8], index: 5, kind: output, shape index: {}]
  %s6 = sld [smem:[#allocation0]]
  $region61: #{tpu_custom_call.1} parent=0
    _
  %s8 = ssub.s32 1, %s6
  %s9 = scalar_select 0, %s8, %s6
  $region1: #{tpu_custom_call.1} parent=0
    #allocation2 [shape = 'u8[32768]{0}', space=vmem, size = 0x8000, scoped, tag = 'input window, operand 1']
    #allocation3 [shape = 's32[2]{0}', space=sflag, size = 0x8, scoped, tag = 'scoped memory for tpu_custom_call.1']
    #allocation4 [shape = 'u8[28672]{0}', space=vmem, size = 0x7000, scoped, tag = 'input window, operand 2, single buffered']
    #allocation5 [shape = 's32[1]{0}', space=sflag, size = 0x4, scoped, tag = 'scoped memory for tpu_custom_call.1']
    %10 = vsyncpa [#allocation3], 0
    %s11 = scalar_lea.sflag [#allocation3], 1
    %12 = vsyncpa %s11, 0
    %13 = vsyncpa [#allocation5], 0
    loop: start=0, step=1, limit=4
    $region2: #{tpu_custom_call.1} parent=1 // loop_pre_header
      _
    $region3: #{tpu_custom_call.1} parent=1 // loop_header
      %s15 = sphi 0, %s19
      %p16 = scmp.ge.s32.totalorder %s15, 4
      %s25 = sphi 0, %s27
      %s28 = sphi 0, %s25
      %s29 = sphi 0, %s28
      %s45 = sphi 0, %s29
      %s51 = sphi 0, %s53
      %s54 = sphi 0, %s51
      %s55 = sphi 0, %s54
      %s71 = sphi 0, %s55
      %s75 = sphi 0, %s75
      %s77 = sphi 0, %s75
      %s78 = sphi 0, %s77
      %s92 = sphi 0, %s78
      %s96 = sphi 0, %s96
      %s98 = sphi 0, %s96
      %s99 = sphi 0, %s98
      %s113 = sphi 0, %s99
      %s117 = sphi 0, %s117
      %s119 = sphi 0, %s117
      %s120 = sphi 0, %s119
      %s134 = sphi 0, %s120
      %s140 = sphi 0, %s142
      %s143 = sphi 0, %s140
      %s144 = sphi 0, %s143
      %s160 = sphi 0, %s144
    $region4: #{tpu_custom_call.1} parent=1 // loop_header_branch
      %18 = sbr.rel (%p16) target = $region8
    $region5: #{tpu_custom_call.1} parent=1 // loop_body
      %s20 = ssub.s32 %s15, 1
      %s21 = ssub.s32 %s15, 2
      %s22 = sadd.s32 %s15, 1
      %s23 = ssub.s32 %s15, %s22
      %p24 = scmp.eq.s32.totalorder %s23, 0
      %s26 = sadd.s32 %s25, 1
      %s27 = scalar_select %p24, %s25, %s26
      %p30 = pneg %p24
      %p31 = scmp.eq.s32.totalorder %s15, 1
      %p32 = por %p30, %p31
      %p33 = scmp.ne.s32.totalorder %s25, %s28
      %p34 = scmp.eq.s32.totalorder %s15, 0
      %p35 = por %p33, %p34
      %p36 = scmp.ne.s32.totalorder %s25, %s28
      %p37 = scmp.eq.s32.totalorder %s20, 1
      %p38 = por %p36, %p37
      %p39 = scmp.ne.s32.totalorder %s28, %s29
      %p40 = scmp.eq.s32.totalorder %s20, 0
      %p41 = por %p39, %p40
      %p42 = scmp.ne.s32.totalorder %s28, %s29
      %p43 = scmp.eq.s32.totalorder %s21, 1
      %p44 = por %p42, %p43
      %p46 = scmp.ne.s32.totalorder %s29, %s45
      %p47 = scmp.eq.s32.totalorder %s21, 0
      %p48 = por %p46, %p47
      %s49 = ssub.s32 %s15, %s22
      %p50 = scmp.eq.s32.totalorder %s49, 0
      %s52 = sadd.s32 %s51, 1
      %s53 = scalar_select %p50, %s51, %s52
      %p56 = pneg %p50
      %p57 = scmp.eq.s32.totalorder %s15, 1
      %p58 = por %p56, %p57
      %p59 = scmp.ne.s32.totalorder %s51, %s54
      %p60 = scmp.eq.s32.totalorder %s15, 0
      %p61 = por %p59, %p60
      %p62 = scmp.ne.s32.totalorder %s51, %s54
      %p63 = scmp.eq.s32.totalorder %s20, 1
      %p64 = por %p62, %p63
      %p65 = scmp.ne.s32.totalorder %s54, %s55
      %p66 = scmp.eq.s32.totalorder %s20, 0
      %p67 = por %p65, %p66
      %p68 = scmp.ne.s32.totalorder %s54, %s55
      %p69 = scmp.eq.s32.totalorder %s21, 1
      %p70 = por %p68, %p69
      %p72 = scmp.ne.s32.totalorder %s55, %s71
      %p73 = scmp.eq.s32.totalorder %s21, 0
      %p74 = por %p72, %p73
      %s76 = sadd.s32 %s75, 1
      %p79 = scmp.eq.s32.totalorder %s15, 1
      %p80 = scmp.ne.s32.totalorder %s75, %s77
      %p81 = scmp.eq.s32.totalorder %s15, 0
      %p82 = por %p80, %p81
      %p83 = scmp.ne.s32.totalorder %s75, %s77
      %p84 = scmp.eq.s32.totalorder %s20, 1
      %p85 = por %p83, %p84
      %p86 = scmp.ne.s32.totalorder %s77, %s78
      %p87 = scmp.eq.s32.totalorder %s20, 0
      %p88 = por %p86, %p87
      %p89 = scmp.ne.s32.totalorder %s77, %s78
      %p90 = scmp.eq.s32.totalorder %s21, 1
      %p91 = por %p89, %p90
      %p93 = scmp.ne.s32.totalorder %s78, %s92
      %p94 = scmp.eq.s32.totalorder %s21, 0
      %p95 = por %p93, %p94
      %s97 = sadd.s32 %s96, 1
      %p100 = scmp.eq.s32.totalorder %s15, 1
      %p101 = scmp.ne.s32.totalorder %s96, %s98
      %p102 = scmp.eq.s32.totalorder %s15, 0
      %p103 = por %p101, %p102
      %p104 = scmp.ne.s32.totalorder %s96, %s98
      %p105 = scmp.eq.s32.totalorder %s20, 1
      %p106 = por %p104, %p105
      %p107 = scmp.ne.s32.totalorder %s98, %s99
      %p108 = scmp.eq.s32.totalorder %s20, 0
      %p109 = por %p107, %p108
      %p110 = scmp.ne.s32.totalorder %s98, %s99
      %p111 = scmp.eq.s32.totalorder %s21, 1
      %p112 = por %p110, %p111
      %p114 = scmp.ne.s32.totalorder %s99, %s113
      %p115 = scmp.eq.s32.totalorder %s21, 0
      %p116 = por %p114, %p115
      %s118 = sadd.s32 %s117, 1
      %p121 = scmp.eq.s32.totalorder %s15, 1
      %p122 = scmp.ne.s32.totalorder %s117, %s119
      %p123 = scmp.eq.s32.totalorder %s15, 0
      %p124 = por %p122, %p123
      %p125 = scmp.ne.s32.totalorder %s117, %s119
      %p126 = scmp.eq.s32.totalorder %s20, 1
      %p127 = por %p125, %p126
      %p128 = scmp.ne.s32.totalorder %s119, %s120
      %p129 = scmp.eq.s32.totalorder %s20, 0
      %p130 = por %p128, %p129
      %p131 = scmp.ne.s32.totalorder %s119, %s120
      %p132 = scmp.eq.s32.totalorder %s21, 1
      %p133 = por %p131, %p132
      %p135 = scmp.ne.s32.totalorder %s120, %s134
      %p136 = scmp.eq.s32.totalorder %s21, 0
      %p137 = por %p135, %p136
      %s138 = ssub.s32 %s15, %s22
      %p139 = scmp.eq.s32.totalorder %s138, 0
      %s141 = sadd.s32 %s140, 1
      %s142 = scalar_select %p139, %s140, %s141
      %p145 = pneg %p139
      %p146 = scmp.eq.s32.totalorder %s15, 1
      %p147 = por %p145, %p146
      %p148 = scmp.ne.s32.totalorder %s140, %s143
      %p149 = scmp.eq.s32.totalorder %s15, 0
      %p150 = por %p148, %p149
      %p151 = scmp.ne.s32.totalorder %s140, %s143
      %p152 = scmp.eq.s32.totalorder %s20, 1
      %p153 = por %p151, %p152
      %p154 = scmp.ne.s32.totalorder %s143, %s144
      %p155 = scmp.eq.s32.totalorder %s20, 0
      %p156 = por %p154, %p155
      %p157 = scmp.ne.s32.totalorder %s143, %s144
      %p158 = scmp.eq.s32.totalorder %s21, 1
      %p159 = por %p157, %p158
      %p161 = scmp.ne.s32.totalorder %s144, %s160
      %p162 = scmp.eq.s32.totalorder %s21, 0
      %p163 = por %p161, %p162
      %p164 = scmp.le.s32.totalorder 1, %s15
      %p165 = scmp.lt.s32.totalorder %s15, 3
      %p166 = pnand %p164, %p165
      %p167 = pneg %p166
      // Predicated region
      $region9: #{tpu_custom_call.1} parent=5 // pred_check
        _
      $region10: #{tpu_custom_call.1} parent=5 // pred_check_branch
        %169 = sbr.rel (%p166) target = $region12
      $region11: #{tpu_custom_call.1} parent=5 // pred_region
        %s170 = ssub.s32 %s15, 1
        // Predicated region
        $region13: #{tpu_custom_call.1} parent=11 // pred_check
          %p171 = pneg %p88
        $region14: #{tpu_custom_call.1} parent=11 // pred_check_branch
          %173 = sbr.rel (%p171) target = $region16
        $region15: #{tpu_custom_call.1} parent=11 // pred_region
          %175 = vsyncadd [#allocation5], 0
          %s176 = sshll.u32 %s2, 4
          %s177 = int_to_ptr.hbm [resolvable:$true] %s176
          %s178 = sshll.u32 [#allocation4], 4
          %s179 = int_to_ptr.vmem [resolvable:$true] %s178
          %184 = dma.hbm_to_vmem [thread:$0]  %s177, 896, %s179, [#allocation5], 64, 64, 4
        $region16: #{tpu_custom_call.1} parent=11 // pred_fallthru
          _
        // Predicated region
        $region17: #{tpu_custom_call.1} parent=11 // pred_check
          %p185 = pneg %p109
        $region18: #{tpu_custom_call.1} parent=11 // pred_check_branch
          %187 = sbr.rel (%p185) target = $region20
        $region19: #{tpu_custom_call.1} parent=11 // pred_region
          _
        $region20: #{tpu_custom_call.1} parent=11 // pred_fallthru
          _
        // Predicated region
        $region21: #{tpu_custom_call.1} parent=11 // pred_check
          %p188 = pneg %p130
        $region22: #{tpu_custom_call.1} parent=11 // pred_check_branch
          %190 = sbr.rel (%p188) target = $region24
        $region23: #{tpu_custom_call.1} parent=11 // pred_region
          _
        $region24: #{tpu_custom_call.1} parent=11 // pred_fallthru
          _
      $region12: #{tpu_custom_call.1} parent=5 // pred_fallthru
        _
      %p191 = scmp.lt.s32.totalorder %s15, 2
      // Predicated region
      $region25: #{tpu_custom_call.1} parent=5 // pred_check
        %p192 = pneg %p191
      $region26: #{tpu_custom_call.1} parent=5 // pred_check_branch
        %194 = sbr.rel (%p192) target = $region28
      $region27: #{tpu_custom_call.1} parent=5 // pred_region
        // Predicated region
        $region29: #{tpu_custom_call.1} parent=27 // pred_check
          %p195 = pneg %p35
        $region30: #{tpu_custom_call.1} parent=27 // pred_check_branch
          %197 = sbr.rel (%p195) target = $region32
        $region31: #{tpu_custom_call.1} parent=27 // pred_region
          %s198 = smul.u32 16, %s15
          %p199 = scmp.lt.s32.totalorder %s198, 31
          %s200 = scalar_select %p199, %s198, 31
          %s201 = smul.addr %s200, 2
          %s202 = scalar_lea.vmem %s0, %s201
          %s203 = smul.u32 16, %s15
        $region32: #{tpu_custom_call.1} parent=27 // pred_fallthru
          _
        // Predicated region
        $region33: #{tpu_custom_call.1} parent=27 // pred_check
          %p204 = pneg %p61
        $region34: #{tpu_custom_call.1} parent=27 // pred_check_branch
          %206 = sbr.rel (%p204) target = $region36
        $region35: #{tpu_custom_call.1} parent=27 // pred_region
          %s207 = sand.u32 %s51, 1
          %s208 = scalar_lea.sflag [#allocation3], %s207
          %s209 = sand.u32 %s51, 1
          %s210 = smul.addr %s209, 32
          %s211 = scalar_lea.vmem [#allocation2], %s210
          %s212 = smul.u32 4, %s15
          %214 = vsyncadd %s208, 0
          %s215 = smul.addr %s212, 2
          %s216 = smul.addr %s215, 4
          %s217 = scalar_lea.hbm %s1, %s216
          %s218 = sshll.u32 %s217, 4
          %s219 = int_to_ptr.hbm [resolvable:$true] %s218
          %s220 = sshll.u32 %s211, 4
          %s221 = int_to_ptr.vmem [resolvable:$true] %s220
          %226 = dma.hbm_to_vmem [thread:$0]  %s219, 512, %s221, %s208, 128, 128, 8
        $region36: #{tpu_custom_call.1} parent=27 // pred_fallthru
          _
      $region28: #{tpu_custom_call.1} parent=5 // pred_fallthru
        _
      %p227 = scmp.le.s32.totalorder 1, %s15
      %p228 = scmp.lt.s32.totalorder %s15, 3
      %p229 = pnand %p227, %p228
      %p230 = pneg %p229
      // Predicated region
      $region37: #{tpu_custom_call.1} parent=5 // pred_check
        _
      $region38: #{tpu_custom_call.1} parent=5 // pred_check_branch
        %232 = sbr.rel (%p229) target = $region40
      $region39: #{tpu_custom_call.1} parent=5 // pred_region
        %s233 = ssub.s32 %s15, 1
        %s234 = sand.u32 %s54, 1
        %s235 = scalar_lea.sflag [#allocation3], %s234
        %s236 = sand.u32 %s54, 1
        %s237 = smul.addr %s236, 32
        %s238 = scalar_lea.vmem [#allocation2], %s237
        // Predicated region
        $region41: #{tpu_custom_call.1} parent=39 // pred_check
          %p239 = pneg %p67
        $region42: #{tpu_custom_call.1} parent=39 // pred_check_branch
          %241 = sbr.rel (%p239) target = $region44
        $region43: #{tpu_custom_call.1} parent=39 // pred_region
          %243 = dma.done %s235, 512
        $region44: #{tpu_custom_call.1} parent=39 // pred_fallthru
          _
        // Predicated region
        $region45: #{tpu_custom_call.1} parent=39 // pred_check
          %p244 = pneg %p88
        $region46: #{tpu_custom_call.1} parent=39 // pred_check_branch
          %246 = sbr.rel (%p244) target = $region48
        $region47: #{tpu_custom_call.1} parent=39 // pred_region
          %248 = dma.done [#allocation5], 896
        $region48: #{tpu_custom_call.1} parent=39 // pred_fallthru
          _
        %s249 = smul.u32 16, %s20
        %p250 = scmp.lt.s32.totalorder %s249, 31
        %s251 = scalar_select %p250, %s249, 31
        %s252 = smul.addr %s251, 2
        %s253 = scalar_lea.vmem %s0, %s252
        %p254 = pneg %p41
        %p255 = pneg %p38
        %s256 = sand.u32 %s54, 1
        %s257 = scalar_lea.sflag [#allocation3], %s256
        %s258 = sand.u32 %s54, 1
        %s259 = smul.addr %s258, 32
        %s260 = scalar_lea.vmem [#allocation2], %s259
        %p261 = pneg %p67
        %p262 = pneg %p64
        %p263 = pneg %p88
        %p264 = pneg %p85
        %p265 = pneg %p109
        %p266 = pneg %p106
        %p267 = pneg %p130
        %p268 = pneg %p127
        %p269 = pneg %p156
        %p270 = pneg %p153
        %s271 = smul.u32 4, %s20
        %p272 = scmp.lt.s32.totalorder %s271, 7
        %s273 = scalar_select %p272, %s271, 7
        %s274 = smul.addr %s273, 8
        %s275 = scalar_lea.vmem %s5, %s274
        %s276 = smul.u32 16, %s20
        %p277 = scmp.lt.s32.totalorder %s276, 31
        %s278 = scalar_select %p277, %s276, 31
        %s279 = smul.addr %s278, 2
        %s280 = scalar_lea.vmem %s0, %s279
        %s281 = smul.u32 16, %s20
        %s282 = smul.u32 4, %s20
        %s283 = smul.u32 4, %s20
        %p284 = scmp.lt.s32.totalorder %s283, 7
        %s285 = scalar_select %p284, %s283, 7
        %s286 = smul.addr %s285, 8
        %s287 = scalar_lea.vmem %s5, %s286
        %s288 = smul.u32 4, %s20
        %v290 = vld [vmem:[%s4] sm:$0x1]
        %v291 = vunpack.c.l.bf16 %v290
        %v292 = vld [vmem:[%s238] sm:$0xff]
        %v293 = vld [vmem:[%s238 + $0x8] sm:$0xff]
        %v294 = vld [vmem:[%s238 + $0x10] sm:$0xff]
        %v295 = vld [vmem:[%s238 + $0x18] sm:$0xff]
        %v296 = vld [vmem:[%s3] sm:$0xf]
        %v297 = vld [vmem:[%s3 + $0x4] sm:$0xf]
        %v298 = vld [vmem:[%s3 + $0x8] sm:$0xf]
        %v299 = vld [vmem:[%s3 + $0xc] sm:$0xf]
        %v300 = vld [vmem:[%s3 + $0x10] sm:$0xf]
        %v301 = vld [vmem:[%s3 + $0x14] sm:$0xf]
        %v302 = vld [vmem:[%s3 + $0x18] sm:$0xf]
        %v303 = vld [vmem:[%s3 + $0x1c] sm:$0xf]
        %v304 = vld [vmem:[%s3 + $0x20] sm:$0xf]
        %v305 = vld [vmem:[%s3 + $0x24] sm:$0xf]
        %v306 = vld [vmem:[%s3 + $0x28] sm:$0xf]
        %v307 = vld [vmem:[%s3 + $0x2c] sm:$0xf]
        %v308 = vld [vmem:[%s3 + $0x30] sm:$0xf]
        %v309 = vld [vmem:[%s3 + $0x34] sm:$0xf]
        %v310 = vld [vmem:[%s3 + $0x38] sm:$0xf]
        %v311 = vld [vmem:[%s3 + $0x3c] sm:$0xf]
        %v312 = vld [vmem:[%s3 + $0x40] sm:$0xf]
        %v313 = vld [vmem:[%s3 + $0x44] sm:$0xf]
        %v314 = vld [vmem:[%s3 + $0x48] sm:$0xf]
        %v315 = vld [vmem:[%s3 + $0x4c] sm:$0xf]
        %v316 = vld [vmem:[%s3 + $0x50] sm:$0xf]
        %v317 = vld [vmem:[%s3 + $0x54] sm:$0xf]
        %v318 = vld [vmem:[%s3 + $0x58] sm:$0xf]
        %v319 = vld [vmem:[%s3 + $0x5c] sm:$0xf]
        %v320 = vld [vmem:[%s3 + $0x60] sm:$0xf]
        %v321 = vld [vmem:[%s3 + $0x64] sm:$0xf]
        %v322 = vld [vmem:[%s3 + $0x68] sm:$0xf]
        %v323 = vld [vmem:[%s3 + $0x6c] sm:$0xf]
        %v324 = vld [vmem:[%s3 + $0x70] sm:$0xf]
        %v325 = vld [vmem:[%s3 + $0x74] sm:$0xf]
        %v326 = vld [vmem:[%s3 + $0x78] sm:$0xf]
        %v327 = vld [vmem:[%s3 + $0x7c] sm:$0xf]
        %v328 = vperm.slane %v291, 0
        %v333 = vunpack.c.l.b16 %v292
        %v334 = vunpack.c.h.b16 %v292
        %v335 = vunpack.c.l.b16 %v293
        %v336 = vunpack.c.h.b16 %v293
        %v337 = vunpack.c.l.b16 %v294
        %v338 = vunpack.c.h.b16 %v294
        %v339 = vunpack.c.l.b16 %v295
        %v340 = vunpack.c.h.b16 %v295
        %v341 = vpack.c.b16 %v335, %v333
        %v342 = vpack.c.b16 %v336, %v334
        %v343 = vpack.c.b16 %v339, %v337
        %v344 = vpack.c.b16 %v340, %v338
        %v381 = vunpack.c.l.b16 %v296
        %v382 = vunpack.c.l.b16 %v297
        %v383 = vunpack.c.l.b16 %v298
        %v384 = vunpack.c.l.b16 %v299
        %v385 = vunpack.c.l.b16 %v300
        %v386 = vunpack.c.l.b16 %v301
        %v387 = vunpack.c.l.b16 %v302
        %v388 = vunpack.c.l.b16 %v303
        %v389 = vunpack.c.l.b16 %v304
        %v390 = vunpack.c.l.b16 %v305
        %v391 = vunpack.c.l.b16 %v306
        %v392 = vunpack.c.l.b16 %v307
        %v393 = vunpack.c.l.b16 %v308
        %v394 = vunpack.c.l.b16 %v309
        %v395 = vunpack.c.l.b16 %v310
        %v396 = vunpack.c.l.b16 %v311
        %v397 = vunpack.c.l.b16 %v312
        %v398 = vunpack.c.l.b16 %v313
        %v399 = vunpack.c.l.b16 %v314
        %v400 = vunpack.c.l.b16 %v315
        %v401 = vunpack.c.l.b16 %v316
        %v402 = vunpack.c.l.b16 %v317
        %v403 = vunpack.c.l.b16 %v318
        %v404 = vunpack.c.l.b16 %v319
        %v405 = vunpack.c.l.b16 %v320
        %v406 = vunpack.c.l.b16 %v321
        %v407 = vunpack.c.l.b16 %v322
        %v408 = vunpack.c.l.b16 %v323
        %v409 = vunpack.c.l.b16 %v324
        %v410 = vunpack.c.l.b16 %v325
        %v411 = vunpack.c.l.b16 %v326
        %v412 = vunpack.c.l.b16 %v327
        %v413 = vpack.c.b16 %v382, %v381
        %v414 = vpack.c.b16 %v384, %v383
        %v415 = vpack.c.b16 %v386, %v385
        %v416 = vpack.c.b16 %v388, %v387
        %v417 = vpack.c.b16 %v390, %v389
        %v418 = vpack.c.b16 %v392, %v391
        %v419 = vpack.c.b16 %v394, %v393
        %v420 = vpack.c.b16 %v396, %v395
        %v421 = vpack.c.b16 %v398, %v397
        %v422 = vpack.c.b16 %v400, %v399
        %v423 = vpack.c.b16 %v402, %v401
        %v424 = vpack.c.b16 %v404, %v403
        %v425 = vpack.c.b16 %v406, %v405
        %v426 = vpack.c.b16 %v408, %v407
        %v427 = vpack.c.b16 %v410, %v409
        %v428 = vpack.c.b16 %v412, %v411
        %445 = vmatpush.bf16.msra.mxu0 %v420
        %446 = vmatpush.bf16.msra.mxu0 %v419
        %447 = vmatpush.bf16.msra.mxu0 %v418
        %448 = vmatpush.bf16.msra.mxu0 %v417
        %449 = vmatpush.bf16.msra.mxu0 %v416
        %450 = vmatpush.bf16.msra.mxu0 %v415
        %451 = vmatpush.bf16.msra.mxu0 %v414
        %452 = vmatpush.bf16.msra.mxu0 %v413
        %453 = vmatmul.bf16.gmra.mxu0 %v341
        %v454 = vpop.f32.mrf.mxu0
        %v455 = vadd.f32 %v328, %v454
        %v456 = vpop.f32.mrf.mxu0
        %v457 = vadd.f32 %v328, %v456
        %458 = vmatmul.bf16.gmra.mxu0 %v343
        %v459 = vpop.f32.mrf.mxu0
        %v460 = vadd.f32 %v328, %v459
        %v461 = vpop.f32.mrf.mxu0
        %v462 = vadd.f32 %v328, %v461
        %463 = vdwg.mxu0
        %464 = vmatpush.bf16.msra.mxu0 %v428
        %465 = vmatpush.bf16.msra.mxu0 %v427
        %466 = vmatpush.bf16.msra.mxu0 %v426
        %467 = vmatpush.bf16.msra.mxu0 %v425
        %468 = vmatpush.bf16.msra.mxu0 %v424
        %469 = vmatpush.bf16.msra.mxu0 %v423
        %470 = vmatpush.bf16.msra.mxu0 %v422
        %471 = vmatpush.bf16.msra.mxu0 %v421
        %472 = vmatmul.bf16.gmra.mxu0 %v342
        %v473 = vpop.f32.mrf.mxu0
        %v474 = vadd.f32 %v455, %v473
        %v475 = vpop.f32.mrf.mxu0
        %v476 = vadd.f32 %v457, %v475
        %477 = vmatmul.bf16.gmra.mxu0 %v344
        %v478 = vpop.f32.mrf.mxu0
        %v479 = vadd.f32 %v460, %v478
        %v480 = vpop.f32.mrf.mxu0
        %v481 = vadd.f32 %v462, %v480
        %482 = vdwg.mxu0
        %v483 = vmax.f32 %v474, 0.0
        %v484 = vmax.f32 %v476, 0.0
        %v485 = vmax.f32 %v479, 0.0
        %v486 = vmax.f32 %v481, 0.0
        %v487 = vld [vmem:[%s4 + $0x8] sm:$0xf]
        %v488 = vld [vmem:[%s4 + $0xc] sm:$0xf]
        %v489 = vld [vmem:[%s4 + $0x10] sm:$0xf]
        %v490 = vld [vmem:[%s4 + $0x14] sm:$0xf]
        %v491 = vld [vmem:[%s4 + $0x18] sm:$0xf]
        %v492 = vld [vmem:[%s4 + $0x1c] sm:$0xf]
        %v493 = vld [vmem:[%s4 + $0x20] sm:$0xf]
        %v494 = vld [vmem:[%s4 + $0x24] sm:$0xf]
        %v495 = vld [vmem:[%s4 + $0x28] sm:$0x1]
        %v496 = vunpack.c.l.bf16 %v495
        %v497 = vpack.c.bf16 %v484, %v483
        %v498 = vpack.c.bf16 %v486, %v485
        %v499 = vperm.slane %v496, 0
        %v508 = vunpack.c.l.b16 %v487
        %v509 = vunpack.c.l.b16 %v488
        %v510 = vunpack.c.l.b16 %v489
        %v511 = vunpack.c.l.b16 %v490
        %v512 = vunpack.c.l.b16 %v491
        %v513 = vunpack.c.l.b16 %v492
        %v514 = vunpack.c.l.b16 %v493
        %v515 = vunpack.c.l.b16 %v494
        %v516 = vpack.c.b16 %v509, %v508
        %v517 = vpack.c.b16 %v511, %v510
        %v518 = vpack.c.b16 %v513, %v512
        %v519 = vpack.c.b16 %v515, %v514
        %vm524 = vcmask 523264
        %v526 = vsel %vm524, %v497, 0
        %v529 = vsel %vm524, %v498, 0
        %531 = vmatpush.bf16.msra.mxu0 0
        %532 = vmatpush.bf16.msra.mxu0 0
        %533 = vmatpush.bf16.msra.mxu0 0
        %534 = vmatpush.bf16.msra.mxu0 0
        %535 = vmatpush.bf16.msra.mxu0 %v519
        %536 = vmatpush.bf16.msra.mxu0 %v518
        %537 = vmatpush.bf16.msra.mxu0 %v517
        %538 = vmatpush.bf16.msra.mxu0 %v516
        %539 = vmatmul.bf16.gmra.mxu0 %v526
        %v540 = vpop.f32.mrf.mxu0
        %v541 = vadd.f32 %v499, %v540
        %v542 = vpop.f32.mrf.mxu0
        %v543 = vadd.f32 %v499, %v542
        %544 = vmatmul.bf16.gmra.mxu0 %v529
        %v545 = vpop.f32.mrf.mxu0
        %v546 = vadd.f32 %v499, %v545
        %v547 = vpop.f32.mrf.mxu0
        %v548 = vadd.f32 %v499, %v547
        %549 = vdwg.mxu0
        %v550 = vmax.f32 %v541, 0.0
        %v551 = vmax.f32 %v543, 0.0
        %v552 = vmax.f32 %v546, 0.0
        %v553 = vmax.f32 %v548, 0.0
        %v554 = vld [vmem:[%s4 + $0x30] sm:$0xf]
        %v555 = vld [vmem:[%s4 + $0x34] sm:$0xf]
        %v556 = vld [vmem:[%s4 + $0x38] sm:$0x1]
        %v557 = vunpack.c.l.bf16 %v556
        %v558 = vpack.c.bf16 %v551, %v550
        %v559 = vpack.c.bf16 %v553, %v552
        %v560 = vperm.slane %v557, 0
        %v563 = vunpack.c.l.b16 %v554
        %v564 = vunpack.c.l.b16 %v555
        %v565 = vpack.c.b16 %v564, %v563
        %vm567 = vcmask 130048
        %v569 = vsel %vm567, %v558, 0
        %v572 = vsel %vm567, %v559, 0
        %574 = vmatpush.bf16.msra.mxu0 0
        %575 = vmatpush.bf16.msra.mxu0 0
        %576 = vmatpush.bf16.msra.mxu0 0
        %577 = vmatpush.bf16.msra.mxu0 0
        %578 = vmatpush.bf16.msra.mxu0 0
        %579 = vmatpush.bf16.msra.mxu0 0
        %580 = vmatpush.bf16.msra.mxu0 0
        %581 = vmatpush.bf16.msra.mxu0 %v565
        %582 = vmatmul.bf16.gmra.mxu0 %v569
        %v583 = vpop.f32.mrf.mxu0
        %v584 = vadd.f32 %v560, %v583
        %v585 = vpop.f32.mrf.mxu0
        %v586 = vadd.f32 %v560, %v585
        %587 = vmatmul.bf16.gmra.mxu0 %v572
        %v588 = vpop.f32.mrf.mxu0
        %v589 = vadd.f32 %v560, %v588
        %v590 = vpop.f32.mrf.mxu0
        %v591 = vadd.f32 %v560, %v590
        %592 = vdwg.mxu0
        %v593 = vlaneseq
        %v594 = vshrl.u32 %v593, 7
        %v595 = vadd.s32 %v594, 8
        %v596 = vadd.s32 %v594, 16
        %v597 = vadd.s32 %v594, 24
        %v598 = vadd.s32 %v594, 32
        %v599 = vadd.s32 %v594, 40
        %v600 = vadd.s32 %v594, 48
        %v601 = vadd.s32 %v594, 56
        %v602 = vadd.s32 %v594, 64
        %v603 = vadd.s32 %v594, 72
        %v604 = vadd.s32 %v594, 80
        %v605 = vadd.s32 %v594, 88
        %v606 = vadd.s32 %v594, 96
        %v607 = vadd.s32 %v594, 104
        %v608 = vadd.s32 %v594, 112
        %v609 = vadd.s32 %v594, 120
        %v610 = vadd.s32 %v594, 128
        %v611 = vadd.s32 %v594, 136
        %v612 = vadd.s32 %v594, 144
        %v613 = vadd.s32 %v594, 152
        %v614 = vadd.s32 %v594, 160
        %v615 = vadd.s32 %v594, 168
        %v616 = vadd.s32 %v594, 176
        %v617 = vadd.s32 %v594, 184
        %v618 = vadd.s32 %v594, 192
        %v619 = vadd.s32 %v594, 200
        %v620 = vadd.s32 %v594, 208
        %v621 = vadd.s32 %v594, 216
        %v622 = vadd.s32 %v594, 224
        %v623 = vadd.s32 %v594, 232
        %v624 = vadd.s32 %v594, 240
        %v625 = vadd.s32 %v594, 248
        %v626 = vlaneseq
        %v627 = vand.u32 %v626, 127
        %v628 = vmul.u32 %v627, 2
        %vm629 = vcmp.eq.s32.totalorder %v594, %v628
        %vm630 = vcmp.eq.s32.totalorder %v595, %v628
        %vm631 = vcmp.eq.s32.totalorder %v596, %v628
        %vm632 = vcmp.eq.s32.totalorder %v597, %v628
        %vm633 = vcmp.eq.s32.totalorder %v598, %v628
        %vm634 = vcmp.eq.s32.totalorder %v599, %v628
        %vm635 = vcmp.eq.s32.totalorder %v600, %v628
        %vm636 = vcmp.eq.s32.totalorder %v601, %v628
        %vm637 = vcmp.eq.s32.totalorder %v602, %v628
        %vm638 = vcmp.eq.s32.totalorder %v603, %v628
        %vm639 = vcmp.eq.s32.totalorder %v604, %v628
        %vm640 = vcmp.eq.s32.totalorder %v605, %v628
        %vm641 = vcmp.eq.s32.totalorder %v606, %v628
        %vm642 = vcmp.eq.s32.totalorder %v607, %v628
        %vm643 = vcmp.eq.s32.totalorder %v608, %v628
        %vm644 = vcmp.eq.s32.totalorder %v609, %v628
        %vm645 = vcmp.eq.s32.totalorder %v610, %v628
        %vm646 = vcmp.eq.s32.totalorder %v611, %v628
        %vm647 = vcmp.eq.s32.totalorder %v612, %v628
        %vm648 = vcmp.eq.s32.totalorder %v613, %v628
        %vm649 = vcmp.eq.s32.totalorder %v614, %v628
        %vm650 = vcmp.eq.s32.totalorder %v615, %v628
        %vm651 = vcmp.eq.s32.totalorder %v616, %v628
        %vm652 = vcmp.eq.s32.totalorder %v617, %v628
        %vm653 = vcmp.eq.s32.totalorder %v618, %v628
        %vm654 = vcmp.eq.s32.totalorder %v619, %v628
        %vm655 = vcmp.eq.s32.totalorder %v620, %v628
        %vm656 = vcmp.eq.s32.totalorder %v621, %v628
        %vm657 = vcmp.eq.s32.totalorder %v622, %v628
        %vm658 = vcmp.eq.s32.totalorder %v623, %v628
        %vm659 = vcmp.eq.s32.totalorder %v624, %v628
        %vm660 = vcmp.eq.s32.totalorder %v625, %v628
        %v661 = vsel %vm629, 1, 0
        %v662 = vsel %vm630, 1, 0
        %v663 = vsel %vm631, 1, 0
        %v664 = vsel %vm632, 1, 0
        %v665 = vsel %vm633, 1, 0
        %v666 = vsel %vm634, 1, 0
        %v667 = vsel %vm635, 1, 0
        %v668 = vsel %vm636, 1, 0
        %v669 = vsel %vm637, 1, 0
        %v670 = vsel %vm638, 1, 0
        %v671 = vsel %vm639, 1, 0
        %v672 = vsel %vm640, 1, 0
        %v673 = vsel %vm641, 1, 0
        %v674 = vsel %vm642, 1, 0
        %v675 = vsel %vm643, 1, 0
        %v676 = vsel %vm644, 1, 0
        %v677 = vsel %vm645, 1, 0
        %v678 = vsel %vm646, 1, 0
        %v679 = vsel %vm647, 1, 0
        %v680 = vsel %vm648, 1, 0
        %v681 = vsel %vm649, 1, 0
        %v682 = vsel %vm650, 1, 0
        %v683 = vsel %vm651, 1, 0
        %v684 = vsel %vm652, 1, 0
        %v685 = vsel %vm653, 1, 0
        %v686 = vsel %vm654, 1, 0
        %v687 = vsel %vm655, 1, 0
        %v688 = vsel %vm656, 1, 0
        %v689 = vsel %vm657, 1, 0
        %v690 = vsel %vm658, 1, 0
        %v691 = vsel %vm659, 1, 0
        %v692 = vsel %vm660, 1, 0
        %v693 = vcvt.s32.f32 %v661
        %v694 = vcvt.s32.f32 %v662
        %v695 = vcvt.s32.f32 %v663
        %v696 = vcvt.s32.f32 %v664
        %v697 = vcvt.s32.f32 %v665
        %v698 = vcvt.s32.f32 %v666
        %v699 = vcvt.s32.f32 %v667
        %v700 = vcvt.s32.f32 %v668
        %v701 = vcvt.s32.f32 %v669
        %v702 = vcvt.s32.f32 %v670
        %v703 = vcvt.s32.f32 %v671
        %v704 = vcvt.s32.f32 %v672
        %v705 = vcvt.s32.f32 %v673
        %v706 = vcvt.s32.f32 %v674
        %v707 = vcvt.s32.f32 %v675
        %v708 = vcvt.s32.f32 %v676
        %v709 = vcvt.s32.f32 %v677
        %v710 = vcvt.s32.f32 %v678
        %v711 = vcvt.s32.f32 %v679
        %v712 = vcvt.s32.f32 %v680
        %v713 = vcvt.s32.f32 %v681
        %v714 = vcvt.s32.f32 %v682
        %v715 = vcvt.s32.f32 %v683
        %v716 = vcvt.s32.f32 %v684
        %v717 = vcvt.s32.f32 %v685
        %v718 = vcvt.s32.f32 %v686
        %v719 = vcvt.s32.f32 %v687
        %v720 = vcvt.s32.f32 %v688
        %v721 = vcvt.s32.f32 %v689
        %v722 = vcvt.s32.f32 %v690
        %v723 = vcvt.s32.f32 %v691
        %v724 = vcvt.s32.f32 %v692
        %v725 = vpack.c.bf16 %v694, %v693
        %v726 = vpack.c.bf16 %v696, %v695
        %v727 = vpack.c.bf16 %v698, %v697
        %v728 = vpack.c.bf16 %v700, %v699
        %v729 = vpack.c.bf16 %v702, %v701
        %v730 = vpack.c.bf16 %v704, %v703
        %v731 = vpack.c.bf16 %v706, %v705
        %v732 = vpack.c.bf16 %v708, %v707
        %v733 = vpack.c.bf16 %v710, %v709
        %v734 = vpack.c.bf16 %v712, %v711
        %v735 = vpack.c.bf16 %v714, %v713
        %v736 = vpack.c.bf16 %v716, %v715
        %v737 = vpack.c.bf16 %v718, %v717
        %v738 = vpack.c.bf16 %v720, %v719
        %v739 = vpack.c.bf16 %v722, %v721
        %v740 = vpack.c.bf16 %v724, %v723
        %v741 = vld [vmem:[%s280] sm:$0xff]
        %v742 = vld [vmem:[%s280 + $0x8] sm:$0xff]
        %v743 = vld [vmem:[%s280 + $0x10] sm:$0xff]
        %v744 = vld [vmem:[%s280 + $0x18] sm:$0xff]
        %v745 = vunpack.c.l.bf16 %v741
        %v746 = vunpack.c.h.bf16 %v741
        %v747 = vunpack.c.l.bf16 %v742
        %v748 = vunpack.c.h.bf16 %v742
        %v749 = vunpack.c.l.bf16 %v743
        %v750 = vunpack.c.h.bf16 %v743
        %v751 = vunpack.c.l.bf16 %v744
        %v752 = vunpack.c.h.bf16 %v744
        %v753 = vadd.s32 %v627, 128
        %v754 = vadd.s32 %v627, 256
        %v755 = vadd.s32 %v627, 384
        %v756 = vadd.s32 %v627, 512
        %v757 = vadd.s32 %v627, 640
        %v758 = vadd.s32 %v627, 768
        %v759 = vadd.s32 %v627, 896
        %v760 = vadd.s32 %v627, 1024
        %v761 = vadd.s32 %v627, 1152
        %v762 = vadd.s32 %v627, 1280
        %v763 = vadd.s32 %v627, 1408
        %v764 = vadd.s32 %v627, 1536
        %v765 = vadd.s32 %v627, 1664
        %v766 = vadd.s32 %v627, 1792
        %v767 = vadd.s32 %v627, 1920
        %v768 = vand.u32 %v627, 63
        %v769 = vand.u32 %v753, 63
        %v770 = vand.u32 %v754, 63
        %v771 = vand.u32 %v755, 63
        %v772 = vand.u32 %v756, 63
        %v773 = vand.u32 %v757, 63
        %v774 = vand.u32 %v758, 63
        %v775 = vand.u32 %v759, 63
        %v776 = vand.u32 %v760, 63
        %v777 = vand.u32 %v761, 63
        %v778 = vand.u32 %v762, 63
        %v779 = vand.u32 %v763, 63
        %v780 = vand.u32 %v764, 63
        %v781 = vand.u32 %v765, 63
        %v782 = vand.u32 %v766, 63
        %v783 = vand.u32 %v767, 63
        %vm784 = vcmp.ne.s32.totalorder %v768, 0
        %vm785 = vcmp.ne.s32.totalorder %v769, 0
        %vm786 = vcmp.ne.s32.totalorder %v770, 0
        %vm787 = vcmp.ne.s32.totalorder %v771, 0
        %vm788 = vcmp.ne.s32.totalorder %v772, 0
        %vm789 = vcmp.ne.s32.totalorder %v773, 0
        %vm790 = vcmp.ne.s32.totalorder %v774, 0
        %vm791 = vcmp.ne.s32.totalorder %v775, 0
        %vm792 = vcmp.ne.s32.totalorder %v776, 0
        %vm793 = vcmp.ne.s32.totalorder %v777, 0
        %vm794 = vcmp.ne.s32.totalorder %v778, 0
        %vm795 = vcmp.ne.s32.totalorder %v779, 0
        %vm796 = vcmp.ne.s32.totalorder %v780, 0
        %vm797 = vcmp.ne.s32.totalorder %v781, 0
        %vm798 = vcmp.ne.s32.totalorder %v782, 0
        %vm799 = vcmp.ne.s32.totalorder %v783, 0
        %808 = vst [vmem:[#allocation1] ss:$2 sm:$0xff] %v745
        %s809 = scalar_lea.vmem [#allocation1], 16
        %810 = vst [vmem:[%s809] ss:$2 sm:$0xff] %v746
        %s811 = scalar_lea.vmem [#allocation1], 32
        %812 = vst [vmem:[%s811] ss:$2 sm:$0xff] %v747
        %s813 = scalar_lea.vmem [#allocation1], 48
        %814 = vst [vmem:[%s813] ss:$2 sm:$0xff] %v748
        %v815 = vld.sshfl [vmem:[#allocation1] sm:$0xff pattern:$0x75316420]
        %v816 = vld.sshfl [vmem:[#allocation1 + $0x8] sm:$0xff pattern:$0x75316420]
        %v817 = vld.sshfl [vmem:[#allocation1 + $0x10] sm:$0xff pattern:$0x75316420]
        %v818 = vld.sshfl [vmem:[#allocation1 + $0x18] sm:$0xff pattern:$0x75316420]
        %v819 = vld.sshfl [vmem:[#allocation1 + $0x20] sm:$0xff pattern:$0x75316420]
        %v820 = vld.sshfl [vmem:[#allocation1 + $0x28] sm:$0xff pattern:$0x75316420]
        %v821 = vld.sshfl [vmem:[#allocation1 + $0x30] sm:$0xff pattern:$0x75316420]
        %v822 = vld.sshfl [vmem:[#allocation1 + $0x38] sm:$0xff pattern:$0x75316420]
        %823 = vst [vmem:[#allocation1] ss:$2 sm:$0xff] %v749
        %824 = vst [vmem:[%s809] ss:$2 sm:$0xff] %v750
        %825 = vst [vmem:[%s811] ss:$2 sm:$0xff] %v751
        %826 = vst [vmem:[%s813] ss:$2 sm:$0xff] %v752
        %v827 = vld.sshfl [vmem:[#allocation1] sm:$0xff pattern:$0x75316420]
        %v828 = vld.sshfl [vmem:[#allocation1 + $0x8] sm:$0xff pattern:$0x75316420]
        %v829 = vld.sshfl [vmem:[#allocation1 + $0x10] sm:$0xff pattern:$0x75316420]
        %v830 = vld.sshfl [vmem:[#allocation1 + $0x18] sm:$0xff pattern:$0x75316420]
        %v831 = vld.sshfl [vmem:[#allocation1 + $0x20] sm:$0xff pattern:$0x75316420]
        %v832 = vld.sshfl [vmem:[#allocation1 + $0x28] sm:$0xff pattern:$0x75316420]
        %v833 = vld.sshfl [vmem:[#allocation1 + $0x30] sm:$0xff pattern:$0x75316420]
        %v834 = vld.sshfl [vmem:[#allocation1 + $0x38] sm:$0xff pattern:$0x75316420]
        %851 = vrot.lane.b32.xlu0 %v815, 1
        %v852 = vpop.permute.xlu0 %851
        %853 = vrot.lane.b32.xlu0 %v816, 1
        %v854 = vpop.permute.xlu0 %853
        %855 = vrot.lane.b32.xlu0 %v817, 1
        %v856 = vpop.permute.xlu0 %855
        %857 = vrot.lane.b32.xlu0 %v818, 1
        %v858 = vpop.permute.xlu0 %857
        %859 = vrot.lane.b32.xlu0 %v819, 1
        %v860 = vpop.permute.xlu0 %859
        %861 = vrot.lane.b32.xlu0 %v820, 1
        %v862 = vpop.permute.xlu0 %861
        %863 = vrot.lane.b32.xlu0 %v821, 1
        %v864 = vpop.permute.xlu0 %863
        %865 = vrot.lane.b32.xlu0 %v822, 1
        %v866 = vpop.permute.xlu0 %865
        %867 = vrot.lane.b32.xlu0 %v827, 1
        %v868 = vpop.permute.xlu0 %867
        %869 = vrot.lane.b32.xlu0 %v828, 1
        %v870 = vpop.permute.xlu0 %869
        %871 = vrot.lane.b32.xlu0 %v829, 1
        %v872 = vpop.permute.xlu0 %871
        %873 = vrot.lane.b32.xlu0 %v830, 1
        %v874 = vpop.permute.xlu0 %873
        %875 = vrot.lane.b32.xlu0 %v831, 1
        %v876 = vpop.permute.xlu0 %875
        %877 = vrot.lane.b32.xlu0 %v832, 1
        %v878 = vpop.permute.xlu0 %877
        %879 = vrot.lane.b32.xlu0 %v833, 1
        %v880 = vpop.permute.xlu0 %879
        %881 = vrot.lane.b32.xlu0 %v834, 1
        %v882 = vpop.permute.xlu0 %881
        %vm883 = vcmp.lt.s32.totalorder %v627, 1
        %v884 = vsel %vm883, %v880, %v882
        %v885 = vsel %vm883, %v878, %v880
        %v886 = vsel %vm883, %v876, %v878
        %v887 = vsel %vm883, %v874, %v876
        %v888 = vsel %vm883, %v872, %v874
        %v889 = vsel %vm883, %v870, %v872
        %v890 = vsel %vm883, %v868, %v870
        %v891 = vsel %vm883, %v866, %v868
        %v892 = vsel %vm883, %v864, %v866
        %v893 = vsel %vm883, %v862, %v864
        %v894 = vsel %vm883, %v860, %v862
        %v895 = vsel %vm883, %v858, %v860
        %v896 = vsel %vm883, %v856, %v858
        %v897 = vsel %vm883, %v854, %v856
        %v898 = vsel %vm883, %v852, %v854
        %v899 = vsel %vm883, %v882, %v852
        %v900 = vsel %vm784, %v899, 0.0
        %v901 = vsel %vm785, %v898, 0.0
        %v902 = vsel %vm786, %v897, 0.0
        %v903 = vsel %vm787, %v896, 0.0
        %v904 = vsel %vm788, %v895, 0.0
        %v905 = vsel %vm789, %v894, 0.0
        %v906 = vsel %vm790, %v893, 0.0
        %v907 = vsel %vm791, %v892, 0.0
        %v908 = vsel %vm792, %v891, 0.0
        %v909 = vsel %vm793, %v890, 0.0
        %v910 = vsel %vm794, %v889, 0.0
        %v911 = vsel %vm795, %v888, 0.0
        %v912 = vsel %vm796, %v887, 0.0
        %v913 = vsel %vm797, %v886, 0.0
        %v914 = vsel %vm798, %v885, 0.0
        %v915 = vsel %vm799, %v884, 0.0
        %vm916 = vcmp.ne.s32.totalorder %v768, 63
        %vm917 = vcmp.ne.s32.totalorder %v769, 63
        %vm918 = vcmp.ne.s32.totalorder %v770, 63
        %vm919 = vcmp.ne.s32.totalorder %v771, 63
        %vm920 = vcmp.ne.s32.totalorder %v772, 63
        %vm921 = vcmp.ne.s32.totalorder %v773, 63
        %vm922 = vcmp.ne.s32.totalorder %v774, 63
        %vm923 = vcmp.ne.s32.totalorder %v775, 63
        %vm924 = vcmp.ne.s32.totalorder %v776, 63
        %vm925 = vcmp.ne.s32.totalorder %v777, 63
        %vm926 = vcmp.ne.s32.totalorder %v778, 63
        %vm927 = vcmp.ne.s32.totalorder %v779, 63
        %vm928 = vcmp.ne.s32.totalorder %v780, 63
        %vm929 = vcmp.ne.s32.totalorder %v781, 63
        %vm930 = vcmp.ne.s32.totalorder %v782, 63
        %vm931 = vcmp.ne.s32.totalorder %v783, 63
        %932 = vst [vmem:[#allocation1] ss:$2 sm:$0xff] %v745
        %s933 = scalar_lea.vmem [#allocation1], 16
        %934 = vst [vmem:[%s933] ss:$2 sm:$0xff] %v746
        %s935 = scalar_lea.vmem [#allocation1], 32
        %936 = vst [vmem:[%s935] ss:$2 sm:$0xff] %v747
        %s937 = scalar_lea.vmem [#allocation1], 48
        %938 = vst [vmem:[%s937] ss:$2 sm:$0xff] %v748
        %v939 = vld.sshfl [vmem:[#allocation1] sm:$0xff pattern:$0x75316420]
        %v940 = vld.sshfl [vmem:[#allocation1 + $0x8] sm:$0xff pattern:$0x75316420]
        %v941 = vld.sshfl [vmem:[#allocation1 + $0x10] sm:$0xff pattern:$0x75316420]
        %v942 = vld.sshfl [vmem:[#allocation1 + $0x18] sm:$0xff pattern:$0x75316420]
        %v943 = vld.sshfl [vmem:[#allocation1 + $0x20] sm:$0xff pattern:$0x75316420]
        %v944 = vld.sshfl [vmem:[#allocation1 + $0x28] sm:$0xff pattern:$0x75316420]
        %v945 = vld.sshfl [vmem:[#allocation1 + $0x30] sm:$0xff pattern:$0x75316420]
        %v946 = vld.sshfl [vmem:[#allocation1 + $0x38] sm:$0xff pattern:$0x75316420]
        %947 = vst [vmem:[#allocation1] ss:$2 sm:$0xff] %v749
        %948 = vst [vmem:[%s933] ss:$2 sm:$0xff] %v750
        %949 = vst [vmem:[%s935] ss:$2 sm:$0xff] %v751
        %950 = vst [vmem:[%s937] ss:$2 sm:$0xff] %v752
        %v951 = vld.sshfl [vmem:[#allocation1] sm:$0xff pattern:$0x75316420]
        %v952 = vld.sshfl [vmem:[#allocation1 + $0x8] sm:$0xff pattern:$0x75316420]
        %v953 = vld.sshfl [vmem:[#allocation1 + $0x10] sm:$0xff pattern:$0x75316420]
        %v954 = vld.sshfl [vmem:[#allocation1 + $0x18] sm:$0xff pattern:$0x75316420]
        %v955 = vld.sshfl [vmem:[#allocation1 + $0x20] sm:$0xff pattern:$0x75316420]
        %v956 = vld.sshfl [vmem:[#allocation1 + $0x28] sm:$0xff pattern:$0x75316420]
        %v957 = vld.sshfl [vmem:[#allocation1 + $0x30] sm:$0xff pattern:$0x75316420]
        %v958 = vld.sshfl [vmem:[#allocation1 + $0x38] sm:$0xff pattern:$0x75316420]
        %975 = vrot.lane.b32.xlu0 %v939, 127
        %v976 = vpop.permute.xlu0 %975
        %977 = vrot.lane.b32.xlu0 %v940, 127
        %v978 = vpop.permute.xlu0 %977
        %979 = vrot.lane.b32.xlu0 %v941, 127
        %v980 = vpop.permute.xlu0 %979
        %981 = vrot.lane.b32.xlu0 %v942, 127
        %v982 = vpop.permute.xlu0 %981
        %983 = vrot.lane.b32.xlu0 %v943, 127
        %v984 = vpop.permute.xlu0 %983
        %985 = vrot.lane.b32.xlu0 %v944, 127
        %v986 = vpop.permute.xlu0 %985
        %987 = vrot.lane.b32.xlu0 %v945, 127
        %v988 = vpop.permute.xlu0 %987
        %989 = vrot.lane.b32.xlu0 %v946, 127
        %v990 = vpop.permute.xlu0 %989
        %991 = vrot.lane.b32.xlu0 %v951, 127
        %v992 = vpop.permute.xlu0 %991
        %993 = vrot.lane.b32.xlu0 %v952, 127
        %v994 = vpop.permute.xlu0 %993
        %995 = vrot.lane.b32.xlu0 %v953, 127
        %v996 = vpop.permute.xlu0 %995
        %997 = vrot.lane.b32.xlu0 %v954, 127
        %v998 = vpop.permute.xlu0 %997
        %999 = vrot.lane.b32.xlu0 %v955, 127
        %v1000 = vpop.permute.xlu0 %999
        %1001 = vrot.lane.b32.xlu0 %v956, 127
        %v1002 = vpop.permute.xlu0 %1001
        %1003 = vrot.lane.b32.xlu0 %v957, 127
        %v1004 = vpop.permute.xlu0 %1003
        %1005 = vrot.lane.b32.xlu0 %v958, 127
        %v1006 = vpop.permute.xlu0 %1005
        %vm1007 = vcmp.lt.s32.totalorder %v627, 127
        %v1008 = vsel %vm1007, %v1004, %v1006
        %v1009 = vsel %vm1007, %v1002, %v1004
        %v1010 = vsel %vm1007, %v1000, %v1002
        %v1011 = vsel %vm1007, %v998, %v1000
        %v1012 = vsel %vm1007, %v996, %v998
        %v1013 = vsel %vm1007, %v994, %v996
        %v1014 = vsel %vm1007, %v992, %v994
        %v1015 = vsel %vm1007, %v990, %v992
        %v1016 = vsel %vm1007, %v988, %v990
        %v1017 = vsel %vm1007, %v986, %v988
        %v1018 = vsel %vm1007, %v984, %v986
        %v1019 = vsel %vm1007, %v982, %v984
        %v1020 = vsel %vm1007, %v980, %v982
        %v1021 = vsel %vm1007, %v978, %v980
        %v1022 = vsel %vm1007, %v976, %v978
        %v1023 = vsel %vm1007, %v1006, %v976
        %v1024 = vsel %vm916, %v1022, 0.0
        %v1025 = vsel %vm917, %v1021, 0.0
        %v1026 = vsel %vm918, %v1020, 0.0
        %v1027 = vsel %vm919, %v1019, 0.0
        %v1028 = vsel %vm920, %v1018, 0.0
        %v1029 = vsel %vm921, %v1017, 0.0
        %v1030 = vsel %vm922, %v1016, 0.0
        %v1031 = vsel %vm923, %v1015, 0.0
        %v1032 = vsel %vm924, %v1014, 0.0
        %v1033 = vsel %vm925, %v1013, 0.0
        %v1034 = vsel %vm926, %v1012, 0.0
        %v1035 = vsel %vm927, %v1011, 0.0
        %v1036 = vsel %vm928, %v1010, 0.0
        %v1037 = vsel %vm929, %v1009, 0.0
        %v1038 = vsel %vm930, %v1008, 0.0
        %v1039 = vsel %vm931, %v1023, 0.0
        %s1040 = scalar_lea.vmem [#allocation1], 1
        %1041 = vst [vmem:[%s1040] ss:$2 sm:$0xff] %v745
        %s1042 = scalar_lea.vmem [#allocation1], 17
        %1043 = vst [vmem:[%s1042] ss:$2 sm:$0xff] %v746
        %s1044 = scalar_lea.vmem [#allocation1], 33
        %1045 = vst [vmem:[%s1044] ss:$2 sm:$0xff] %v747
        %s1046 = scalar_lea.vmem [#allocation1], 49
        %1047 = vst [vmem:[%s1046] ss:$2 sm:$0xff] %v748
        %v1048 = vld.sshfl [vmem:[#allocation1] sm:$0xff pattern:$0x75316420]
        %v1049 = vld.sshfl [vmem:[#allocation1 + $0x8] sm:$0xff pattern:$0x75316420]
        %v1050 = vld.sshfl [vmem:[#allocation1 + $0x10] sm:$0xff pattern:$0x75316420]
        %v1051 = vld.sshfl [vmem:[#allocation1 + $0x18] sm:$0xff pattern:$0x75316420]
        %v1052 = vld.sshfl [vmem:[#allocation1 + $0x20] sm:$0xff pattern:$0x75316420]
        %v1053 = vld.sshfl [vmem:[#allocation1 + $0x28] sm:$0xff pattern:$0x75316420]
        %v1054 = vld.sshfl [vmem:[#allocation1 + $0x30] sm:$0xff pattern:$0x75316420]
        %v1055 = vld.sshfl [vmem:[#allocation1 + $0x38] sm:$0xff pattern:$0x75316420]
        %1056 = vst [vmem:[%s1040] ss:$2 sm:$0xff] %v749
        %1057 = vst [vmem:[%s1042] ss:$2 sm:$0xff] %v750
        %1058 = vst [vmem:[%s1044] ss:$2 sm:$0xff] %v751
        %1059 = vst [vmem:[%s1046] ss:$2 sm:$0xff] %v752
        %v1060 = vld.sshfl [vmem:[#allocation1] sm:$0xff pattern:$0x75316420]
        %v1061 = vld.sshfl [vmem:[#allocation1 + $0x8] sm:$0xff pattern:$0x75316420]
        %v1062 = vld.sshfl [vmem:[#allocation1 + $0x10] sm:$0xff pattern:$0x75316420]
        %v1063 = vld.sshfl [vmem:[#allocation1 + $0x18] sm:$0xff pattern:$0x75316420]
        %v1064 = vld.sshfl [vmem:[#allocation1 + $0x20] sm:$0xff pattern:$0x75316420]
        %v1065 = vld.sshfl [vmem:[#allocation1 + $0x28] sm:$0xff pattern:$0x75316420]
        %v1066 = vld.sshfl [vmem:[#allocation1 + $0x30] sm:$0xff pattern:$0x75316420]
        %v1067 = vld.sshfl [vmem:[#allocation1 + $0x38] sm:$0xff pattern:$0x75316420]
        %vm1084 = vcmask 1043456
        %v1085 = vsel %vm1084, %v900, %v1048
        %v1086 = vsel %vm1084, %v901, %v1049
        %v1087 = vsel %vm1084, %v902, %v1050
        %v1088 = vsel %vm1084, %v903, %v1051
        %v1089 = vsel %vm1084, %v904, %v1052
        %v1090 = vsel %vm1084, %v905, %v1053
        %v1091 = vsel %vm1084, %v906, %v1054
        %v1092 = vsel %vm1084, %v907, %v1055
        %v1093 = vsel %vm1084, %v908, %v1060
        %v1094 = vsel %vm1084, %v909, %v1061
        %v1095 = vsel %vm1084, %v910, %v1062
        %v1096 = vsel %vm1084, %v911, %v1063
        %v1097 = vsel %vm1084, %v912, %v1064
        %v1098 = vsel %vm1084, %v913, %v1065
        %v1099 = vsel %vm1084, %v914, %v1066
        %v1100 = vsel %vm1084, %v915, %v1067
        %v1101 = vld [vmem:[#allocation4] sm:$0xf]
        %v1102 = vunpack.c.l.bf16 %v1101
        %v1103 = vpack.c.bf16 %v1024, %v1085
        %v1104 = vpack.c.bf16 %v1025, %v1086
        %v1105 = vpack.c.bf16 %v1026, %v1087
        %v1106 = vpack.c.bf16 %v1027, %v1088
        %v1107 = vpack.c.bf16 %v1028, %v1089
        %v1108 = vpack.c.bf16 %v1029, %v1090
        %v1109 = vpack.c.bf16 %v1030, %v1091
        %v1110 = vpack.c.bf16 %v1031, %v1092
        %v1111 = vpack.c.bf16 %v1032, %v1093
        %v1112 = vpack.c.bf16 %v1033, %v1094
        %v1113 = vpack.c.bf16 %v1034, %v1095
        %v1114 = vpack.c.bf16 %v1035, %v1096
        %v1115 = vpack.c.bf16 %v1036, %v1097
        %v1116 = vpack.c.bf16 %v1037, %v1098
        %v1117 = vpack.c.bf16 %v1038, %v1099
        %v1118 = vpack.c.bf16 %v1039, %v1100
        %1120 = vset.pattern.permute.xlu0 12
        %1121 = vperm.xlu0 %1120, %v1102
        %v1122 = vpop.permute.xlu0 %1121
        %vm1124 = vcmask 97280
        %v1126 = vsel %vm1124, %v1101, 0
        %vm1128 = vcmask 1045504
        %v1130 = vsel %vm1128, %v1103, 0
        %v1133 = vsel %vm1128, %v1104, 0
        %v1136 = vsel %vm1128, %v1105, 0
        %v1139 = vsel %vm1128, %v1106, 0
        %v1142 = vsel %vm1128, %v1107, 0
        %v1145 = vsel %vm1128, %v1108, 0
        %v1148 = vsel %vm1128, %v1109, 0
        %v1151 = vsel %vm1128, %v1110, 0
        %v1154 = vsel %vm1128, %v1111, 0
        %v1157 = vsel %vm1128, %v1112, 0
        %v1160 = vsel %vm1128, %v1113, 0
        %v1163 = vsel %vm1128, %v1114, 0
        %v1166 = vsel %vm1128, %v1115, 0
        %v1169 = vsel %vm1128, %v1116, 0
        %v1172 = vsel %vm1128, %v1117, 0
        %v1175 = vsel %vm1128, %v1118, 0
        %1177 = vmatpush.bf16.msra.mxu0 0
        %1178 = vmatpush.bf16.msra.mxu0 0
        %1179 = vmatpush.bf16.msra.mxu0 0
        %1180 = vmatpush.bf16.msra.mxu0 0
        %1181 = vmatpush.bf16.msra.mxu0 0
        %1182 = vmatpush.bf16.msra.mxu0 0
        %1183 = vmatpush.bf16.msra.mxu0 0
        %1184 = vmatpush.bf16.msra.mxu0 %v1130
        %1185 = vmatmul.bf16.gmra.mxu0 %v1126
        %v1186 = vpop.f32.mrf.mxu0
        %v1187 = vadd.f32 %v1122, %v1186
        %v1188 = vpop.f32.mrf.mxu0
        %1189 = vdwg.mxu0
        %1190 = vmatpush.bf16.msra.mxu0 0
        %1191 = vmatpush.bf16.msra.mxu0 0
        %1192 = vmatpush.bf16.msra.mxu0 0
        %1193 = vmatpush.bf16.msra.mxu0 0
        %1194 = vmatpush.bf16.msra.mxu0 0
        %1195 = vmatpush.bf16.msra.mxu0 0
        %1196 = vmatpush.bf16.msra.mxu0 0
        %1197 = vmatpush.bf16.msra.mxu0 %v1133
        %1198 = vmatmul.bf16.gmra.mxu0 %v1126
        %v1199 = vpop.f32.mrf.mxu0
        %v1200 = vadd.f32 %v1122, %v1199
        %v1201 = vpop.f32.mrf.mxu0
        %1202 = vdwg.mxu0
        %1203 = vmatpush.bf16.msra.mxu0 0
        %1204 = vmatpush.bf16.msra.mxu0 0
        %1205 = vmatpush.bf16.msra.mxu0 0
        %1206 = vmatpush.bf16.msra.mxu0 0
        %1207 = vmatpush.bf16.msra.mxu0 0
        %1208 = vmatpush.bf16.msra.mxu0 0
        %1209 = vmatpush.bf16.msra.mxu0 0
        %1210 = vmatpush.bf16.msra.mxu0 %v1136
        %1211 = vmatmul.bf16.gmra.mxu0 %v1126
        %v1212 = vpop.f32.mrf.mxu0
        %v1213 = vadd.f32 %v1122, %v1212
        %v1214 = vpop.f32.mrf.mxu0
        %1215 = vdwg.mxu0
        %1216 = vmatpush.bf16.msra.mxu0 0
        %1217 = vmatpush.bf16.msra.mxu0 0
        %1218 = vmatpush.bf16.msra.mxu0 0
        %1219 = vmatpush.bf16.msra.mxu0 0
        %1220 = vmatpush.bf16.msra.mxu0 0
        %1221 = vmatpush.bf16.msra.mxu0 0
        %1222 = vmatpush.bf16.msra.mxu0 0
        %1223 = vmatpush.bf16.msra.mxu0 %v1139
        %1224 = vmatmul.bf16.gmra.mxu0 %v1126
        %v1225 = vpop.f32.mrf.mxu0
        %v1226 = vadd.f32 %v1122, %v1225
        %v1227 = vpop.f32.mrf.mxu0
        %1228 = vdwg.mxu0
        %1229 = vmatpush.bf16.msra.mxu0 0
        %1230 = vmatpush.bf16.msra.mxu0 0
        %1231 = vmatpush.bf16.msra.mxu0 0
        %1232 = vmatpush.bf16.msra.mxu0 0
        %1233 = vmatpush.bf16.msra.mxu0 0
        %1234 = vmatpush.bf16.msra.mxu0 0
        %1235 = vmatpush.bf16.msra.mxu0 0
        %1236 = vmatpush.bf16.msra.mxu0 %v1142
        %1237 = vmatmul.bf16.gmra.mxu0 %v1126
        %v1238 = vpop.f32.mrf.mxu0
        %v1239 = vadd.f32 %v1122, %v1238
        %v1240 = vpop.f32.mrf.mxu0
        %1241 = vdwg.mxu0
        %1242 = vmatpush.bf16.msra.mxu0 0
        %1243 = vmatpush.bf16.msra.mxu0 0
        %1244 = vmatpush.bf16.msra.mxu0 0
        %1245 = vmatpush.bf16.msra.mxu0 0
        %1246 = vmatpush.bf16.msra.mxu0 0
        %1247 = vmatpush.bf16.msra.mxu0 0
        %1248 = vmatpush.bf16.msra.mxu0 0
        %1249 = vmatpush.bf16.msra.mxu0 %v1145
        %1250 = vmatmul.bf16.gmra.mxu0 %v1126
        %v1251 = vpop.f32.mrf.mxu0
        %v1252 = vadd.f32 %v1122, %v1251
        %v1253 = vpop.f32.mrf.mxu0
        %1254 = vdwg.mxu0
        %1255 = vmatpush.bf16.msra.mxu0 0
        %1256 = vmatpush.bf16.msra.mxu0 0
        %1257 = vmatpush.bf16.msra.mxu0 0
        %1258 = vmatpush.bf16.msra.mxu0 0
        %1259 = vmatpush.bf16.msra.mxu0 0
        %1260 = vmatpush.bf16.msra.mxu0 0
        %1261 = vmatpush.bf16.msra.mxu0 0
        %1262 = vmatpush.bf16.msra.mxu0 %v1148
        %1263 = vmatmul.bf16.gmra.mxu0 %v1126
        %v1264 = vpop.f32.mrf.mxu0
        %v1265 = vadd.f32 %v1122, %v1264
        %v1266 = vpop.f32.mrf.mxu0
        %1267 = vdwg.mxu0
        %1268 = vmatpush.bf16.msra.mxu0 0
        %1269 = vmatpush.bf16.msra.mxu0 0
        %1270 = vmatpush.bf16.msra.mxu0 0
        %1271 = vmatpush.bf16.msra.mxu0 0
        %1272 = vmatpush.bf16.msra.mxu0 0
        %1273 = vmatpush.bf16.msra.mxu0 0
        %1274 = vmatpush.bf16.msra.mxu0 0
        %1275 = vmatpush.bf16.msra.mxu0 %v1151
        %1276 = vmatmul.bf16.gmra.mxu0 %v1126
        %v1277 = vpop.f32.mrf.mxu0
        %v1278 = vadd.f32 %v1122, %v1277
        %v1279 = vpop.f32.mrf.mxu0
        %1280 = vdwg.mxu0
        %1281 = vmatpush.bf16.msra.mxu0 0
        %1282 = vmatpush.bf16.msra.mxu0 0
        %1283 = vmatpush.bf16.msra.mxu0 0
        %1284 = vmatpush.bf16.msra.mxu0 0
        %1285 = vmatpush.bf16.msra.mxu0 0
        %1286 = vmatpush.bf16.msra.mxu0 0
        %1287 = vmatpush.bf16.msra.mxu0 0
        %1288 = vmatpush.bf16.msra.mxu0 %v1154
        %1289 = vmatmul.bf16.gmra.mxu0 %v1126
        %v1290 = vpop.f32.mrf.mxu0
        %v1291 = vadd.f32 %v1122, %v1290
        %v1292 = vpop.f32.mrf.mxu0
        %1293 = vdwg.mxu0
        %1294 = vmatpush.bf16.msra.mxu0 0
        %1295 = vmatpush.bf16.msra.mxu0 0
        %1296 = vmatpush.bf16.msra.mxu0 0
        %1297 = vmatpush.bf16.msra.mxu0 0
        %1298 = vmatpush.bf16.msra.mxu0 0
        %1299 = vmatpush.bf16.msra.mxu0 0
        %1300 = vmatpush.bf16.msra.mxu0 0
        %1301 = vmatpush.bf16.msra.mxu0 %v1157
        %1302 = vmatmul.bf16.gmra.mxu0 %v1126
        %v1303 = vpop.f32.mrf.mxu0
        %v1304 = vadd.f32 %v1122, %v1303
        %v1305 = vpop.f32.mrf.mxu0
        %1306 = vdwg.mxu0
        %1307 = vmatpush.bf16.msra.mxu0 0
        %1308 = vmatpush.bf16.msra.mxu0 0
        %1309 = vmatpush.bf16.msra.mxu0 0
        %1310 = vmatpush.bf16.msra.mxu0 0
        %1311 = vmatpush.bf16.msra.mxu0 0
        %1312 = vmatpush.bf16.msra.mxu0 0
        %1313 = vmatpush.bf16.msra.mxu0 0
        %1314 = vmatpush.bf16.msra.mxu0 %v1160
        %1315 = vmatmul.bf16.gmra.mxu0 %v1126
        %v1316 = vpop.f32.mrf.mxu0
        %v1317 = vadd.f32 %v1122, %v1316
        %v1318 = vpop.f32.mrf.mxu0
        %1319 = vdwg.mxu0
        %1320 = vmatpush.bf16.msra.mxu0 0
        %1321 = vmatpush.bf16.msra.mxu0 0
        %1322 = vmatpush.bf16.msra.mxu0 0
        %1323 = vmatpush.bf16.msra.mxu0 0
        %1324 = vmatpush.bf16.msra.mxu0 0
        %1325 = vmatpush.bf16.msra.mxu0 0
        %1326 = vmatpush.bf16.msra.mxu0 0
        %1327 = vmatpush.bf16.msra.mxu0 %v1163
        %1328 = vmatmul.bf16.gmra.mxu0 %v1126
        %v1329 = vpop.f32.mrf.mxu0
        %v1330 = vadd.f32 %v1122, %v1329
        %v1331 = vpop.f32.mrf.mxu0
        %1332 = vdwg.mxu0
        %1333 = vmatpush.bf16.msra.mxu0 0
        %1334 = vmatpush.bf16.msra.mxu0 0
        %1335 = vmatpush.bf16.msra.mxu0 0
        %1336 = vmatpush.bf16.msra.mxu0 0
        %1337 = vmatpush.bf16.msra.mxu0 0
        %1338 = vmatpush.bf16.msra.mxu0 0
        %1339 = vmatpush.bf16.msra.mxu0 0
        %1340 = vmatpush.bf16.msra.mxu0 %v1166
        %1341 = vmatmul.bf16.gmra.mxu0 %v1126
        %v1342 = vpop.f32.mrf.mxu0
        %v1343 = vadd.f32 %v1122, %v1342
        %v1344 = vpop.f32.mrf.mxu0
        %1345 = vdwg.mxu0
        %1346 = vmatpush.bf16.msra.mxu0 0
        %1347 = vmatpush.bf16.msra.mxu0 0
        %1348 = vmatpush.bf16.msra.mxu0 0
        %1349 = vmatpush.bf16.msra.mxu0 0
        %1350 = vmatpush.bf16.msra.mxu0 0
        %1351 = vmatpush.bf16.msra.mxu0 0
        %1352 = vmatpush.bf16.msra.mxu0 0
        %1353 = vmatpush.bf16.msra.mxu0 %v1169
        %1354 = vmatmul.bf16.gmra.mxu0 %v1126
        %v1355 = vpop.f32.mrf.mxu0
        %v1356 = vadd.f32 %v1122, %v1355
        %v1357 = vpop.f32.mrf.mxu0
        %1358 = vdwg.mxu0
        %1359 = vmatpush.bf16.msra.mxu0 0
        %1360 = vmatpush.bf16.msra.mxu0 0
        %1361 = vmatpush.bf16.msra.mxu0 0
        %1362 = vmatpush.bf16.msra.mxu0 0
        %1363 = vmatpush.bf16.msra.mxu0 0
        %1364 = vmatpush.bf16.msra.mxu0 0
        %1365 = vmatpush.bf16.msra.mxu0 0
        %1366 = vmatpush.bf16.msra.mxu0 %v1172
        %1367 = vmatmul.bf16.gmra.mxu0 %v1126
        %v1368 = vpop.f32.mrf.mxu0
        %v1369 = vadd.f32 %v1122, %v1368
        %v1370 = vpop.f32.mrf.mxu0
        %1371 = vdwg.mxu0
        %1372 = vmatpush.bf16.msra.mxu0 0
        %1373 = vmatpush.bf16.msra.mxu0 0
        %1374 = vmatpush.bf16.msra.mxu0 0
        %1375 = vmatpush.bf16.msra.mxu0 0
        %1376 = vmatpush.bf16.msra.mxu0 0
        %1377 = vmatpush.bf16.msra.mxu0 0
        %1378 = vmatpush.bf16.msra.mxu0 0
        %1379 = vmatpush.bf16.msra.mxu0 %v1175
        %1380 = vmatmul.bf16.gmra.mxu0 %v1126
        %v1381 = vpop.f32.mrf.mxu0
        %v1382 = vadd.f32 %v1122, %v1381
        %v1383 = vpop.f32.mrf.mxu0
        %1384 = vdwg.mxu0
        %v1385 = vmax.f32 %v1187, 0.0
        %v1386 = vmax.f32 %v1200, 0.0
        %v1387 = vmax.f32 %v1213, 0.0
        %v1388 = vmax.f32 %v1226, 0.0
        %v1389 = vmax.f32 %v1239, 0.0
        %v1390 = vmax.f32 %v1252, 0.0
        %v1391 = vmax.f32 %v1265, 0.0
        %v1392 = vmax.f32 %v1278, 0.0
        %v1393 = vmax.f32 %v1291, 0.0
        %v1394 = vmax.f32 %v1304, 0.0
        %v1395 = vmax.f32 %v1317, 0.0
        %v1396 = vmax.f32 %v1330, 0.0
        %v1397 = vmax.f32 %v1343, 0.0
        %v1398 = vmax.f32 %v1356, 0.0
        %v1399 = vmax.f32 %v1369, 0.0
        %v1400 = vmax.f32 %v1382, 0.0
        %1401 = vrot.lane.b32.xlu0 %v1385, 127
        %v1402 = vpop.permute.xlu0 %1401
        %1403 = vrot.lane.b32.xlu0 %v1386, 127
        %v1404 = vpop.permute.xlu0 %1403
        %1405 = vrot.lane.b32.xlu0 %v1387, 127
        %v1406 = vpop.permute.xlu0 %1405
        %1407 = vrot.lane.b32.xlu0 %v1388, 127
        %v1408 = vpop.permute.xlu0 %1407
        %1409 = vrot.lane.b32.xlu0 %v1389, 127
        %v1410 = vpop.permute.xlu0 %1409
        %1411 = vrot.lane.b32.xlu0 %v1390, 127
        %v1412 = vpop.permute.xlu0 %1411
        %1413 = vrot.lane.b32.xlu0 %v1391, 127
        %v1414 = vpop.permute.xlu0 %1413
        %1415 = vrot.lane.b32.xlu0 %v1392, 127
        %v1416 = vpop.permute.xlu0 %1415
        %1417 = vrot.lane.b32.xlu0 %v1393, 127
        %v1418 = vpop.permute.xlu0 %1417
        %1419 = vrot.lane.b32.xlu0 %v1394, 127
        %v1420 = vpop.permute.xlu0 %1419
        %1421 = vrot.lane.b32.xlu0 %v1395, 127
        %v1422 = vpop.permute.xlu0 %1421
        %1423 = vrot.lane.b32.xlu0 %v1396, 127
        %v1424 = vpop.permute.xlu0 %1423
        %1425 = vrot.lane.b32.xlu0 %v1397, 127
        %v1426 = vpop.permute.xlu0 %1425
        %1427 = vrot.lane.b32.xlu0 %v1398, 127
        %v1428 = vpop.permute.xlu0 %1427
        %1429 = vrot.lane.b32.xlu0 %v1399, 127
        %v1430 = vpop.permute.xlu0 %1429
        %1431 = vrot.lane.b32.xlu0 %v1400, 127
        %v1432 = vpop.permute.xlu0 %1431
        %v1433 = vsel %vm1007, %v1430, %v1432
        %v1434 = vsel %vm1007, %v1428, %v1430
        %v1435 = vsel %vm1007, %v1426, %v1428
        %v1436 = vsel %vm1007, %v1424, %v1426
        %v1437 = vsel %vm1007, %v1422, %v1424
        %v1438 = vsel %vm1007, %v1420, %v1422
        %v1439 = vsel %vm1007, %v1418, %v1420
        %v1440 = vsel %vm1007, %v1416, %v1418
        %v1441 = vsel %vm1007, %v1414, %v1416
        %v1442 = vsel %vm1007, %v1412, %v1414
        %v1443 = vsel %vm1007, %v1410, %v1412
        %v1444 = vsel %vm1007, %v1408, %v1410
        %v1445 = vsel %vm1007, %v1406, %v1408
        %v1446 = vsel %vm1007, %v1404, %v1406
        %v1447 = vsel %vm1007, %v1402, %v1404
        %v1448 = vsel %vm1007, %v1432, %v1402
        %v1449 = vmax.f32 %v1385, %v1447
        %v1450 = vmax.f32 %v1386, %v1446
        %v1451 = vmax.f32 %v1387, %v1445
        %v1452 = vmax.f32 %v1388, %v1444
        %v1453 = vmax.f32 %v1389, %v1443
        %v1454 = vmax.f32 %v1390, %v1442
        %v1455 = vmax.f32 %v1391, %v1441
        %v1456 = vmax.f32 %v1392, %v1440
        %v1457 = vmax.f32 %v1393, %v1439
        %v1458 = vmax.f32 %v1394, %v1438
        %v1459 = vmax.f32 %v1395, %v1437
        %v1460 = vmax.f32 %v1396, %v1436
        %v1461 = vmax.f32 %v1397, %v1435
        %v1462 = vmax.f32 %v1398, %v1434
        %v1463 = vmax.f32 %v1399, %v1433
        %v1464 = vmax.f32 %v1400, %v1448
        %v1465 = vpack.c.bf16 %v1449, %v1449
        %v1466 = vpack.c.bf16 %v1450, %v1450
        %1467 = vmatpush.bf16.msra.mxu0 %v732
        %1468 = vmatpush.bf16.msra.mxu0 %v731
        %1469 = vmatpush.bf16.msra.mxu0 %v730
        %1470 = vmatpush.bf16.msra.mxu0 %v729
        %1471 = vmatpush.bf16.msra.mxu0 %v728
        %1472 = vmatpush.bf16.msra.mxu0 %v727
        %1473 = vmatpush.bf16.msra.mxu0 %v726
        %1474 = vmatpush.bf16.msra.mxu0 %v725
        %1475 = vmatmul.bf16.gmra.mxu0 %v1465
        %v1476 = vpop.f32.mrf.mxu0
        %v1477 = vadd.f32 0.0, %v1476
        %v1478 = vpop.f32.mrf.mxu0
        %1479 = vdwg.mxu0
        %1480 = vmatpush.bf16.msra.mxu0 %v740
        %1481 = vmatpush.bf16.msra.mxu0 %v739
        %1482 = vmatpush.bf16.msra.mxu0 %v738
        %1483 = vmatpush.bf16.msra.mxu0 %v737
        %1484 = vmatpush.bf16.msra.mxu0 %v736
        %1485 = vmatpush.bf16.msra.mxu0 %v735
        %1486 = vmatpush.bf16.msra.mxu0 %v734
        %1487 = vmatpush.bf16.msra.mxu0 %v733
        %1488 = vmatmul.bf16.gmra.mxu0 %v1466
        %v1489 = vpop.f32.mrf.mxu0
        %v1490 = vadd.f32 %v1477, %v1489
        %v1491 = vpop.f32.mrf.mxu0
        %1492 = vdwg.mxu0
        %v1493 = vpack.c.bf16 %v1451, %v1451
        %v1494 = vpack.c.bf16 %v1452, %v1452
        %1495 = vmatpush.bf16.msra.mxu0 %v732
        %1496 = vmatpush.bf16.msra.mxu0 %v731
        %1497 = vmatpush.bf16.msra.mxu0 %v730
        %1498 = vmatpush.bf16.msra.mxu0 %v729
        %1499 = vmatpush.bf16.msra.mxu0 %v728
        %1500 = vmatpush.bf16.msra.mxu0 %v727
        %1501 = vmatpush.bf16.msra.mxu0 %v726
        %1502 = vmatpush.bf16.msra.mxu0 %v725
        %1503 = vmatmul.bf16.gmra.mxu0 %v1493
        %v1504 = vpop.f32.mrf.mxu0
        %v1505 = vadd.f32 0.0, %v1504
        %v1506 = vpop.f32.mrf.mxu0
        %1507 = vdwg.mxu0
        %1508 = vmatpush.bf16.msra.mxu0 %v740
        %1509 = vmatpush.bf16.msra.mxu0 %v739
        %1510 = vmatpush.bf16.msra.mxu0 %v738
        %1511 = vmatpush.bf16.msra.mxu0 %v737
        %1512 = vmatpush.bf16.msra.mxu0 %v736
        %1513 = vmatpush.bf16.msra.mxu0 %v735
        %1514 = vmatpush.bf16.msra.mxu0 %v734
        %1515 = vmatpush.bf16.msra.mxu0 %v733
        %1516 = vmatmul.bf16.gmra.mxu0 %v1494
        %v1517 = vpop.f32.mrf.mxu0
        %v1518 = vadd.f32 %v1505, %v1517
        %v1519 = vpop.f32.mrf.mxu0
        %1520 = vdwg.mxu0
        %v1521 = vpack.c.bf16 %v1453, %v1453
        %v1522 = vpack.c.bf16 %v1454, %v1454
        %1523 = vmatpush.bf16.msra.mxu0 %v732
        %1524 = vmatpush.bf16.msra.mxu0 %v731
        %1525 = vmatpush.bf16.msra.mxu0 %v730
        %1526 = vmatpush.bf16.msra.mxu0 %v729
        %1527 = vmatpush.bf16.msra.mxu0 %v728
        %1528 = vmatpush.bf16.msra.mxu0 %v727
        %1529 = vmatpush.bf16.msra.mxu0 %v726
        %1530 = vmatpush.bf16.msra.mxu0 %v725
        %1531 = vmatmul.bf16.gmra.mxu0 %v1521
        %v1532 = vpop.f32.mrf.mxu0
        %v1533 = vadd.f32 0.0, %v1532
        %v1534 = vpop.f32.mrf.mxu0
        %1535 = vdwg.mxu0
        %1536 = vmatpush.bf16.msra.mxu0 %v740
        %1537 = vmatpush.bf16.msra.mxu0 %v739
        %1538 = vmatpush.bf16.msra.mxu0 %v738
        %1539 = vmatpush.bf16.msra.mxu0 %v737
        %1540 = vmatpush.bf16.msra.mxu0 %v736
        %1541 = vmatpush.bf16.msra.mxu0 %v735
        %1542 = vmatpush.bf16.msra.mxu0 %v734
        %1543 = vmatpush.bf16.msra.mxu0 %v733
        %1544 = vmatmul.bf16.gmra.mxu0 %v1522
        %v1545 = vpop.f32.mrf.mxu0
        %v1546 = vadd.f32 %v1533, %v1545
        %v1547 = vpop.f32.mrf.mxu0
        %1548 = vdwg.mxu0
        %v1549 = vpack.c.bf16 %v1455, %v1455
        %v1550 = vpack.c.bf16 %v1456, %v1456
        %1551 = vmatpush.bf16.msra.mxu0 %v732
        %1552 = vmatpush.bf16.msra.mxu0 %v731
        %1553 = vmatpush.bf16.msra.mxu0 %v730
        %1554 = vmatpush.bf16.msra.mxu0 %v729
        %1555 = vmatpush.bf16.msra.mxu0 %v728
        %1556 = vmatpush.bf16.msra.mxu0 %v727
        %1557 = vmatpush.bf16.msra.mxu0 %v726
        %1558 = vmatpush.bf16.msra.mxu0 %v725
        %1559 = vmatmul.bf16.gmra.mxu0 %v1549
        %v1560 = vpop.f32.mrf.mxu0
        %v1561 = vadd.f32 0.0, %v1560
        %v1562 = vpop.f32.mrf.mxu0
        %1563 = vdwg.mxu0
        %1564 = vmatpush.bf16.msra.mxu0 %v740
        %1565 = vmatpush.bf16.msra.mxu0 %v739
        %1566 = vmatpush.bf16.msra.mxu0 %v738
        %1567 = vmatpush.bf16.msra.mxu0 %v737
        %1568 = vmatpush.bf16.msra.mxu0 %v736
        %1569 = vmatpush.bf16.msra.mxu0 %v735
        %1570 = vmatpush.bf16.msra.mxu0 %v734
        %1571 = vmatpush.bf16.msra.mxu0 %v733
        %1572 = vmatmul.bf16.gmra.mxu0 %v1550
        %v1573 = vpop.f32.mrf.mxu0
        %v1574 = vadd.f32 %v1561, %v1573
        %v1575 = vpop.f32.mrf.mxu0
        %1576 = vdwg.mxu0
        %v1577 = vpack.c.bf16 %v1457, %v1457
        %v1578 = vpack.c.bf16 %v1458, %v1458
        %1579 = vmatpush.bf16.msra.mxu0 %v732
        %1580 = vmatpush.bf16.msra.mxu0 %v731
        %1581 = vmatpush.bf16.msra.mxu0 %v730
        %1582 = vmatpush.bf16.msra.mxu0 %v729
        %1583 = vmatpush.bf16.msra.mxu0 %v728
        %1584 = vmatpush.bf16.msra.mxu0 %v727
        %1585 = vmatpush.bf16.msra.mxu0 %v726
        %1586 = vmatpush.bf16.msra.mxu0 %v725
        %1587 = vmatmul.bf16.gmra.mxu0 %v1577
        %v1588 = vpop.f32.mrf.mxu0
        %v1589 = vadd.f32 0.0, %v1588
        %v1590 = vpop.f32.mrf.mxu0
        %1591 = vdwg.mxu0
        %1592 = vmatpush.bf16.msra.mxu0 %v740
        %1593 = vmatpush.bf16.msra.mxu0 %v739
        %1594 = vmatpush.bf16.msra.mxu0 %v738
        %1595 = vmatpush.bf16.msra.mxu0 %v737
        %1596 = vmatpush.bf16.msra.mxu0 %v736
        %1597 = vmatpush.bf16.msra.mxu0 %v735
        %1598 = vmatpush.bf16.msra.mxu0 %v734
        %1599 = vmatpush.bf16.msra.mxu0 %v733
        %1600 = vmatmul.bf16.gmra.mxu0 %v1578
        %v1601 = vpop.f32.mrf.mxu0
        %v1602 = vadd.f32 %v1589, %v1601
        %v1603 = vpop.f32.mrf.mxu0
        %1604 = vdwg.mxu0
        %v1605 = vpack.c.bf16 %v1459, %v1459
        %v1606 = vpack.c.bf16 %v1460, %v1460
        %1607 = vmatpush.bf16.msra.mxu0 %v732
        %1608 = vmatpush.bf16.msra.mxu0 %v731
        %1609 = vmatpush.bf16.msra.mxu0 %v730
        %1610 = vmatpush.bf16.msra.mxu0 %v729
        %1611 = vmatpush.bf16.msra.mxu0 %v728
        %1612 = vmatpush.bf16.msra.mxu0 %v727
        %1613 = vmatpush.bf16.msra.mxu0 %v726
        %1614 = vmatpush.bf16.msra.mxu0 %v725
        %1615 = vmatmul.bf16.gmra.mxu0 %v1605
        %v1616 = vpop.f32.mrf.mxu0
        %v1617 = vadd.f32 0.0, %v1616
        %v1618 = vpop.f32.mrf.mxu0
        %1619 = vdwg.mxu0
        %1620 = vmatpush.bf16.msra.mxu0 %v740
        %1621 = vmatpush.bf16.msra.mxu0 %v739
        %1622 = vmatpush.bf16.msra.mxu0 %v738
        %1623 = vmatpush.bf16.msra.mxu0 %v737
        %1624 = vmatpush.bf16.msra.mxu0 %v736
        %1625 = vmatpush.bf16.msra.mxu0 %v735
        %1626 = vmatpush.bf16.msra.mxu0 %v734
        %1627 = vmatpush.bf16.msra.mxu0 %v733
        %1628 = vmatmul.bf16.gmra.mxu0 %v1606
        %v1629 = vpop.f32.mrf.mxu0
        %v1630 = vadd.f32 %v1617, %v1629
        %v1631 = vpop.f32.mrf.mxu0
        %1632 = vdwg.mxu0
        %v1633 = vpack.c.bf16 %v1461, %v1461
        %v1634 = vpack.c.bf16 %v1462, %v1462
        %1635 = vmatpush.bf16.msra.mxu0 %v732
        %1636 = vmatpush.bf16.msra.mxu0 %v731
        %1637 = vmatpush.bf16.msra.mxu0 %v730
        %1638 = vmatpush.bf16.msra.mxu0 %v729
        %1639 = vmatpush.bf16.msra.mxu0 %v728
        %1640 = vmatpush.bf16.msra.mxu0 %v727
        %1641 = vmatpush.bf16.msra.mxu0 %v726
        %1642 = vmatpush.bf16.msra.mxu0 %v725
        %1643 = vmatmul.bf16.gmra.mxu0 %v1633
        %v1644 = vpop.f32.mrf.mxu0
        %v1645 = vadd.f32 0.0, %v1644
        %v1646 = vpop.f32.mrf.mxu0
        %1647 = vdwg.mxu0
        %1648 = vmatpush.bf16.msra.mxu0 %v740
        %1649 = vmatpush.bf16.msra.mxu0 %v739
        %1650 = vmatpush.bf16.msra.mxu0 %v738
        %1651 = vmatpush.bf16.msra.mxu0 %v737
        %1652 = vmatpush.bf16.msra.mxu0 %v736
        %1653 = vmatpush.bf16.msra.mxu0 %v735
        %1654 = vmatpush.bf16.msra.mxu0 %v734
        %1655 = vmatpush.bf16.msra.mxu0 %v733
        %1656 = vmatmul.bf16.gmra.mxu0 %v1634
        %v1657 = vpop.f32.mrf.mxu0
        %v1658 = vadd.f32 %v1645, %v1657
        %v1659 = vpop.f32.mrf.mxu0
        %1660 = vdwg.mxu0
        %v1661 = vpack.c.bf16 %v1463, %v1463
        %v1662 = vpack.c.bf16 %v1464, %v1464
        %1663 = vmatpush.bf16.msra.mxu0 %v732
        %1664 = vmatpush.bf16.msra.mxu0 %v731
        %1665 = vmatpush.bf16.msra.mxu0 %v730
        %1666 = vmatpush.bf16.msra.mxu0 %v729
        %1667 = vmatpush.bf16.msra.mxu0 %v728
        %1668 = vmatpush.bf16.msra.mxu0 %v727
        %1669 = vmatpush.bf16.msra.mxu0 %v726
        %1670 = vmatpush.bf16.msra.mxu0 %v725
        %1671 = vmatmul.bf16.gmra.mxu0 %v1661
        %v1672 = vpop.f32.mrf.mxu0
        %v1673 = vadd.f32 0.0, %v1672
        %v1674 = vpop.f32.mrf.mxu0
        %1675 = vdwg.mxu0
        %1676 = vmatpush.bf16.msra.mxu0 %v740
        %1677 = vmatpush.bf16.msra.mxu0 %v739
        %1678 = vmatpush.bf16.msra.mxu0 %v738
        %1679 = vmatpush.bf16.msra.mxu0 %v737
        %1680 = vmatpush.bf16.msra.mxu0 %v736
        %1681 = vmatpush.bf16.msra.mxu0 %v735
        %1682 = vmatpush.bf16.msra.mxu0 %v734
        %1683 = vmatpush.bf16.msra.mxu0 %v733
        %1684 = vmatmul.bf16.gmra.mxu0 %v1662
        %v1685 = vpop.f32.mrf.mxu0
        %v1686 = vadd.f32 %v1673, %v1685
        %v1687 = vpop.f32.mrf.mxu0
        %1688 = vdwg.mxu0
        %v1689 = vand.u32 %v627, 31
        %v1690 = vand.u32 %v753, 31
        %v1691 = vand.u32 %v754, 31
        %v1692 = vand.u32 %v755, 31
        %v1693 = vand.u32 %v756, 31
        %v1694 = vand.u32 %v757, 31
        %v1695 = vand.u32 %v758, 31
        %v1696 = vand.u32 %v759, 31
        %vm1697 = vcmp.ne.s32.totalorder %v1689, 0
        %vm1698 = vcmp.ne.s32.totalorder %v1690, 0
        %vm1699 = vcmp.ne.s32.totalorder %v1691, 0
        %vm1700 = vcmp.ne.s32.totalorder %v1692, 0
        %vm1701 = vcmp.ne.s32.totalorder %v1693, 0
        %vm1702 = vcmp.ne.s32.totalorder %v1694, 0
        %vm1703 = vcmp.ne.s32.totalorder %v1695, 0
        %vm1704 = vcmp.ne.s32.totalorder %v1696, 0
        %1705 = vrot.lane.b32.xlu0 %v1490, 1
        %v1706 = vpop.permute.xlu0 %1705
        %1707 = vrot.lane.b32.xlu0 %v1518, 1
        %v1708 = vpop.permute.xlu0 %1707
        %1709 = vrot.lane.b32.xlu0 %v1546, 1
        %v1710 = vpop.permute.xlu0 %1709
        %1711 = vrot.lane.b32.xlu0 %v1574, 1
        %v1712 = vpop.permute.xlu0 %1711
        %1713 = vrot.lane.b32.xlu0 %v1602, 1
        %v1714 = vpop.permute.xlu0 %1713
        %1715 = vrot.lane.b32.xlu0 %v1630, 1
        %v1716 = vpop.permute.xlu0 %1715
        %1717 = vrot.lane.b32.xlu0 %v1658, 1
        %v1718 = vpop.permute.xlu0 %1717
        %1719 = vrot.lane.b32.xlu0 %v1686, 1
        %v1720 = vpop.permute.xlu0 %1719
        %v1721 = vsel %vm883, %v1718, %v1720
        %v1722 = vsel %vm883, %v1716, %v1718
        %v1723 = vsel %vm883, %v1714, %v1716
        %v1724 = vsel %vm883, %v1712, %v1714
        %v1725 = vsel %vm883, %v1710, %v1712
        %v1726 = vsel %vm883, %v1708, %v1710
        %v1727 = vsel %vm883, %v1706, %v1708
        %v1728 = vsel %vm883, %v1720, %v1706
        %v1729 = vsel %vm1697, %v1728, 0.0
        %v1730 = vsel %vm1698, %v1727, 0.0
        %v1731 = vsel %vm1699, %v1726, 0.0
        %v1732 = vsel %vm1700, %v1725, 0.0
        %v1733 = vsel %vm1701, %v1724, 0.0
        %v1734 = vsel %vm1702, %v1723, 0.0
        %v1735 = vsel %vm1703, %v1722, 0.0
        %v1736 = vsel %vm1704, %v1721, 0.0
        %vm1737 = vcmp.ne.s32.totalorder %v1689, 31
        %vm1738 = vcmp.ne.s32.totalorder %v1690, 31
        %vm1739 = vcmp.ne.s32.totalorder %v1691, 31
        %vm1740 = vcmp.ne.s32.totalorder %v1692, 31
        %vm1741 = vcmp.ne.s32.totalorder %v1693, 31
        %vm1742 = vcmp.ne.s32.totalorder %v1694, 31
        %vm1743 = vcmp.ne.s32.totalorder %v1695, 31
        %vm1744 = vcmp.ne.s32.totalorder %v1696, 31
        %1745 = vrot.lane.b32.xlu0 %v1490, 127
        %v1746 = vpop.permute.xlu0 %1745
        %1747 = vrot.lane.b32.xlu0 %v1518, 127
        %v1748 = vpop.permute.xlu0 %1747
        %1749 = vrot.lane.b32.xlu0 %v1546, 127
        %v1750 = vpop.permute.xlu0 %1749
        %1751 = vrot.lane.b32.xlu0 %v1574, 127
        %v1752 = vpop.permute.xlu0 %1751
        %1753 = vrot.lane.b32.xlu0 %v1602, 127
        %v1754 = vpop.permute.xlu0 %1753
        %1755 = vrot.lane.b32.xlu0 %v1630, 127
        %v1756 = vpop.permute.xlu0 %1755
        %1757 = vrot.lane.b32.xlu0 %v1658, 127
        %v1758 = vpop.permute.xlu0 %1757
        %1759 = vrot.lane.b32.xlu0 %v1686, 127
        %v1760 = vpop.permute.xlu0 %1759
        %v1761 = vsel %vm1007, %v1758, %v1760
        %v1762 = vsel %vm1007, %v1756, %v1758
        %v1763 = vsel %vm1007, %v1754, %v1756
        %v1764 = vsel %vm1007, %v1752, %v1754
        %v1765 = vsel %vm1007, %v1750, %v1752
        %v1766 = vsel %vm1007, %v1748, %v1750
        %v1767 = vsel %vm1007, %v1746, %v1748
        %v1768 = vsel %vm1007, %v1760, %v1746
        %v1769 = vsel %vm1737, %v1767, 0.0
        %v1770 = vsel %vm1738, %v1766, 0.0
        %v1771 = vsel %vm1739, %v1765, 0.0
        %v1772 = vsel %vm1740, %v1764, 0.0
        %v1773 = vsel %vm1741, %v1763, 0.0
        %v1774 = vsel %vm1742, %v1762, 0.0
        %v1775 = vsel %vm1743, %v1761, 0.0
        %v1776 = vsel %vm1744, %v1768, 0.0
        %v1777 = vld [vmem:[#allocation4 + $0x8] sm:$0xf]
        %v1778 = vld [vmem:[#allocation4 + $0xc] sm:$0xf]
        %v1779 = vunpack.c.l.bf16 %v1777
        %v1780 = vunpack.c.l.bf16 %v1778
        %v1781 = vpack.c.bf16 %v1490, %v1729
        %v1782 = vpack.c.bf16 %v1518, %v1730
        %v1783 = vpack.c.bf16 %v1546, %v1731
        %v1784 = vpack.c.bf16 %v1574, %v1732
        %v1785 = vpack.c.bf16 %v1602, %v1733
        %v1786 = vpack.c.bf16 %v1630, %v1734
        %v1787 = vpack.c.bf16 %v1658, %v1735
        %v1788 = vpack.c.bf16 %v1686, %v1736
        %v1789 = vpack.c.bf16 %v1769, %v1769
        %v1790 = vpack.c.bf16 %v1770, %v1770
        %v1791 = vpack.c.bf16 %v1771, %v1771
        %v1792 = vpack.c.bf16 %v1772, %v1772
        %v1793 = vpack.c.bf16 %v1773, %v1773
        %v1794 = vpack.c.bf16 %v1774, %v1774
        %v1795 = vpack.c.bf16 %v1775, %v1775
        %v1796 = vpack.c.bf16 %v1776, %v1776
        %1798 = vset.pattern.permute.xlu0 24
        %1799 = vperm.xlu0 %1798, %v1779
        %v1800 = vpop.permute.xlu0 %1799
        %1803 = vset.pattern.permute.xlu0 24
        %1804 = vperm.xlu0 %1803, %v1780
        %v1805 = vpop.permute.xlu0 %1804
        %v1809 = vunpack.c.l.b16 %v1777
        %v1810 = vunpack.c.l.b16 %v1778
        %v1811 = vpack.c.b16 %v1810, %v1809
        %vm1812 = vcmask 195584
        %v1814 = vsel %vm1812, %v1811, 0
        %v1817 = vsel %vm1084, %v1789, 0
        %v1820 = vsel %vm1084, %v1790, 0
        %v1823 = vsel %vm1084, %v1791, 0
        %v1826 = vsel %vm1084, %v1792, 0
        %v1829 = vsel %vm1084, %v1793, 0
        %v1832 = vsel %vm1084, %v1794, 0
        %v1835 = vsel %vm1084, %v1795, 0
        %v1838 = vsel %vm1084, %v1796, 0
        %1840 = vmatpush.bf16.msra.mxu0 0
        %1841 = vmatpush.bf16.msra.mxu0 0
        %1842 = vmatpush.bf16.msra.mxu0 0
        %1843 = vmatpush.bf16.msra.mxu0 0
        %1844 = vmatpush.bf16.msra.mxu0 0
        %1845 = vmatpush.bf16.msra.mxu0 0
        %1846 = vmatpush.bf16.msra.mxu0 %v1817
        %1847 = vmatpush.bf16.msra.mxu0 %v1781
        %1848 = vmatmul.bf16.gmra.mxu0 %v1814
        %v1849 = vpop.f32.mrf.mxu0
        %v1850 = vadd.f32 %v1800, %v1849
        %v1851 = vpop.f32.mrf.mxu0
        %v1852 = vadd.f32 %v1805, %v1851
        %1853 = vdwg.mxu0
        %1854 = vmatpush.bf16.msra.mxu0 0
        %1855 = vmatpush.bf16.msra.mxu0 0
        %1856 = vmatpush.bf16.msra.mxu0 0
        %1857 = vmatpush.bf16.msra.mxu0 0
        %1858 = vmatpush.bf16.msra.mxu0 0
        %1859 = vmatpush.bf16.msra.mxu0 0
        %1860 = vmatpush.bf16.msra.mxu0 %v1820
        %1861 = vmatpush.bf16.msra.mxu0 %v1782
        %1862 = vmatmul.bf16.gmra.mxu0 %v1814
        %v1863 = vpop.f32.mrf.mxu0
        %v1864 = vadd.f32 %v1800, %v1863
        %v1865 = vpop.f32.mrf.mxu0
        %v1866 = vadd.f32 %v1805, %v1865
        %1867 = vdwg.mxu0
        %1868 = vmatpush.bf16.msra.mxu0 0
        %1869 = vmatpush.bf16.msra.mxu0 0
        %1870 = vmatpush.bf16.msra.mxu0 0
        %1871 = vmatpush.bf16.msra.mxu0 0
        %1872 = vmatpush.bf16.msra.mxu0 0
        %1873 = vmatpush.bf16.msra.mxu0 0
        %1874 = vmatpush.bf16.msra.mxu0 %v1823
        %1875 = vmatpush.bf16.msra.mxu0 %v1783
        %1876 = vmatmul.bf16.gmra.mxu0 %v1814
        %v1877 = vpop.f32.mrf.mxu0
        %v1878 = vadd.f32 %v1800, %v1877
        %v1879 = vpop.f32.mrf.mxu0
        %v1880 = vadd.f32 %v1805, %v1879
        %1881 = vdwg.mxu0
        %1882 = vmatpush.bf16.msra.mxu0 0
        %1883 = vmatpush.bf16.msra.mxu0 0
        %1884 = vmatpush.bf16.msra.mxu0 0
        %1885 = vmatpush.bf16.msra.mxu0 0
        %1886 = vmatpush.bf16.msra.mxu0 0
        %1887 = vmatpush.bf16.msra.mxu0 0
        %1888 = vmatpush.bf16.msra.mxu0 %v1826
        %1889 = vmatpush.bf16.msra.mxu0 %v1784
        %1890 = vmatmul.bf16.gmra.mxu0 %v1814
        %v1891 = vpop.f32.mrf.mxu0
        %v1892 = vadd.f32 %v1800, %v1891
        %v1893 = vpop.f32.mrf.mxu0
        %v1894 = vadd.f32 %v1805, %v1893
        %1895 = vdwg.mxu0
        %1896 = vmatpush.bf16.msra.mxu0 0
        %1897 = vmatpush.bf16.msra.mxu0 0
        %1898 = vmatpush.bf16.msra.mxu0 0
        %1899 = vmatpush.bf16.msra.mxu0 0
        %1900 = vmatpush.bf16.msra.mxu0 0
        %1901 = vmatpush.bf16.msra.mxu0 0
        %1902 = vmatpush.bf16.msra.mxu0 %v1829
        %1903 = vmatpush.bf16.msra.mxu0 %v1785
        %1904 = vmatmul.bf16.gmra.mxu0 %v1814
        %v1905 = vpop.f32.mrf.mxu0
        %v1906 = vadd.f32 %v1800, %v1905
        %v1907 = vpop.f32.mrf.mxu0
        %v1908 = vadd.f32 %v1805, %v1907
        %1909 = vdwg.mxu0
        %1910 = vmatpush.bf16.msra.mxu0 0
        %1911 = vmatpush.bf16.msra.mxu0 0
        %1912 = vmatpush.bf16.msra.mxu0 0
        %1913 = vmatpush.bf16.msra.mxu0 0
        %1914 = vmatpush.bf16.msra.mxu0 0
        %1915 = vmatpush.bf16.msra.mxu0 0
        %1916 = vmatpush.bf16.msra.mxu0 %v1832
        %1917 = vmatpush.bf16.msra.mxu0 %v1786
        %1918 = vmatmul.bf16.gmra.mxu0 %v1814
        %v1919 = vpop.f32.mrf.mxu0
        %v1920 = vadd.f32 %v1800, %v1919
        %v1921 = vpop.f32.mrf.mxu0
        %v1922 = vadd.f32 %v1805, %v1921
        %1923 = vdwg.mxu0
        %1924 = vmatpush.bf16.msra.mxu0 0
        %1925 = vmatpush.bf16.msra.mxu0 0
        %1926 = vmatpush.bf16.msra.mxu0 0
        %1927 = vmatpush.bf16.msra.mxu0 0
        %1928 = vmatpush.bf16.msra.mxu0 0
        %1929 = vmatpush.bf16.msra.mxu0 0
        %1930 = vmatpush.bf16.msra.mxu0 %v1835
        %1931 = vmatpush.bf16.msra.mxu0 %v1787
        %1932 = vmatmul.bf16.gmra.mxu0 %v1814
        %v1933 = vpop.f32.mrf.mxu0
        %v1934 = vadd.f32 %v1800, %v1933
        %v1935 = vpop.f32.mrf.mxu0
        %v1936 = vadd.f32 %v1805, %v1935
        %1937 = vdwg.mxu0
        %1938 = vmatpush.bf16.msra.mxu0 0
        %1939 = vmatpush.bf16.msra.mxu0 0
        %1940 = vmatpush.bf16.msra.mxu0 0
        %1941 = vmatpush.bf16.msra.mxu0 0
        %1942 = vmatpush.bf16.msra.mxu0 0
        %1943 = vmatpush.bf16.msra.mxu0 0
        %1944 = vmatpush.bf16.msra.mxu0 %v1838
        %1945 = vmatpush.bf16.msra.mxu0 %v1788
        %1946 = vmatmul.bf16.gmra.mxu0 %v1814
        %v1947 = vpop.f32.mrf.mxu0
        %v1948 = vadd.f32 %v1800, %v1947
        %v1949 = vpop.f32.mrf.mxu0
        %v1950 = vadd.f32 %v1805, %v1949
        %1951 = vdwg.mxu0
        %v1952 = vmax.f32 %v1850, 0.0
        %v1953 = vmax.f32 %v1864, 0.0
        %v1954 = vmax.f32 %v1878, 0.0
        %v1955 = vmax.f32 %v1892, 0.0
        %v1956 = vmax.f32 %v1906, 0.0
        %v1957 = vmax.f32 %v1920, 0.0
        %v1958 = vmax.f32 %v1934, 0.0
        %v1959 = vmax.f32 %v1948, 0.0
        %v1960 = vmax.f32 %v1852, 0.0
        %v1961 = vmax.f32 %v1866, 0.0
        %v1962 = vmax.f32 %v1880, 0.0
        %v1963 = vmax.f32 %v1894, 0.0
        %v1964 = vmax.f32 %v1908, 0.0
        %v1965 = vmax.f32 %v1922, 0.0
        %v1966 = vmax.f32 %v1936, 0.0
        %v1967 = vmax.f32 %v1950, 0.0
        %1968 = vrot.lane.b32.xlu0 %v1952, 127
        %v1969 = vpop.permute.xlu0 %1968
        %1970 = vrot.lane.b32.xlu0 %v1960, 127
        %v1971 = vpop.permute.xlu0 %1970
        %1972 = vrot.lane.b32.xlu0 %v1953, 127
        %v1973 = vpop.permute.xlu0 %1972
        %1974 = vrot.lane.b32.xlu0 %v1961, 127
        %v1975 = vpop.permute.xlu0 %1974
        %1976 = vrot.lane.b32.xlu0 %v1954, 127
        %v1977 = vpop.permute.xlu0 %1976
        %1978 = vrot.lane.b32.xlu0 %v1962, 127
        %v1979 = vpop.permute.xlu0 %1978
        %1980 = vrot.lane.b32.xlu0 %v1955, 127
        %v1981 = vpop.permute.xlu0 %1980
        %1982 = vrot.lane.b32.xlu0 %v1963, 127
        %v1983 = vpop.permute.xlu0 %1982
        %1984 = vrot.lane.b32.xlu0 %v1956, 127
        %v1985 = vpop.permute.xlu0 %1984
        %1986 = vrot.lane.b32.xlu0 %v1964, 127
        %v1987 = vpop.permute.xlu0 %1986
        %1988 = vrot.lane.b32.xlu0 %v1957, 127
        %v1989 = vpop.permute.xlu0 %1988
        %1990 = vrot.lane.b32.xlu0 %v1965, 127
        %v1991 = vpop.permute.xlu0 %1990
        %1992 = vrot.lane.b32.xlu0 %v1958, 127
        %v1993 = vpop.permute.xlu0 %1992
        %1994 = vrot.lane.b32.xlu0 %v1966, 127
        %v1995 = vpop.permute.xlu0 %1994
        %1996 = vrot.lane.b32.xlu0 %v1959, 127
        %v1997 = vpop.permute.xlu0 %1996
        %1998 = vrot.lane.b32.xlu0 %v1967, 127
        %v1999 = vpop.permute.xlu0 %1998
        %v2000 = vsel %vm1007, %v1993, %v1997
        %v2001 = vsel %vm1007, %v1995, %v1999
        %v2002 = vsel %vm1007, %v1989, %v1993
        %v2003 = vsel %vm1007, %v1991, %v1995
        %v2004 = vsel %vm1007, %v1985, %v1989
        %v2005 = vsel %vm1007, %v1987, %v1991
        %v2006 = vsel %vm1007, %v1981, %v1985
        %v2007 = vsel %vm1007, %v1983, %v1987
        %v2008 = vsel %vm1007, %v1977, %v1981
        %v2009 = vsel %vm1007, %v1979, %v1983
        %v2010 = vsel %vm1007, %v1973, %v1977
        %v2011 = vsel %vm1007, %v1975, %v1979
        %v2012 = vsel %vm1007, %v1969, %v1973
        %v2013 = vsel %vm1007, %v1971, %v1975
        %v2014 = vsel %vm1007, %v1997, %v1969
        %v2015 = vsel %vm1007, %v1999, %v1971
        %v2016 = vmax.f32 %v1952, %v2012
        %v2017 = vmax.f32 %v1953, %v2010
        %v2018 = vmax.f32 %v1954, %v2008
        %v2019 = vmax.f32 %v1955, %v2006
        %v2020 = vmax.f32 %v1956, %v2004
        %v2021 = vmax.f32 %v1957, %v2002
        %v2022 = vmax.f32 %v1958, %v2000
        %v2023 = vmax.f32 %v1959, %v2014
        %v2024 = vmax.f32 %v1960, %v2013
        %v2025 = vmax.f32 %v1961, %v2011
        %v2026 = vmax.f32 %v1962, %v2009
        %v2027 = vmax.f32 %v1963, %v2007
        %v2028 = vmax.f32 %v1964, %v2005
        %v2029 = vmax.f32 %v1965, %v2003
        %v2030 = vmax.f32 %v1966, %v2001
        %v2031 = vmax.f32 %v1967, %v2015
        %v2032 = vpack.c.bf16 %v2024, %v2016
        %v2033 = vpack.c.bf16 %v2025, %v2017
        %2034 = vmatpush.bf16.msra.mxu0 %v732
        %2035 = vmatpush.bf16.msra.mxu0 %v731
        %2036 = vmatpush.bf16.msra.mxu0 %v730
        %2037 = vmatpush.bf16.msra.mxu0 %v729
        %2038 = vmatpush.bf16.msra.mxu0 %v728
        %2039 = vmatpush.bf16.msra.mxu0 %v727
        %2040 = vmatpush.bf16.msra.mxu0 %v726
        %2041 = vmatpush.bf16.msra.mxu0 %v725
        %2042 = vmatmul.bf16.gmra.mxu0 %v2032
        %v2043 = vpop.f32.mrf.mxu0
        %v2044 = vadd.f32 0.0, %v2043
        %v2045 = vpop.f32.mrf.mxu0
        %v2046 = vadd.f32 0.0, %v2045
        %2047 = vdwg.mxu0
        %2048 = vmatpush.bf16.msra.mxu0 %v740
        %2049 = vmatpush.bf16.msra.mxu0 %v739
        %2050 = vmatpush.bf16.msra.mxu0 %v738
        %2051 = vmatpush.bf16.msra.mxu0 %v737
        %2052 = vmatpush.bf16.msra.mxu0 %v736
        %2053 = vmatpush.bf16.msra.mxu0 %v735
        %2054 = vmatpush.bf16.msra.mxu0 %v734
        %2055 = vmatpush.bf16.msra.mxu0 %v733
        %2056 = vmatmul.bf16.gmra.mxu0 %v2033
        %v2057 = vpop.f32.mrf.mxu0
        %v2058 = vadd.f32 %v2044, %v2057
        %v2059 = vpop.f32.mrf.mxu0
        %v2060 = vadd.f32 %v2046, %v2059
        %2061 = vdwg.mxu0
        %v2062 = vpack.c.bf16 %v2026, %v2018
        %v2063 = vpack.c.bf16 %v2027, %v2019
        %2064 = vmatpush.bf16.msra.mxu0 %v732
        %2065 = vmatpush.bf16.msra.mxu0 %v731
        %2066 = vmatpush.bf16.msra.mxu0 %v730
        %2067 = vmatpush.bf16.msra.mxu0 %v729
        %2068 = vmatpush.bf16.msra.mxu0 %v728
        %2069 = vmatpush.bf16.msra.mxu0 %v727
        %2070 = vmatpush.bf16.msra.mxu0 %v726
        %2071 = vmatpush.bf16.msra.mxu0 %v725
        %2072 = vmatmul.bf16.gmra.mxu0 %v2062
        %v2073 = vpop.f32.mrf.mxu0
        %v2074 = vadd.f32 0.0, %v2073
        %v2075 = vpop.f32.mrf.mxu0
        %v2076 = vadd.f32 0.0, %v2075
        %2077 = vdwg.mxu0
        %2078 = vmatpush.bf16.msra.mxu0 %v740
        %2079 = vmatpush.bf16.msra.mxu0 %v739
        %2080 = vmatpush.bf16.msra.mxu0 %v738
        %2081 = vmatpush.bf16.msra.mxu0 %v737
        %2082 = vmatpush.bf16.msra.mxu0 %v736
        %2083 = vmatpush.bf16.msra.mxu0 %v735
        %2084 = vmatpush.bf16.msra.mxu0 %v734
        %2085 = vmatpush.bf16.msra.mxu0 %v733
        %2086 = vmatmul.bf16.gmra.mxu0 %v2063
        %v2087 = vpop.f32.mrf.mxu0
        %v2088 = vadd.f32 %v2074, %v2087
        %v2089 = vpop.f32.mrf.mxu0
        %v2090 = vadd.f32 %v2076, %v2089
        %2091 = vdwg.mxu0
        %v2092 = vpack.c.bf16 %v2028, %v2020
        %v2093 = vpack.c.bf16 %v2029, %v2021
        %2094 = vmatpush.bf16.msra.mxu0 %v732
        %2095 = vmatpush.bf16.msra.mxu0 %v731
        %2096 = vmatpush.bf16.msra.mxu0 %v730
        %2097 = vmatpush.bf16.msra.mxu0 %v729
        %2098 = vmatpush.bf16.msra.mxu0 %v728
        %2099 = vmatpush.bf16.msra.mxu0 %v727
        %2100 = vmatpush.bf16.msra.mxu0 %v726
        %2101 = vmatpush.bf16.msra.mxu0 %v725
        %2102 = vmatmul.bf16.gmra.mxu0 %v2092
        %v2103 = vpop.f32.mrf.mxu0
        %v2104 = vadd.f32 0.0, %v2103
        %v2105 = vpop.f32.mrf.mxu0
        %v2106 = vadd.f32 0.0, %v2105
        %2107 = vdwg.mxu0
        %2108 = vmatpush.bf16.msra.mxu0 %v740
        %2109 = vmatpush.bf16.msra.mxu0 %v739
        %2110 = vmatpush.bf16.msra.mxu0 %v738
        %2111 = vmatpush.bf16.msra.mxu0 %v737
        %2112 = vmatpush.bf16.msra.mxu0 %v736
        %2113 = vmatpush.bf16.msra.mxu0 %v735
        %2114 = vmatpush.bf16.msra.mxu0 %v734
        %2115 = vmatpush.bf16.msra.mxu0 %v733
        %2116 = vmatmul.bf16.gmra.mxu0 %v2093
        %v2117 = vpop.f32.mrf.mxu0
        %v2118 = vadd.f32 %v2104, %v2117
        %v2119 = vpop.f32.mrf.mxu0
        %v2120 = vadd.f32 %v2106, %v2119
        %2121 = vdwg.mxu0
        %v2122 = vpack.c.bf16 %v2030, %v2022
        %v2123 = vpack.c.bf16 %v2031, %v2023
        %2124 = vmatpush.bf16.msra.mxu0 %v732
        %2125 = vmatpush.bf16.msra.mxu0 %v731
        %2126 = vmatpush.bf16.msra.mxu0 %v730
        %2127 = vmatpush.bf16.msra.mxu0 %v729
        %2128 = vmatpush.bf16.msra.mxu0 %v728
        %2129 = vmatpush.bf16.msra.mxu0 %v727
        %2130 = vmatpush.bf16.msra.mxu0 %v726
        %2131 = vmatpush.bf16.msra.mxu0 %v725
        %2132 = vmatmul.bf16.gmra.mxu0 %v2122
        %v2133 = vpop.f32.mrf.mxu0
        %v2134 = vadd.f32 0.0, %v2133
        %v2135 = vpop.f32.mrf.mxu0
        %v2136 = vadd.f32 0.0, %v2135
        %2137 = vdwg.mxu0
        %2138 = vmatpush.bf16.msra.mxu0 %v740
        %2139 = vmatpush.bf16.msra.mxu0 %v739
        %2140 = vmatpush.bf16.msra.mxu0 %v738
        %2141 = vmatpush.bf16.msra.mxu0 %v737
        %2142 = vmatpush.bf16.msra.mxu0 %v736
        %2143 = vmatpush.bf16.msra.mxu0 %v735
        %2144 = vmatpush.bf16.msra.mxu0 %v734
        %2145 = vmatpush.bf16.msra.mxu0 %v733
        %2146 = vmatmul.bf16.gmra.mxu0 %v2123
        %v2147 = vpop.f32.mrf.mxu0
        %v2148 = vadd.f32 %v2134, %v2147
        %v2149 = vpop.f32.mrf.mxu0
        %v2150 = vadd.f32 %v2136, %v2149
        %2151 = vdwg.mxu0
        %v2152 = vand.u32 %v627, 15
        %v2153 = vand.u32 %v753, 15
        %v2154 = vand.u32 %v754, 15
        %v2155 = vand.u32 %v755, 15
        %vm2156 = vcmp.ne.s32.totalorder %v2152, 0
        %vm2157 = vcmp.ne.s32.totalorder %v2153, 0
        %vm2158 = vcmp.ne.s32.totalorder %v2154, 0
        %vm2159 = vcmp.ne.s32.totalorder %v2155, 0
        %2160 = vrot.lane.b32.xlu0 %v2058, 1
        %v2161 = vpop.permute.xlu0 %2160
        %2162 = vrot.lane.b32.xlu0 %v2060, 1
        %v2163 = vpop.permute.xlu0 %2162
        %2164 = vrot.lane.b32.xlu0 %v2088, 1
        %v2165 = vpop.permute.xlu0 %2164
        %2166 = vrot.lane.b32.xlu0 %v2090, 1
        %v2167 = vpop.permute.xlu0 %2166
        %2168 = vrot.lane.b32.xlu0 %v2118, 1
        %v2169 = vpop.permute.xlu0 %2168
        %2170 = vrot.lane.b32.xlu0 %v2120, 1
        %v2171 = vpop.permute.xlu0 %2170
        %2172 = vrot.lane.b32.xlu0 %v2148, 1
        %v2173 = vpop.permute.xlu0 %2172
        %2174 = vrot.lane.b32.xlu0 %v2150, 1
        %v2175 = vpop.permute.xlu0 %2174
        %v2176 = vsel %vm883, %v2169, %v2173
        %v2177 = vsel %vm883, %v2171, %v2175
        %v2178 = vsel %vm883, %v2165, %v2169
        %v2179 = vsel %vm883, %v2167, %v2171
        %v2180 = vsel %vm883, %v2161, %v2165
        %v2181 = vsel %vm883, %v2163, %v2167
        %v2182 = vsel %vm883, %v2173, %v2161
        %v2183 = vsel %vm883, %v2175, %v2163
        %v2184 = vsel %vm2156, %v2182, 0.0
        %v2185 = vsel %vm2157, %v2180, 0.0
        %v2186 = vsel %vm2158, %v2178, 0.0
        %v2187 = vsel %vm2159, %v2176, 0.0
        %v2188 = vsel %vm2156, %v2183, 0.0
        %v2189 = vsel %vm2157, %v2181, 0.0
        %v2190 = vsel %vm2158, %v2179, 0.0
        %v2191 = vsel %vm2159, %v2177, 0.0
        %vm2192 = vcmp.ne.s32.totalorder %v2152, 15
        %vm2193 = vcmp.ne.s32.totalorder %v2153, 15
        %vm2194 = vcmp.ne.s32.totalorder %v2154, 15
        %vm2195 = vcmp.ne.s32.totalorder %v2155, 15
        %2196 = vrot.lane.b32.xlu0 %v2058, 127
        %v2197 = vpop.permute.xlu0 %2196
        %2198 = vrot.lane.b32.xlu0 %v2060, 127
        %v2199 = vpop.permute.xlu0 %2198
        %2200 = vrot.lane.b32.xlu0 %v2088, 127
        %v2201 = vpop.permute.xlu0 %2200
        %2202 = vrot.lane.b32.xlu0 %v2090, 127
        %v2203 = vpop.permute.xlu0 %2202
        %2204 = vrot.lane.b32.xlu0 %v2118, 127
        %v2205 = vpop.permute.xlu0 %2204
        %2206 = vrot.lane.b32.xlu0 %v2120, 127
        %v2207 = vpop.permute.xlu0 %2206
        %2208 = vrot.lane.b32.xlu0 %v2148, 127
        %v2209 = vpop.permute.xlu0 %2208
        %2210 = vrot.lane.b32.xlu0 %v2150, 127
        %v2211 = vpop.permute.xlu0 %2210
        %v2212 = vsel %vm1007, %v2205, %v2209
        %v2213 = vsel %vm1007, %v2207, %v2211
        %v2214 = vsel %vm1007, %v2201, %v2205
        %v2215 = vsel %vm1007, %v2203, %v2207
        %v2216 = vsel %vm1007, %v2197, %v2201
        %v2217 = vsel %vm1007, %v2199, %v2203
        %v2218 = vsel %vm1007, %v2209, %v2197
        %v2219 = vsel %vm1007, %v2211, %v2199
        %v2220 = vsel %vm2192, %v2216, 0.0
        %v2221 = vsel %vm2193, %v2214, 0.0
        %v2222 = vsel %vm2194, %v2212, 0.0
        %v2223 = vsel %vm2195, %v2218, 0.0
        %v2224 = vsel %vm2192, %v2217, 0.0
        %v2225 = vsel %vm2193, %v2215, 0.0
        %v2226 = vsel %vm2194, %v2213, 0.0
        %v2227 = vsel %vm2195, %v2219, 0.0
        %v2228 = vld [vmem:[#allocation4 + $0x10] sm:$0xf]
        %v2229 = vld [vmem:[#allocation4 + $0x14] sm:$0xf]
        %v2230 = vld [vmem:[#allocation4 + $0x18] sm:$0xf]
        %v2231 = vld [vmem:[#allocation4 + $0x1c] sm:$0xf]
        %v2232 = vunpack.c.l.bf16 %v2228
        %v2233 = vunpack.c.l.bf16 %v2229
        %v2234 = vunpack.c.l.bf16 %v2230
        %v2235 = vunpack.c.l.bf16 %v2231
        %v2236 = vpack.c.bf16 %v2188, %v2184
        %v2237 = vpack.c.bf16 %v2189, %v2185
        %v2238 = vpack.c.bf16 %v2190, %v2186
        %v2239 = vpack.c.bf16 %v2191, %v2187
        %v2240 = vpack.c.bf16 %v2060, %v2058
        %v2241 = vpack.c.bf16 %v2090, %v2088
        %v2242 = vpack.c.bf16 %v2120, %v2118
        %v2243 = vpack.c.bf16 %v2150, %v2148
        %v2244 = vpack.c.bf16 %v2224, %v2220
        %v2245 = vpack.c.bf16 %v2225, %v2221
        %v2246 = vpack.c.bf16 %v2226, %v2222
        %v2247 = vpack.c.bf16 %v2227, %v2223
        %2249 = vset.pattern.permute.xlu0 48
        %2250 = vperm.xlu0 %2249, %v2232
        %v2251 = vpop.permute.xlu0 %2250
        %2254 = vset.pattern.permute.xlu0 48
        %2255 = vperm.xlu0 %2254, %v2233
        %v2256 = vpop.permute.xlu0 %2255
        %2259 = vset.pattern.permute.xlu0 48
        %2260 = vperm.xlu0 %2259, %v2234
        %v2261 = vpop.permute.xlu0 %2260
        %2264 = vset.pattern.permute.xlu0 48
        %2265 = vperm.xlu0 %2264, %v2235
        %v2266 = vpop.permute.xlu0 %2265
        %v2272 = vunpack.c.l.b16 %v2228
        %v2273 = vunpack.c.l.b16 %v2229
        %v2274 = vunpack.c.l.b16 %v2230
        %v2275 = vunpack.c.l.b16 %v2231
        %v2276 = vpack.c.b16 %v2273, %v2272
        %v2277 = vpack.c.b16 %v2275, %v2274
        %vm2278 = vcmask 392192
        %v2280 = vsel %vm2278, %v2276, 0
        %v2283 = vsel %vm2278, %v2277, 0
        %2285 = vmatpush.bf16.msra.mxu0 0
        %2286 = vmatpush.bf16.msra.mxu0 0
        %2287 = vmatpush.bf16.msra.mxu0 0
        %2288 = vmatpush.bf16.msra.mxu0 0
        %2289 = vmatpush.bf16.msra.mxu0 0
        %2290 = vmatpush.bf16.msra.mxu0 %v2244
        %2291 = vmatpush.bf16.msra.mxu0 %v2240
        %2292 = vmatpush.bf16.msra.mxu0 %v2236
        %2293 = vmatmul.bf16.gmra.mxu0 %v2280
        %v2294 = vpop.f32.mrf.mxu0
        %v2295 = vadd.f32 %v2251, %v2294
        %v2296 = vpop.f32.mrf.mxu0
        %v2297 = vadd.f32 %v2256, %v2296
        %2298 = vmatmul.bf16.gmra.mxu0 %v2283
        %v2299 = vpop.f32.mrf.mxu0
        %v2300 = vadd.f32 %v2261, %v2299
        %v2301 = vpop.f32.mrf.mxu0
        %v2302 = vadd.f32 %v2266, %v2301
        %2303 = vdwg.mxu0
        %2304 = vmatpush.bf16.msra.mxu0 0
        %2305 = vmatpush.bf16.msra.mxu0 0
        %2306 = vmatpush.bf16.msra.mxu0 0
        %2307 = vmatpush.bf16.msra.mxu0 0
        %2308 = vmatpush.bf16.msra.mxu0 0
        %2309 = vmatpush.bf16.msra.mxu0 %v2245
        %2310 = vmatpush.bf16.msra.mxu0 %v2241
        %2311 = vmatpush.bf16.msra.mxu0 %v2237
        %2312 = vmatmul.bf16.gmra.mxu0 %v2280
        %v2313 = vpop.f32.mrf.mxu0
        %v2314 = vadd.f32 %v2251, %v2313
        %v2315 = vpop.f32.mrf.mxu0
        %v2316 = vadd.f32 %v2256, %v2315
        %2317 = vmatmul.bf16.gmra.mxu0 %v2283
        %v2318 = vpop.f32.mrf.mxu0
        %v2319 = vadd.f32 %v2261, %v2318
        %v2320 = vpop.f32.mrf.mxu0
        %v2321 = vadd.f32 %v2266, %v2320
        %2322 = vdwg.mxu0
        %2323 = vmatpush.bf16.msra.mxu0 0
        %2324 = vmatpush.bf16.msra.mxu0 0
        %2325 = vmatpush.bf16.msra.mxu0 0
        %2326 = vmatpush.bf16.msra.mxu0 0
        %2327 = vmatpush.bf16.msra.mxu0 0
        %2328 = vmatpush.bf16.msra.mxu0 %v2246
        %2329 = vmatpush.bf16.msra.mxu0 %v2242
        %2330 = vmatpush.bf16.msra.mxu0 %v2238
        %2331 = vmatmul.bf16.gmra.mxu0 %v2280
        %v2332 = vpop.f32.mrf.mxu0
        %v2333 = vadd.f32 %v2251, %v2332
        %v2334 = vpop.f32.mrf.mxu0
        %v2335 = vadd.f32 %v2256, %v2334
        %2336 = vmatmul.bf16.gmra.mxu0 %v2283
        %v2337 = vpop.f32.mrf.mxu0
        %v2338 = vadd.f32 %v2261, %v2337
        %v2339 = vpop.f32.mrf.mxu0
        %v2340 = vadd.f32 %v2266, %v2339
        %2341 = vdwg.mxu0
        %2342 = vmatpush.bf16.msra.mxu0 0
        %2343 = vmatpush.bf16.msra.mxu0 0
        %2344 = vmatpush.bf16.msra.mxu0 0
        %2345 = vmatpush.bf16.msra.mxu0 0
        %2346 = vmatpush.bf16.msra.mxu0 0
        %2347 = vmatpush.bf16.msra.mxu0 %v2247
        %2348 = vmatpush.bf16.msra.mxu0 %v2243
        %2349 = vmatpush.bf16.msra.mxu0 %v2239
        %2350 = vmatmul.bf16.gmra.mxu0 %v2280
        %v2351 = vpop.f32.mrf.mxu0
        %v2352 = vadd.f32 %v2251, %v2351
        %v2353 = vpop.f32.mrf.mxu0
        %v2354 = vadd.f32 %v2256, %v2353
        %2355 = vmatmul.bf16.gmra.mxu0 %v2283
        %v2356 = vpop.f32.mrf.mxu0
        %v2357 = vadd.f32 %v2261, %v2356
        %v2358 = vpop.f32.mrf.mxu0
        %v2359 = vadd.f32 %v2266, %v2358
        %2360 = vdwg.mxu0
        %v2361 = vmax.f32 %v2295, 0.0
        %v2362 = vmax.f32 %v2314, 0.0
        %v2363 = vmax.f32 %v2333, 0.0
        %v2364 = vmax.f32 %v2352, 0.0
        %v2365 = vmax.f32 %v2297, 0.0
        %v2366 = vmax.f32 %v2316, 0.0
        %v2367 = vmax.f32 %v2335, 0.0
        %v2368 = vmax.f32 %v2354, 0.0
        %v2369 = vmax.f32 %v2300, 0.0
        %v2370 = vmax.f32 %v2319, 0.0
        %v2371 = vmax.f32 %v2338, 0.0
        %v2372 = vmax.f32 %v2357, 0.0
        %v2373 = vmax.f32 %v2302, 0.0
        %v2374 = vmax.f32 %v2321, 0.0
        %v2375 = vmax.f32 %v2340, 0.0
        %v2376 = vmax.f32 %v2359, 0.0
        %2377 = vrot.lane.b32.xlu0 %v2361, 127
        %v2378 = vpop.permute.xlu0 %2377
        %2379 = vrot.lane.b32.xlu0 %v2365, 127
        %v2380 = vpop.permute.xlu0 %2379
        %2381 = vrot.lane.b32.xlu0 %v2369, 127
        %v2382 = vpop.permute.xlu0 %2381
        %2383 = vrot.lane.b32.xlu0 %v2373, 127
        %v2384 = vpop.permute.xlu0 %2383
        %2385 = vrot.lane.b32.xlu0 %v2362, 127
        %v2386 = vpop.permute.xlu0 %2385
        %2387 = vrot.lane.b32.xlu0 %v2366, 127
        %v2388 = vpop.permute.xlu0 %2387
        %2389 = vrot.lane.b32.xlu0 %v2370, 127
        %v2390 = vpop.permute.xlu0 %2389
        %2391 = vrot.lane.b32.xlu0 %v2374, 127
        %v2392 = vpop.permute.xlu0 %2391
        %2393 = vrot.lane.b32.xlu0 %v2363, 127
        %v2394 = vpop.permute.xlu0 %2393
        %2395 = vrot.lane.b32.xlu0 %v2367, 127
        %v2396 = vpop.permute.xlu0 %2395
        %2397 = vrot.lane.b32.xlu0 %v2371, 127
        %v2398 = vpop.permute.xlu0 %2397
        %2399 = vrot.lane.b32.xlu0 %v2375, 127
        %v2400 = vpop.permute.xlu0 %2399
        %2401 = vrot.lane.b32.xlu0 %v2364, 127
        %v2402 = vpop.permute.xlu0 %2401
        %2403 = vrot.lane.b32.xlu0 %v2368, 127
        %v2404 = vpop.permute.xlu0 %2403
        %2405 = vrot.lane.b32.xlu0 %v2372, 127
        %v2406 = vpop.permute.xlu0 %2405
        %2407 = vrot.lane.b32.xlu0 %v2376, 127
        %v2408 = vpop.permute.xlu0 %2407
        %v2409 = vsel %vm1007, %v2394, %v2402
        %v2410 = vsel %vm1007, %v2396, %v2404
        %v2411 = vsel %vm1007, %v2398, %v2406
        %v2412 = vsel %vm1007, %v2400, %v2408
        %v2413 = vsel %vm1007, %v2386, %v2394
        %v2414 = vsel %vm1007, %v2388, %v2396
        %v2415 = vsel %vm1007, %v2390, %v2398
        %v2416 = vsel %vm1007, %v2392, %v2400
        %v2417 = vsel %vm1007, %v2378, %v2386
        %v2418 = vsel %vm1007, %v2380, %v2388
        %v2419 = vsel %vm1007, %v2382, %v2390
        %v2420 = vsel %vm1007, %v2384, %v2392
        %v2421 = vsel %vm1007, %v2402, %v2378
        %v2422 = vsel %vm1007, %v2404, %v2380
        %v2423 = vsel %vm1007, %v2406, %v2382
        %v2424 = vsel %vm1007, %v2408, %v2384
        %v2425 = vmax.f32 %v2361, %v2417
        %v2426 = vmax.f32 %v2362, %v2413
        %v2427 = vmax.f32 %v2363, %v2409
        %v2428 = vmax.f32 %v2364, %v2421
        %v2429 = vmax.f32 %v2365, %v2418
        %v2430 = vmax.f32 %v2366, %v2414
        %v2431 = vmax.f32 %v2367, %v2410
        %v2432 = vmax.f32 %v2368, %v2422
        %v2433 = vmax.f32 %v2369, %v2419
        %v2434 = vmax.f32 %v2370, %v2415
        %v2435 = vmax.f32 %v2371, %v2411
        %v2436 = vmax.f32 %v2372, %v2423
        %v2437 = vmax.f32 %v2373, %v2420
        %v2438 = vmax.f32 %v2374, %v2416
        %v2439 = vmax.f32 %v2375, %v2412
        %v2440 = vmax.f32 %v2376, %v2424
        %v2441 = vpack.c.bf16 %v2429, %v2425
        %v2442 = vpack.c.bf16 %v2430, %v2426
        %v2443 = vpack.c.bf16 %v2437, %v2433
        %v2444 = vpack.c.bf16 %v2438, %v2434
        %2445 = vmatpush.bf16.msra.mxu0 %v732
        %2446 = vmatpush.bf16.msra.mxu0 %v731
        %2447 = vmatpush.bf16.msra.mxu0 %v730
        %2448 = vmatpush.bf16.msra.mxu0 %v729
        %2449 = vmatpush.bf16.msra.mxu0 %v728
        %2450 = vmatpush.bf16.msra.mxu0 %v727
        %2451 = vmatpush.bf16.msra.mxu0 %v726
        %2452 = vmatpush.bf16.msra.mxu0 %v725
        %2453 = vmatmul.bf16.gmra.mxu0 %v2441
        %v2454 = vpop.f32.mrf.mxu0
        %v2455 = vadd.f32 0.0, %v2454
        %v2456 = vpop.f32.mrf.mxu0
        %v2457 = vadd.f32 0.0, %v2456
        %2458 = vmatmul.bf16.gmra.mxu0 %v2443
        %v2459 = vpop.f32.mrf.mxu0
        %v2460 = vadd.f32 0.0, %v2459
        %v2461 = vpop.f32.mrf.mxu0
        %v2462 = vadd.f32 0.0, %v2461
        %2463 = vdwg.mxu0
        %2464 = vmatpush.bf16.msra.mxu0 %v740
        %2465 = vmatpush.bf16.msra.mxu0 %v739
        %2466 = vmatpush.bf16.msra.mxu0 %v738
        %2467 = vmatpush.bf16.msra.mxu0 %v737
        %2468 = vmatpush.bf16.msra.mxu0 %v736
        %2469 = vmatpush.bf16.msra.mxu0 %v735
        %2470 = vmatpush.bf16.msra.mxu0 %v734
        %2471 = vmatpush.bf16.msra.mxu0 %v733
        %2472 = vmatmul.bf16.gmra.mxu0 %v2442
        %v2473 = vpop.f32.mrf.mxu0
        %v2474 = vadd.f32 %v2455, %v2473
        %v2475 = vpop.f32.mrf.mxu0
        %v2476 = vadd.f32 %v2457, %v2475
        %2477 = vmatmul.bf16.gmra.mxu0 %v2444
        %v2478 = vpop.f32.mrf.mxu0
        %v2479 = vadd.f32 %v2460, %v2478
        %v2480 = vpop.f32.mrf.mxu0
        %v2481 = vadd.f32 %v2462, %v2480
        %2482 = vdwg.mxu0
        %v2483 = vpack.c.bf16 %v2431, %v2427
        %v2484 = vpack.c.bf16 %v2432, %v2428
        %v2485 = vpack.c.bf16 %v2439, %v2435
        %v2486 = vpack.c.bf16 %v2440, %v2436
        %2487 = vmatpush.bf16.msra.mxu0 %v732
        %2488 = vmatpush.bf16.msra.mxu0 %v731
        %2489 = vmatpush.bf16.msra.mxu0 %v730
        %2490 = vmatpush.bf16.msra.mxu0 %v729
        %2491 = vmatpush.bf16.msra.mxu0 %v728
        %2492 = vmatpush.bf16.msra.mxu0 %v727
        %2493 = vmatpush.bf16.msra.mxu0 %v726
        %2494 = vmatpush.bf16.msra.mxu0 %v725
        %2495 = vmatmul.bf16.gmra.mxu0 %v2483
        %v2496 = vpop.f32.mrf.mxu0
        %v2497 = vadd.f32 0.0, %v2496
        %v2498 = vpop.f32.mrf.mxu0
        %v2499 = vadd.f32 0.0, %v2498
        %2500 = vmatmul.bf16.gmra.mxu0 %v2485
        %v2501 = vpop.f32.mrf.mxu0
        %v2502 = vadd.f32 0.0, %v2501
        %v2503 = vpop.f32.mrf.mxu0
        %v2504 = vadd.f32 0.0, %v2503
        %2505 = vdwg.mxu0
        %2506 = vmatpush.bf16.msra.mxu0 %v740
        %2507 = vmatpush.bf16.msra.mxu0 %v739
        %2508 = vmatpush.bf16.msra.mxu0 %v738
        %2509 = vmatpush.bf16.msra.mxu0 %v737
        %2510 = vmatpush.bf16.msra.mxu0 %v736
        %2511 = vmatpush.bf16.msra.mxu0 %v735
        %2512 = vmatpush.bf16.msra.mxu0 %v734
        %2513 = vmatpush.bf16.msra.mxu0 %v733
        %2514 = vmatmul.bf16.gmra.mxu0 %v2484
        %v2515 = vpop.f32.mrf.mxu0
        %v2516 = vadd.f32 %v2497, %v2515
        %v2517 = vpop.f32.mrf.mxu0
        %v2518 = vadd.f32 %v2499, %v2517
        %2519 = vmatmul.bf16.gmra.mxu0 %v2486
        %v2520 = vpop.f32.mrf.mxu0
        %v2521 = vadd.f32 %v2502, %v2520
        %v2522 = vpop.f32.mrf.mxu0
        %v2523 = vadd.f32 %v2504, %v2522
        %2524 = vdwg.mxu0
        %v2525 = vand.u32 %v627, 7
        %v2526 = vand.u32 %v753, 7
        %vm2527 = vcmp.ne.s32.totalorder %v2525, 0
        %vm2528 = vcmp.ne.s32.totalorder %v2526, 0
        %2529 = vrot.lane.b32.xlu0 %v2474, 1
        %v2530 = vpop.permute.xlu0 %2529
        %2531 = vrot.lane.b32.xlu0 %v2476, 1
        %v2532 = vpop.permute.xlu0 %2531
        %2533 = vrot.lane.b32.xlu0 %v2479, 1
        %v2534 = vpop.permute.xlu0 %2533
        %2535 = vrot.lane.b32.xlu0 %v2481, 1
        %v2536 = vpop.permute.xlu0 %2535
        %2537 = vrot.lane.b32.xlu0 %v2516, 1
        %v2538 = vpop.permute.xlu0 %2537
        %2539 = vrot.lane.b32.xlu0 %v2518, 1
        %v2540 = vpop.permute.xlu0 %2539
        %2541 = vrot.lane.b32.xlu0 %v2521, 1
        %v2542 = vpop.permute.xlu0 %2541
        %2543 = vrot.lane.b32.xlu0 %v2523, 1
        %v2544 = vpop.permute.xlu0 %2543
        %v2545 = vsel %vm883, %v2530, %v2538
        %v2546 = vsel %vm883, %v2532, %v2540
        %v2547 = vsel %vm883, %v2534, %v2542
        %v2548 = vsel %vm883, %v2536, %v2544
        %v2549 = vsel %vm883, %v2538, %v2530
        %v2550 = vsel %vm883, %v2540, %v2532
        %v2551 = vsel %vm883, %v2542, %v2534
        %v2552 = vsel %vm883, %v2544, %v2536
        %v2553 = vsel %vm2527, %v2549, 0.0
        %v2554 = vsel %vm2528, %v2545, 0.0
        %v2555 = vsel %vm2527, %v2550, 0.0
        %v2556 = vsel %vm2528, %v2546, 0.0
        %v2557 = vsel %vm2527, %v2551, 0.0
        %v2558 = vsel %vm2528, %v2547, 0.0
        %v2559 = vsel %vm2527, %v2552, 0.0
        %v2560 = vsel %vm2528, %v2548, 0.0
        %vm2561 = vcmp.ne.s32.totalorder %v2525, 7
        %vm2562 = vcmp.ne.s32.totalorder %v2526, 7
        %2563 = vrot.lane.b32.xlu0 %v2474, 127
        %v2564 = vpop.permute.xlu0 %2563
        %2565 = vrot.lane.b32.xlu0 %v2476, 127
        %v2566 = vpop.permute.xlu0 %2565
        %2567 = vrot.lane.b32.xlu0 %v2479, 127
        %v2568 = vpop.permute.xlu0 %2567
        %2569 = vrot.lane.b32.xlu0 %v2481, 127
        %v2570 = vpop.permute.xlu0 %2569
        %2571 = vrot.lane.b32.xlu0 %v2516, 127
        %v2572 = vpop.permute.xlu0 %2571
        %2573 = vrot.lane.b32.xlu0 %v2518, 127
        %v2574 = vpop.permute.xlu0 %2573
        %2575 = vrot.lane.b32.xlu0 %v2521, 127
        %v2576 = vpop.permute.xlu0 %2575
        %2577 = vrot.lane.b32.xlu0 %v2523, 127
        %v2578 = vpop.permute.xlu0 %2577
        %v2579 = vsel %vm1007, %v2564, %v2572
        %v2580 = vsel %vm1007, %v2566, %v2574
        %v2581 = vsel %vm1007, %v2568, %v2576
        %v2582 = vsel %vm1007, %v2570, %v2578
        %v2583 = vsel %vm1007, %v2572, %v2564
        %v2584 = vsel %vm1007, %v2574, %v2566
        %v2585 = vsel %vm1007, %v2576, %v2568
        %v2586 = vsel %vm1007, %v2578, %v2570
        %v2587 = vsel %vm2561, %v2579, 0.0
        %v2588 = vsel %vm2562, %v2583, 0.0
        %v2589 = vsel %vm2561, %v2580, 0.0
        %v2590 = vsel %vm2562, %v2584, 0.0
        %v2591 = vsel %vm2561, %v2581, 0.0
        %v2592 = vsel %vm2562, %v2585, 0.0
        %v2593 = vsel %vm2561, %v2582, 0.0
        %v2594 = vsel %vm2562, %v2586, 0.0
        %v2595 = vld [vmem:[#allocation4 + $0x20] sm:$0xf]
        %v2596 = vld [vmem:[#allocation4 + $0x24] sm:$0xf]
        %v2597 = vld [vmem:[#allocation4 + $0x28] sm:$0xf]
        %v2598 = vld [vmem:[#allocation4 + $0x2c] sm:$0xf]
        %v2599 = vunpack.c.l.bf16 %v2595
        %v2600 = vunpack.c.l.bf16 %v2596
        %v2601 = vunpack.c.l.bf16 %v2597
        %v2602 = vunpack.c.l.bf16 %v2598
        %v2603 = vpack.c.bf16 %v2555, %v2553
        %v2604 = vpack.c.bf16 %v2556, %v2554
        %v2605 = vpack.c.bf16 %v2559, %v2557
        %v2606 = vpack.c.bf16 %v2560, %v2558
        %v2607 = vpack.c.bf16 %v2476, %v2474
        %v2608 = vpack.c.bf16 %v2518, %v2516
        %v2609 = vpack.c.bf16 %v2481, %v2479
        %v2610 = vpack.c.bf16 %v2523, %v2521
        %v2611 = vpack.c.bf16 %v2589, %v2587
        %v2612 = vpack.c.bf16 %v2590, %v2588
        %v2613 = vpack.c.bf16 %v2593, %v2591
        %v2614 = vpack.c.bf16 %v2594, %v2592
        %2616 = vset.pattern.permute.xlu0 96
        %2617 = vperm.xlu0 %2616, %v2599
        %v2618 = vpop.permute.xlu0 %2617
        %2621 = vset.pattern.permute.xlu0 96
        %2622 = vperm.xlu0 %2621, %v2600
        %v2623 = vpop.permute.xlu0 %2622
        %2626 = vset.pattern.permute.xlu0 96
        %2627 = vperm.xlu0 %2626, %v2601
        %v2628 = vpop.permute.xlu0 %2627
        %2631 = vset.pattern.permute.xlu0 96
        %2632 = vperm.xlu0 %2631, %v2602
        %v2633 = vpop.permute.xlu0 %2632
        %v2639 = vunpack.c.l.b16 %v2595
        %v2640 = vunpack.c.l.b16 %v2596
        %v2641 = vunpack.c.l.b16 %v2597
        %v2642 = vunpack.c.l.b16 %v2598
        %v2643 = vpack.c.b16 %v2640, %v2639
        %v2644 = vpack.c.b16 %v2642, %v2641
        %vm2645 = vcmask 785408
        %v2647 = vsel %vm2645, %v2643, 0
        %v2650 = vsel %vm2645, %v2644, 0
        %2652 = vmatpush.bf16.msra.mxu0 0
        %2653 = vmatpush.bf16.msra.mxu0 0
        %2654 = vmatpush.bf16.msra.mxu0 %v2613
        %2655 = vmatpush.bf16.msra.mxu0 %v2611
        %2656 = vmatpush.bf16.msra.mxu0 %v2609
        %2657 = vmatpush.bf16.msra.mxu0 %v2607
        %2658 = vmatpush.bf16.msra.mxu0 %v2605
        %2659 = vmatpush.bf16.msra.mxu0 %v2603
        %2660 = vmatmul.bf16.gmra.mxu0 %v2647
        %v2661 = vpop.f32.mrf.mxu0
        %v2662 = vadd.f32 %v2618, %v2661
        %v2663 = vpop.f32.mrf.mxu0
        %v2664 = vadd.f32 %v2623, %v2663
        %2665 = vmatmul.bf16.gmra.mxu0 %v2650
        %v2666 = vpop.f32.mrf.mxu0
        %v2667 = vadd.f32 %v2628, %v2666
        %v2668 = vpop.f32.mrf.mxu0
        %v2669 = vadd.f32 %v2633, %v2668
        %2670 = vdwg.mxu0
        %2671 = vmatpush.bf16.msra.mxu0 0
        %2672 = vmatpush.bf16.msra.mxu0 0
        %2673 = vmatpush.bf16.msra.mxu0 %v2614
        %2674 = vmatpush.bf16.msra.mxu0 %v2612
        %2675 = vmatpush.bf16.msra.mxu0 %v2610
        %2676 = vmatpush.bf16.msra.mxu0 %v2608
        %2677 = vmatpush.bf16.msra.mxu0 %v2606
        %2678 = vmatpush.bf16.msra.mxu0 %v2604
        %2679 = vmatmul.bf16.gmra.mxu0 %v2647
        %v2680 = vpop.f32.mrf.mxu0
        %v2681 = vadd.f32 %v2618, %v2680
        %v2682 = vpop.f32.mrf.mxu0
        %v2683 = vadd.f32 %v2623, %v2682
        %2684 = vmatmul.bf16.gmra.mxu0 %v2650
        %v2685 = vpop.f32.mrf.mxu0
        %v2686 = vadd.f32 %v2628, %v2685
        %v2687 = vpop.f32.mrf.mxu0
        %v2688 = vadd.f32 %v2633, %v2687
        %2689 = vdwg.mxu0
        %v2690 = vmax.f32 %v2662, 0.0
        %v2691 = vmax.f32 %v2681, 0.0
        %v2692 = vmax.f32 %v2664, 0.0
        %v2693 = vmax.f32 %v2683, 0.0
        %v2694 = vmax.f32 %v2667, 0.0
        %v2695 = vmax.f32 %v2686, 0.0
        %v2696 = vmax.f32 %v2669, 0.0
        %v2697 = vmax.f32 %v2688, 0.0
        %2698 = vrot.lane.b32.xlu0 %v2690, 127
        %v2699 = vpop.permute.xlu0 %2698
        %2700 = vrot.lane.b32.xlu0 %v2692, 127
        %v2701 = vpop.permute.xlu0 %2700
        %2702 = vrot.lane.b32.xlu0 %v2694, 127
        %v2703 = vpop.permute.xlu0 %2702
        %2704 = vrot.lane.b32.xlu0 %v2696, 127
        %v2705 = vpop.permute.xlu0 %2704
        %2706 = vrot.lane.b32.xlu0 %v2691, 127
        %v2707 = vpop.permute.xlu0 %2706
        %2708 = vrot.lane.b32.xlu0 %v2693, 127
        %v2709 = vpop.permute.xlu0 %2708
        %2710 = vrot.lane.b32.xlu0 %v2695, 127
        %v2711 = vpop.permute.xlu0 %2710
        %2712 = vrot.lane.b32.xlu0 %v2697, 127
        %v2713 = vpop.permute.xlu0 %2712
        %v2714 = vsel %vm1007, %v2699, %v2707
        %v2715 = vsel %vm1007, %v2701, %v2709
        %v2716 = vsel %vm1007, %v2703, %v2711
        %v2717 = vsel %vm1007, %v2705, %v2713
        %v2718 = vsel %vm1007, %v2707, %v2699
        %v2719 = vsel %vm1007, %v2709, %v2701
        %v2720 = vsel %vm1007, %v2711, %v2703
        %v2721 = vsel %vm1007, %v2713, %v2705
        %v2722 = vmax.f32 %v2690, %v2714
        %v2723 = vmax.f32 %v2691, %v2718
        %v2724 = vmax.f32 %v2692, %v2715
        %v2725 = vmax.f32 %v2693, %v2719
        %v2726 = vmax.f32 %v2694, %v2716
        %v2727 = vmax.f32 %v2695, %v2720
        %v2728 = vmax.f32 %v2696, %v2717
        %v2729 = vmax.f32 %v2697, %v2721
        %v2730 = vpack.c.bf16 %v2724, %v2722
        %v2731 = vpack.c.bf16 %v2725, %v2723
        %v2732 = vpack.c.bf16 %v2728, %v2726
        %v2733 = vpack.c.bf16 %v2729, %v2727
        %2734 = vmatpush.bf16.msra.mxu0 %v732
        %2735 = vmatpush.bf16.msra.mxu0 %v731
        %2736 = vmatpush.bf16.msra.mxu0 %v730
        %2737 = vmatpush.bf16.msra.mxu0 %v729
        %2738 = vmatpush.bf16.msra.mxu0 %v728
        %2739 = vmatpush.bf16.msra.mxu0 %v727
        %2740 = vmatpush.bf16.msra.mxu0 %v726
        %2741 = vmatpush.bf16.msra.mxu0 %v725
        %2742 = vmatmul.bf16.gmra.mxu0 %v2730
        %v2743 = vpop.f32.mrf.mxu0
        %v2744 = vadd.f32 0.0, %v2743
        %v2745 = vpop.f32.mrf.mxu0
        %v2746 = vadd.f32 0.0, %v2745
        %2747 = vmatmul.bf16.gmra.mxu0 %v2732
        %v2748 = vpop.f32.mrf.mxu0
        %v2749 = vadd.f32 0.0, %v2748
        %v2750 = vpop.f32.mrf.mxu0
        %v2751 = vadd.f32 0.0, %v2750
        %2752 = vdwg.mxu0
        %2753 = vmatpush.bf16.msra.mxu0 %v740
        %2754 = vmatpush.bf16.msra.mxu0 %v739
        %2755 = vmatpush.bf16.msra.mxu0 %v738
        %2756 = vmatpush.bf16.msra.mxu0 %v737
        %2757 = vmatpush.bf16.msra.mxu0 %v736
        %2758 = vmatpush.bf16.msra.mxu0 %v735
        %2759 = vmatpush.bf16.msra.mxu0 %v734
        %2760 = vmatpush.bf16.msra.mxu0 %v733
        %2761 = vmatmul.bf16.gmra.mxu0 %v2731
        %v2762 = vpop.f32.mrf.mxu0
        %v2763 = vadd.f32 %v2744, %v2762
        %v2764 = vpop.f32.mrf.mxu0
        %v2765 = vadd.f32 %v2746, %v2764
        %2766 = vmatmul.bf16.gmra.mxu0 %v2733
        %v2767 = vpop.f32.mrf.mxu0
        %v2768 = vadd.f32 %v2749, %v2767
        %v2769 = vpop.f32.mrf.mxu0
        %v2770 = vadd.f32 %v2751, %v2769
        %2771 = vdwg.mxu0
        %v2772 = vand.u32 %v627, 3
        %vm2773 = vcmp.ne.s32.totalorder %v2772, 0
        %2774 = vrot.lane.b32.xlu0 %v2763, 1
        %v2775 = vpop.permute.xlu0 %2774
        %2776 = vrot.lane.b32.xlu0 %v2765, 1
        %v2777 = vpop.permute.xlu0 %2776
        %2778 = vrot.lane.b32.xlu0 %v2768, 1
        %v2779 = vpop.permute.xlu0 %2778
        %2780 = vrot.lane.b32.xlu0 %v2770, 1
        %v2781 = vpop.permute.xlu0 %2780
        %v2782 = vsel %vm2773, %v2775, 0.0
        %v2783 = vsel %vm2773, %v2777, 0.0
        %v2784 = vsel %vm2773, %v2779, 0.0
        %v2785 = vsel %vm2773, %v2781, 0.0
        %vm2786 = vcmp.ne.s32.totalorder %v2772, 3
        %2787 = vrot.lane.b32.xlu0 %v2763, 127
        %v2788 = vpop.permute.xlu0 %2787
        %2789 = vrot.lane.b32.xlu0 %v2765, 127
        %v2790 = vpop.permute.xlu0 %2789
        %2791 = vrot.lane.b32.xlu0 %v2768, 127
        %v2792 = vpop.permute.xlu0 %2791
        %2793 = vrot.lane.b32.xlu0 %v2770, 127
        %v2794 = vpop.permute.xlu0 %2793
        %v2795 = vsel %vm2786, %v2788, 0.0
        %v2796 = vsel %vm2786, %v2790, 0.0
        %v2797 = vsel %vm2786, %v2792, 0.0
        %v2798 = vsel %vm2786, %v2794, 0.0
        %v2799 = vld [vmem:[#allocation4 + $0x30] sm:$0x1]
        %v2800 = vunpack.c.l.bf16 %v2799
        %v2801 = vpack.c.bf16 %v2783, %v2782
        %v2802 = vpack.c.bf16 %v2785, %v2784
        %v2803 = vpack.c.bf16 %v2765, %v2763
        %v2804 = vpack.c.bf16 %v2770, %v2768
        %v2805 = vpack.c.bf16 %v2796, %v2795
        %v2806 = vpack.c.bf16 %v2798, %v2797
        %2808 = vset.pattern.permute.xlu0 96
        %2809 = vperm.xlu0 %2808, %v2800
        %v2810 = vpop.permute.xlu0 %2809
        %v2813 = vsel %vm2645, %v2799, 0
        %2815 = vmatpush.bf16.msra.mxu0 0
        %2816 = vmatpush.bf16.msra.mxu0 0
        %2817 = vmatpush.bf16.msra.mxu0 %v2806
        %2818 = vmatpush.bf16.msra.mxu0 %v2805
        %2819 = vmatpush.bf16.msra.mxu0 %v2804
        %2820 = vmatpush.bf16.msra.mxu0 %v2803
        %2821 = vmatpush.bf16.msra.mxu0 %v2802
        %2822 = vmatpush.bf16.msra.mxu0 %v2801
        %2823 = vmatmul.bf16.gmra.mxu0 %v2813
        %v2824 = vpop.f32.mrf.mxu0
        %v2825 = vadd.f32 %v2810, %v2824
        %v2826 = vpop.f32.mrf.mxu0
        %2827 = vdwg.mxu0
        %v2828 = vmul.u32 %v594, 4
        %v2829 = vmul.u32 %v595, 4
        %v2830 = vmul.u32 %v596, 4
        %v2831 = vmul.u32 %v597, 4
        %vm2832 = vcmp.ge.s32.totalorder %v627, %v2828
        %vm2833 = vcmp.ge.s32.totalorder %v627, %v2829
        %vm2834 = vcmp.ge.s32.totalorder %v627, %v2830
        %vm2835 = vcmp.ge.s32.totalorder %v627, %v2831
        %v2836 = vadd.s32 %v2828, 4
        %v2837 = vadd.s32 %v2829, 4
        %v2838 = vadd.s32 %v2830, 4
        %v2839 = vadd.s32 %v2831, 4
        %vm2840 = vcmp.lt.s32.totalorder %v627, %v2836
        %vm2841 = vcmp.lt.s32.totalorder %v627, %v2837
        %vm2842 = vcmp.lt.s32.totalorder %v627, %v2838
        %vm2843 = vcmp.lt.s32.totalorder %v627, %v2839
        %vm2844 = vmand %vm2832, %vm2840
        %vm2845 = vmand %vm2833, %vm2841
        %vm2846 = vmand %vm2834, %vm2842
        %vm2847 = vmand %vm2835, %vm2843
        %v2848 = vperm.slane %v2825, 0
        %v2849 = vsel %vm2844, %v2848, 0.0
        %v2850 = vsel %vm2845, %v2848, 0.0
        %v2851 = vsel %vm2846, %v2848, 0.0
        %v2852 = vsel %vm2847, %v2848, 0.0
        %v2853 = vand.u32 %v594, 3
        %v2854 = vand.u32 %v595, 3
        %v2855 = vand.u32 %v596, 3
        %v2856 = vand.u32 %v597, 3
        %v2857 = vand.u32 %v598, 3
        %v2858 = vand.u32 %v599, 3
        %v2859 = vand.u32 %v600, 3
        %v2860 = vand.u32 %v601, 3
        %v2861 = vand.u32 %v602, 3
        %v2862 = vand.u32 %v603, 3
        %v2863 = vand.u32 %v604, 3
        %v2864 = vand.u32 %v605, 3
        %v2865 = vand.u32 %v606, 3
        %v2866 = vand.u32 %v607, 3
        %v2867 = vand.u32 %v608, 3
        %v2868 = vand.u32 %v609, 3
        %vm2869 = vcmp.eq.s32.totalorder %v2853, %v627
        %vm2870 = vcmp.eq.s32.totalorder %v2854, %v627
        %vm2871 = vcmp.eq.s32.totalorder %v2855, %v627
        %vm2872 = vcmp.eq.s32.totalorder %v2856, %v627
        %vm2873 = vcmp.eq.s32.totalorder %v2857, %v627
        %vm2874 = vcmp.eq.s32.totalorder %v2858, %v627
        %vm2875 = vcmp.eq.s32.totalorder %v2859, %v627
        %vm2876 = vcmp.eq.s32.totalorder %v2860, %v627
        %vm2877 = vcmp.eq.s32.totalorder %v2861, %v627
        %vm2878 = vcmp.eq.s32.totalorder %v2862, %v627
        %vm2879 = vcmp.eq.s32.totalorder %v2863, %v627
        %vm2880 = vcmp.eq.s32.totalorder %v2864, %v627
        %vm2881 = vcmp.eq.s32.totalorder %v2865, %v627
        %vm2882 = vcmp.eq.s32.totalorder %v2866, %v627
        %vm2883 = vcmp.eq.s32.totalorder %v2867, %v627
        %vm2884 = vcmp.eq.s32.totalorder %v2868, %v627
        %v2885 = vsel %vm2869, 1, 0
        %v2886 = vsel %vm2870, 1, 0
        %v2887 = vsel %vm2871, 1, 0
        %v2888 = vsel %vm2872, 1, 0
        %v2889 = vsel %vm2873, 1, 0
        %v2890 = vsel %vm2874, 1, 0
        %v2891 = vsel %vm2875, 1, 0
        %v2892 = vsel %vm2876, 1, 0
        %v2893 = vsel %vm2877, 1, 0
        %v2894 = vsel %vm2878, 1, 0
        %v2895 = vsel %vm2879, 1, 0
        %v2896 = vsel %vm2880, 1, 0
        %v2897 = vsel %vm2881, 1, 0
        %v2898 = vsel %vm2882, 1, 0
        %v2899 = vsel %vm2883, 1, 0
        %v2900 = vsel %vm2884, 1, 0
        %v2901 = vcvt.s32.f32 %v2885
        %v2902 = vcvt.s32.f32 %v2886
        %v2903 = vcvt.s32.f32 %v2887
        %v2904 = vcvt.s32.f32 %v2888
        %v2905 = vcvt.s32.f32 %v2889
        %v2906 = vcvt.s32.f32 %v2890
        %v2907 = vcvt.s32.f32 %v2891
        %v2908 = vcvt.s32.f32 %v2892
        %v2909 = vcvt.s32.f32 %v2893
        %v2910 = vcvt.s32.f32 %v2894
        %v2911 = vcvt.s32.f32 %v2895
        %v2912 = vcvt.s32.f32 %v2896
        %v2913 = vcvt.s32.f32 %v2897
        %v2914 = vcvt.s32.f32 %v2898
        %v2915 = vcvt.s32.f32 %v2899
        %v2916 = vcvt.s32.f32 %v2900
        %v2917 = vpack.c.bf16 %v2902, %v2901
        %v2918 = vpack.c.bf16 %v2904, %v2903
        %v2919 = vpack.c.bf16 %v2906, %v2905
        %v2920 = vpack.c.bf16 %v2908, %v2907
        %v2921 = vpack.c.bf16 %v2910, %v2909
        %v2922 = vpack.c.bf16 %v2912, %v2911
        %v2923 = vpack.c.bf16 %v2914, %v2913
        %v2924 = vpack.c.bf16 %v2916, %v2915
        %v2925 = vpack.c.bf16 %v2850, %v2849
        %v2926 = vpack.c.bf16 %v2852, %v2851
        %v2927 = vld [vmem:[%s4 + $0x40] sm:$0x3]
        %v2928 = vld [vmem:[%s4 + $0x48] sm:$0x1]
        %v2929 = vunpack.c.l.bf16 %v2928
        %2930 = vmatpush.bf16.msra.mxu0 %v2924
        %2931 = vmatpush.bf16.msra.mxu0 %v2923
        %2932 = vmatpush.bf16.msra.mxu0 %v2922
        %2933 = vmatpush.bf16.msra.mxu0 %v2921
        %2934 = vmatpush.bf16.msra.mxu0 %v2920
        %2935 = vmatpush.bf16.msra.mxu0 %v2919
        %2936 = vmatpush.bf16.msra.mxu0 %v2918
        %2937 = vmatpush.bf16.msra.mxu0 %v2917
        %2938 = vmatmul.bf16.gmra.mxu0 %v2925
        %v2939 = vpop.f32.mrf.mxu0
        %v2940 = vadd.f32 %v584, %v2939
        %v2941 = vpop.f32.mrf.mxu0
        %v2942 = vadd.f32 %v586, %v2941
        %2943 = vmatmul.bf16.gmra.mxu0 %v2926
        %v2944 = vpop.f32.mrf.mxu0
        %v2945 = vadd.f32 %v589, %v2944
        %v2946 = vpop.f32.mrf.mxu0
        %v2947 = vadd.f32 %v591, %v2946
        %2948 = vdwg.mxu0
        %v2949 = vpack.c.bf16 %v2942, %v2940
        %v2950 = vpack.c.bf16 %v2947, %v2945
        %v2951 = vperm.slane %v2929, 0
        %vm2952 = vcmask 31744
        %v2954 = vsel %vm2952, %v2949, 0
        %v2957 = vsel %vm2952, %v2950, 0
        %vm2959 = vcmask 1041408
        %v2961 = vsel %vm2959, %v2927, 0
        %2963 = vmatpush.bf16.msra.mxu0 0
        %2964 = vmatpush.bf16.msra.mxu0 0
        %2965 = vmatpush.bf16.msra.mxu0 0
        %2966 = vmatpush.bf16.msra.mxu0 0
        %2967 = vmatpush.bf16.msra.mxu0 0
        %2968 = vmatpush.bf16.msra.mxu0 0
        %2969 = vmatpush.bf16.msra.mxu0 0
        %2970 = vmatpush.bf16.msra.mxu0 %v2961
        %2971 = vmatmul.bf16.gmra.mxu0 %v2954
        %v2972 = vpop.f32.mrf.mxu0
        %v2973 = vadd.f32 %v2951, %v2972
        %v2974 = vpop.f32.mrf.mxu0
        %v2975 = vadd.f32 %v2951, %v2974
        %2976 = vmatmul.bf16.gmra.mxu0 %v2957
        %v2977 = vpop.f32.mrf.mxu0
        %v2978 = vadd.f32 %v2951, %v2977
        %v2979 = vpop.f32.mrf.mxu0
        %v2980 = vadd.f32 %v2951, %v2979
        %2981 = vdwg.mxu0
        %vm2982 = vcmask 64512
        %2983 = vst.msk [vmem:[%s287] sm:$0xff] %vm2982, %v2973
        %2984 = vst.msk [vmem:[%s287 + $0x8] sm:$0xff] %vm2982, %v2975
        %2985 = vst.msk [vmem:[%s287 + $0x10] sm:$0xff] %vm2982, %v2978
        %2986 = vst.msk [vmem:[%s287 + $0x18] sm:$0xff] %vm2982, %v2980
        %s2987 = smul.u32 4, %s20
        %p2988 = scmp.lt.s32.totalorder %s2987, 7
        %s2989 = scalar_select %p2988, %s2987, 7
        %s2990 = smul.addr %s2989, 8
        %s2991 = scalar_lea.vmem %s5, %s2990
        // Predicated region
        $region49: #{tpu_custom_call.1} parent=39 // pred_check
          %p2992 = pneg %p153
        $region50: #{tpu_custom_call.1} parent=39 // pred_check_branch
          %2994 = sbr.rel (%p2992) target = $region52
        $region51: #{tpu_custom_call.1} parent=39 // pred_region
          %s2995 = smul.u32 4, %s20
        $region52: #{tpu_custom_call.1} parent=39 // pred_fallthru
          _
      $region40: #{tpu_custom_call.1} parent=5 // pred_fallthru
        _
      %p2996 = scmp.le.s32.totalorder 2, %s15
      // Predicated region
      $region53: #{tpu_custom_call.1} parent=5 // pred_check
        %p2997 = pneg %p2996
      $region54: #{tpu_custom_call.1} parent=5 // pred_check_branch
        %2999 = sbr.rel (%p2997) target = $region56
      $region55: #{tpu_custom_call.1} parent=5 // pred_region
        %s3000 = ssub.s32 %s15, 2
        // Predicated region
        $region57: #{tpu_custom_call.1} parent=55 // pred_check
          %p3001 = pneg %p159
        $region58: #{tpu_custom_call.1} parent=55 // pred_check_branch
          %3003 = sbr.rel (%p3001) target = $region60
        $region59: #{tpu_custom_call.1} parent=55 // pred_region
          %s3004 = smul.u32 4, %s21
          %p3005 = scmp.lt.s32.totalorder %s3004, 7
          %s3006 = scalar_select %p3005, %s3004, 7
          %s3007 = smul.addr %s3006, 8
          %s3008 = scalar_lea.vmem %s5, %s3007
        $region60: #{tpu_custom_call.1} parent=55 // pred_fallthru
          _
      $region56: #{tpu_custom_call.1} parent=5 // pred_fallthru
        _
    $region6: #{tpu_custom_call.1} parent=1 // loop_footer
      %s19 = sadd.s32 1, %s15
    $region7: #{tpu_custom_call.1} parent=1 // loop_footer_branch
      %14 = sbr.rel target = $region3
    $region8: #{tpu_custom_call.1} parent=1 // loop_exit
      _
    %3009 = vsyncpa [#allocation3], 1
    %s3010 = scalar_lea.sflag [#allocation3], 1
    %3011 = vsyncpa %s3010, 1
    %3012 = vsyncpa [#allocation5], 1

</llo_original>
